<compile_context>
chip_gen: v6e
topology: v6e:2x2x1
jax: 0.10.0
libtpu: 0.0.40
codegen_flags: <defaults>
</compile_context>

<pallas_src>
import functools

import jax
import jax.numpy as jnp
from jax.experimental import pallas as pl
from jax.experimental.pallas import tpu as pltpu

_GROUPS = 32
_INV_SQRT2 = 0.7071067811865476


# ----------------------------------------------------------------------------------
# in-kernel helpers
# ----------------------------------------------------------------------------------
def _lane_roll(v, shift, roll_mode):
    """jnp.roll(v, shift, axis=-1) semantics on the lane (last) axis."""
    n = v.shape[-1]
    if shift % n == 0:
        return v
    if roll_mode == 0:
        # Defensive fallback (probe failure): correct but slow (slice + concat).
        return jnp.roll(v, shift % n, axis=-1)
    # roll_mode = +1: pltpu.roll matches jnp.roll; -1: opposite rotation direction.
    return pltpu.roll(v, (roll_mode * shift) % n, axis=1)


def _build_col_slab(xb, col_ref, w_img, m_first, m_last, roll_mode):
    """Write the 9 circularly shifted copies of xb (C, HW) bf16 into col_ref rows
    [0, 9*C).

    Row block t = dy*3 + dx holds xb shifted by (dy-1, dx-1) (circular), matching the
    (Cout, 9*Cin) weight layout.  Row shifts are exact lane rolls of the flattened
    image; the column wrap inside each image row is fixed with a second roll plus a
    boolean select against the precomputed boundary mask.  Everything stays bf16.
    """
    c, hw = xb.shape
    # Hoist the (1,HW) -> (C,HW) mask broadcasts once (JAX does not CSE broadcasts).
    mf = jnp.broadcast_to(m_first, (c, hw))
    ml = jnp.broadcast_to(m_last, (c, hw))
    t = 0
    for ty in (-1, 0, 1):
        for tx in (-1, 0, 1):
            k = ty * w_img + tx
            v = _lane_roll(xb, -k, roll_mode)                  # v[p] = xb[p + k]
            if tx != 0:
                fix = _lane_roll(xb, -(k - tx * w_img), roll_mode)
                m = ml if tx > 0 else mf                       # (C, HW) wrap mask
                v = jnp.where(m, fix, v)
            col_ref[t * c:(t + 1) * c, :] = v
            t += 1


def _group_norm_gelu(acc, gmat, gamma, beta):
    """GroupNorm(32) + exact GELU on a lane-dense (C, HW) f32 tile.

    Reordered reduction: lane (HW) sums first -> (C,1), then the group mix is a tiny
    (C,C)@(C,1) matvec (gmat is the same-group indicator pre-scaled by
    1/(channels_per_group*HW)).  Two-pass mean/var for numerical safety.
    """
    colsum = jnp.sum(acc, axis=1, keepdims=True)                        # (C, 1)
    mean = jnp.dot(gmat, colsum, preferred_element_type=jnp.float32)    # (C, 1)
    xc = acc - mean
    sqsum = jnp.sum(xc * xc, axis=1, keepdims=True)                     # (C, 1)
    var = jnp.dot(gmat, sqsum, preferred_element_type=jnp.float32)      # (C, 1)
    y = xc * jax.lax.rsqrt(var + 1e-5)
    y = y * gamma + beta
    # Exact (erf) GELU for parity with torch nn.GELU.  (tanh-approx would move this
    # to the EUP slot if the VALU ever becomes the binding unit.)
    return 0.5 * y * (1.0 + jax.lax.erf(y * _INV_SQRT2))


def _decoder_block_kernel(x_ref, colidx_ref,
                          w1_ref, b1_ref, g1_ref, be1_ref, gm1_ref,
                          w2_ref, b2_ref, g2_ref, be2_ref, gm2_ref,
                          o_ref, col_ref, *, w_img, cin, cmid, roll_mode):
    col_idx = colidx_ref[...]                                          # (1, HW) int32
    m_first = col_idx == 0
    m_last = col_idx == (w_img - 1)

    # ---- stage 1: Conv2d(3x3, circular) -> GroupNorm(32) -> GELU ----
    xb = x_ref[0].astype(jnp.bfloat16)                                 # (Cin, HW) bf16
    _build_col_slab(xb, col_ref, w_img, m_first, m_last, roll_mode)
    acc1 = jnp.dot(w1_ref[...], col_ref[0:9 * cin, :],
                   preferred_element_type=jnp.float32)                 # (Cmid, HW) f32
    acc1 = acc1 + b1_ref[...]
    y1 = _group_norm_gelu(acc1, gm1_ref[...], g1_ref[...], be1_ref[...])

    # ---- stage 2: same, reusing the (now dead) slab and the VMEM-resident y1 ----
    y1b = y1.astype(jnp.bfloat16)
    _build_col_slab(y1b, col_ref, w_img, m_first, m_last, roll_mode)
    acc2 = jnp.dot(w2_ref[...], col_ref[0:9 * cmid, :],
                   preferred_element_type=jnp.float32)                 # (Cout, HW) f32
    acc2 = acc2 + b2_ref[...]
    y2 = _group_norm_gelu(acc2, gm2_ref[...], g2_ref[...], be2_ref[...])

    o_ref[0] = y2.astype(o_ref.dtype)                                  # lane-dense store


# ----------------------------------------------------------------------------------
# wrapper
# ----------------------------------------------------------------------------------
def _group_matrix(c, hw):
    cpg = c // _GROUPS
    g = jnp.arange(c) // cpg
    ind = (g[:, None] == g[None, :]).astype(jnp.float32)
    return ind / jnp.float32(cpg * hw)


def _conv_weight_2d(w_oihw):
    # torch OIHW (Co, Ci, 3, 3) -> (Co, 9*Ci) with K ordered (dy, dx, ci), bf16.
    co, ci, kh, kw = w_oihw.shape
    w2d = jnp.transpose(w_oihw, (0, 2, 3, 1)).reshape(co, kh * kw * ci)
    return w2d.astype(jnp.bfloat16)


def _vmem_limit_bytes(cin, cmid, cout, hw):
    """Explicit scoped-VMEM budget sized from the real footprint (with headroom)."""
    maxc = max(cin, cmid)
    slab = 9 * maxc * hw * 2                               # shared bf16 im2col slab
    io = 2 * (cin + cout) * hw * 4                         # double-buffered act blocks
    live = 4 * max(cmid, cout) * hw * 4                    # f32 acc / y tiles in flight
    wgt = (cmid * 9 * cin + cout * 9 * cmid) * 2 \
        + (cmid * cmid + cout * cout) * 4 + 4 * (cmid + cout) * 4
    est = slab + io + live + wgt + (4 << 20)               # + compiler scratch headroom
    return int(min(max(est, 32 << 20), 100 << 20))


def decoder_block_forward(x_nchw, params, *, roll_mode):
    n, cin, h, w = x_nchw.shape
    hw = h * w
    cmid = params["w1"].shape[0]
    cout = params["w2"].shape[0]
    assert cmid % _GROUPS == 0 and cout % _GROUPS == 0, \
        "GroupNorm(32) requires channel counts that are multiples of 32"
    assert cin % 8 == 0, "input channels should be sublane-aligned"

    x_flat = x_nchw.reshape(n, cin, hw)        # NCHW flattened: kernel/output layout.
    col_idx = (jnp.arange(hw, dtype=jnp.int32) % w).reshape(1, hw)

    w1 = _conv_weight_2d(params["w1"])
    w2 = _conv_weight_2d(params["w2"])
    b1 = params["b1"].reshape(cmid, 1)
    g1 = params["g1"].reshape(cmid, 1)
    be1 = params["be1"].reshape(cmid, 1)
    b2 = params["b2"].reshape(cout, 1)
    g2 = params["g2"].reshape(cout, 1)
    be2 = params["be2"].reshape(cout, 1)
    gm1 = _group_matrix(cmid, hw)
    gm2 = _group_matrix(cout, hw)

    maxc = max(cin, cmid)
    kernel = functools.partial(_decoder_block_kernel, w_img=w,
                               cin=cin, cmid=cmid, roll_mode=roll_mode)
    rep = lambda i: (0, 0)   # parameter blocks: same index every step -> loaded once

    out = pl.pallas_call(
        kernel,
        out_shape=jax.ShapeDtypeStruct((n, cout, hw), jnp.float32),
        grid=(n,),
        in_specs=[
            pl.BlockSpec((1, cin, hw), lambda i: (i, 0, 0)),   # per-sample activation
            pl.BlockSpec((1, hw), rep),                        # column-index (int32)
            pl.BlockSpec((cmid, 9 * cin), rep),                # conv1 weights (bf16)
            pl.BlockSpec((cmid, 1), rep),                      # conv1 bias
            pl.BlockSpec((cmid, 1), rep),                      # GN1 gamma
            pl.BlockSpec((cmid, 1), rep),                      # GN1 beta
            pl.BlockSpec((cmid, cmid), rep),                   # GN1 group matrix
            pl.BlockSpec((cout, 9 * cmid), rep),               # conv2 weights (bf16)
            pl.BlockSpec((cout, 1), rep),                      # conv2 bias
            pl.BlockSpec((cout, 1), rep),                      # GN2 gamma
            pl.BlockSpec((cout, 1), rep),                      # GN2 beta
            pl.BlockSpec((cout, cout), rep),                   # GN2 group matrix
        ],
        out_specs=pl.BlockSpec((1, cout, hw), lambda i: (i, 0, 0)),
        scratch_shapes=[
            pltpu.VMEM((9 * maxc, hw), jnp.bfloat16),          # SHARED im2col slab
        ],
        compiler_params=pltpu.CompilerParams(
            dimension_semantics=("parallel",),
            vmem_limit_bytes=_vmem_limit_bytes(cin, cmid, cout, hw)),
    )(x_flat, col_idx, w1, b1, g1, be1, gm1, w2, b2, g2, be2, gm2)

    return out.reshape(n, cout, h, w)


def _detect_roll_mode():
    """Probe pltpu.roll's rotation direction once on the device.

    Returns +1 if pltpu.roll matches jnp.roll semantics, -1 if it rotates the other
    way, 0 to fall back to a slice+concat roll if the probe cannot run.  (The 0
    fallback is correct but slow; in production treat it as an error.)
    """
    def probe(o_ref):
        idx = jax.lax.broadcasted_iota(jnp.int32, (8, 256), 1)
        o_ref[...] = pltpu.roll(idx, 1, axis=1)

    try:
        r = pl.pallas_call(
            probe, out_shape=jax.ShapeDtypeStruct((8, 256), jnp.int32))()
        first = int(jax.device_get(r)[0, 0])
    except Exception:
        return 0
    if first == 255:      # result[0] == x[-1]  -> jnp.roll convention
        return 1
    if first == 1:        # result[0] == x[+1]  -> opposite convention
        return -1
    return 0


# ----------------------------------------------------------------------------------
# parameters + pure-JAX reference (same bf16-GEMM / f32-accumulate precision)
# ----------------------------------------------------------------------------------
def init_params(key, cin, cmid, cout):
    ks = jax.random.split(key, 8)

    def conv_w(k, ci, co):
        scale = 1.0 / jnp.sqrt(jnp.float32(ci * 9))
        return jax.random.normal(k, (co, ci, 3, 3), jnp.float32) * scale  # OIHW (torch)

    return {
        "w1": conv_w(ks[0], cin, cmid),
        "b1": 0.05 * jax.random.normal(ks[1], (cmid,), jnp.float32),
        "g1": 1.0 + 0.1 * jax.random.normal(ks[2], (cmid,), jnp.float32),
        "be1": 0.1 * jax.random.normal(ks[3], (cmid,), jnp.float32),
        "w2": conv_w(ks[4], cmid, cout),
        "b2": 0.05 * jax.random.normal(ks[5], (cout,), jnp.float32),
        "g2": 1.0 + 0.1 * jax.random.normal(ks[6], (cout,), jnp.float32),
        "be2": 0.1 * jax.random.normal(ks[7], (cout,), jnp.float32),
    }


def _ref_stage(x_nchw, w_oihw, b, gamma, beta):
    # Conv2d(3x3, circular) -> GroupNorm(32) -> exact GELU, plain JAX (NCHW).
    xp = jnp.pad(x_nchw, ((0, 0), (0, 0), (1, 1), (1, 1)), mode="wrap")
    y = jax.lax.conv_general_dilated(
        xp.astype(jnp.bfloat16), w_oihw.astype(jnp.bfloat16),
        window_strides=(1, 1), padding="VALID",
        dimension_numbers=("NCHW", "OIHW", "NCHW"),
        preferred_element_type=jnp.float32)
    y = y + b.reshape(1, -1, 1, 1)
    n, c, h, w = y.shape
    yg = y.reshape(n, _GROUPS, c // _GROUPS, h, w)
    mean = yg.mean(axis=(2, 3, 4), keepdims=True)
    var = yg.var(axis=(2, 3, 4), keepdims=True)
    yn = ((yg - mean) * jax.lax.rsqrt(var + 1e-5)).reshape(n, c, h, w)
    yn = yn * gamma.reshape(1, -1, 1, 1) + beta.reshape(1, -1, 1, 1)
    return 0.5 * yn * (1.0 + jax.lax.erf(yn * _INV_SQRT2))


if __name__ == "__main__":
    key = jax.random.PRNGKey(0)
    kx, kp = jax.random.split(key)

    # small but GroupNorm(32)-compatible shapes: in=32, mid=64, out=32, 16x16 spatial
    N, CIN, CMID, COUT, H, W = 4, 32, 64, 32, 16, 16
    x = jax.random.normal(kx, (N, CIN, H, W), jnp.float32)   # NCHW, like PyTorch
    params = init_params(kp, CIN, CMID, COUT)

    roll_mode = _detect_roll_mode()
    fwd = jax.jit(functools.partial(decoder_block_forward, roll_mode=roll_mode))
    out = jax.block_until_ready(fwd(x, params))
    assert out.shape == (N, COUT, H, W)

    # sanity check against the plain-JAX reference
    ref = _ref_stage(x, params["w1"], params["b1"], params["g1"], params["be1"])
    ref = _ref_stage(ref, params["w2"], params["b2"], params["g2"], params["be2"])
    err = float(jnp.max(jnp.abs(out - ref)))
    assert err < 5e-3, f"max abs error {err}"

    print("KERNEL_OK")
</pallas_src>

<mosaic_0001>
module attributes {stable_mosaic.version = 11 : i64} {
  func.func @_decoder_block_kernel(%arg0: i32, %arg1: memref<1x32x256xf32, #tpu.memory_space<vmem>>, %arg2: memref<1x256xi32, #tpu.memory_space<vmem>>, %arg3: memref<64x288xbf16, #tpu.memory_space<vmem>>, %arg4: memref<64x1xf32, #tpu.memory_space<vmem>>, %arg5: memref<64x1xf32, #tpu.memory_space<vmem>>, %arg6: memref<64x1xf32, #tpu.memory_space<vmem>>, %arg7: memref<64x64xf32, #tpu.memory_space<vmem>>, %arg8: memref<32x576xbf16, #tpu.memory_space<vmem>>, %arg9: memref<32x1xf32, #tpu.memory_space<vmem>>, %arg10: memref<32x1xf32, #tpu.memory_space<vmem>>, %arg11: memref<32x1xf32, #tpu.memory_space<vmem>>, %arg12: memref<32x32xf32, #tpu.memory_space<vmem>>, %arg13: memref<1x32x256xf32, #tpu.memory_space<vmem>>, %arg14: memref<576x256xbf16, #tpu.memory_space<vmem>>) attributes {dimension_semantics = [#tpu.dimension_semantics<parallel>], iteration_bounds = array<i64: 4>, scalar_prefetch = 0 : i64, scratch_operands = 1 : i64, tpu.core_type = #tpu.core_type<tc>, window_params = [{transform_indices = @transform_0, window_bounds = array<i64: 1, 32, 256>}, {pipeline_mode = #tpu.pipeline_mode<synchronous>, transform_indices = @transform_1, window_bounds = array<i64: 1, 256>}, {pipeline_mode = #tpu.pipeline_mode<synchronous>, transform_indices = @transform_2, window_bounds = array<i64: 64, 288>}, {pipeline_mode = #tpu.pipeline_mode<synchronous>, transform_indices = @transform_3, window_bounds = array<i64: 64, 1>}, {pipeline_mode = #tpu.pipeline_mode<synchronous>, transform_indices = @transform_4, window_bounds = array<i64: 64, 1>}, {pipeline_mode = #tpu.pipeline_mode<synchronous>, transform_indices = @transform_5, window_bounds = array<i64: 64, 1>}, {pipeline_mode = #tpu.pipeline_mode<synchronous>, transform_indices = @transform_6, window_bounds = array<i64: 64, 64>}, {pipeline_mode = #tpu.pipeline_mode<synchronous>, transform_indices = @transform_7, window_bounds = array<i64: 32, 576>}, {pipeline_mode = #tpu.pipeline_mode<synchronous>, transform_indices = @transform_8, window_bounds = array<i64: 32, 1>}, {pipeline_mode = #tpu.pipeline_mode<synchronous>, transform_indices = @transform_9, window_bounds = array<i64: 32, 1>}, {pipeline_mode = #tpu.pipeline_mode<synchronous>, transform_indices = @transform_10, window_bounds = array<i64: 32, 1>}, {pipeline_mode = #tpu.pipeline_mode<synchronous>, transform_indices = @transform_11, window_bounds = array<i64: 32, 32>}, {transform_indices = @transform_12, window_bounds = array<i64: 1, 32, 256>}]} {
    %c0 = arith.constant 0 : index
    %c0_0 = arith.constant 0 : index
    %0 = vector.load %arg2[%c0, %c0_0] : memref<1x256xi32, #tpu.memory_space<vmem>>, vector<1x256xi32>
    %c0_i32 = arith.constant 0 : i32
    %1 = vector.broadcast %c0_i32 : i32 to vector<1x256xi32>
    %2 = arith.cmpi eq, %0, %1 : vector<1x256xi32>
    %c15_i32 = arith.constant 15 : i32
    %3 = vector.broadcast %c15_i32 : i32 to vector<1x256xi32>
    %4 = arith.cmpi eq, %0, %3 : vector<1x256xi32>
    %c0_1 = arith.constant 0 : index
    %c0_2 = arith.constant 0 : index
    %c0_3 = arith.constant 0 : index
    %5 = vector.load %arg1[%c0_1, %c0_2, %c0_3] : memref<1x32x256xf32, #tpu.memory_space<vmem>>, vector<1x32x256xf32>
    %6 = vector.shape_cast %5 : vector<1x32x256xf32> to vector<32x256xf32>
    %7 = arith.truncf %6 : vector<32x256xf32> to vector<32x256xbf16>
    %8 = vector.shape_cast %2 : vector<1x256xi1> to vector<1x256xi1>
    %9 = vector.broadcast %8 : vector<1x256xi1> to vector<32x256xi1>
    %10 = vector.shape_cast %4 : vector<1x256xi1> to vector<1x256xi1>
    %11 = vector.broadcast %10 : vector<1x256xi1> to vector<32x256xi1>
    %12 = vector.extract_strided_slice %7 {offsets = [0, 239], sizes = [32, 17], strides = [1, 1]} : vector<32x256xbf16> to vector<32x17xbf16>
    %13 = vector.extract_strided_slice %7 {offsets = [0, 0], sizes = [32, 239], strides = [1, 1]} : vector<32x256xbf16> to vector<32x239xbf16>
    %14 = tpu.concatenate %12, %13 in 1 : vector<32x17xbf16>, vector<32x239xbf16> -> vector<32x256xbf16>
    %15 = vector.extract_strided_slice %7 {offsets = [0, 255], sizes = [32, 1], strides = [1, 1]} : vector<32x256xbf16> to vector<32x1xbf16>
    %16 = vector.extract_strided_slice %7 {offsets = [0, 0], sizes = [32, 255], strides = [1, 1]} : vector<32x256xbf16> to vector<32x255xbf16>
    %17 = tpu.concatenate %15, %16 in 1 : vector<32x1xbf16>, vector<32x255xbf16> -> vector<32x256xbf16>
    %18 = arith.select %9, %17, %14 : vector<32x256xi1>, vector<32x256xbf16>
    %c0_4 = arith.constant 0 : index
    %c0_5 = arith.constant 0 : index
    %19 = vector.load %arg14[%c0_4, %c0_5] : memref<576x256xbf16, #tpu.memory_space<vmem>>, vector<32x256xbf16>
    tpu.vector_store %arg14[%c0_4, %c0_5], %18 {strides = array<i32>} : memref<576x256xbf16, #tpu.memory_space<vmem>>, vector<32x256xbf16>,
    %20 = vector.extract_strided_slice %7 {offsets = [0, 240], sizes = [32, 16], strides = [1, 1]} : vector<32x256xbf16> to vector<32x16xbf16>
    %21 = vector.extract_strided_slice %7 {offsets = [0, 0], sizes = [32, 240], strides = [1, 1]} : vector<32x256xbf16> to vector<32x240xbf16>
    %22 = tpu.concatenate %20, %21 in 1 : vector<32x16xbf16>, vector<32x240xbf16> -> vector<32x256xbf16>
    %c32 = arith.constant 32 : index
    %c0_6 = arith.constant 0 : index
    %23 = vector.load %arg14[%c32, %c0_6] : memref<576x256xbf16, #tpu.memory_space<vmem>>, vector<32x256xbf16>
    tpu.vector_store %arg14[%c32, %c0_6], %22 {strides = array<i32>} : memref<576x256xbf16, #tpu.memory_space<vmem>>, vector<32x256xbf16>,
    %24 = vector.extract_strided_slice %7 {offsets = [0, 241], sizes = [32, 15], strides = [1, 1]} : vector<32x256xbf16> to vector<32x15xbf16>
    %25 = vector.extract_strided_slice %7 {offsets = [0, 0], sizes = [32, 241], strides = [1, 1]} : vector<32x256xbf16> to vector<32x241xbf16>
    %26 = tpu.concatenate %24, %25 in 1 : vector<32x15xbf16>, vector<32x241xbf16> -> vector<32x256xbf16>
    %27 = vector.extract_strided_slice %7 {offsets = [0, 225], sizes = [32, 31], strides = [1, 1]} : vector<32x256xbf16> to vector<32x31xbf16>
    %28 = vector.extract_strided_slice %7 {offsets = [0, 0], sizes = [32, 225], strides = [1, 1]} : vector<32x256xbf16> to vector<32x225xbf16>
    %29 = tpu.concatenate %27, %28 in 1 : vector<32x31xbf16>, vector<32x225xbf16> -> vector<32x256xbf16>
    %30 = arith.select %11, %29, %26 : vector<32x256xi1>, vector<32x256xbf16>
    %c64 = arith.constant 64 : index
    %c0_7 = arith.constant 0 : index
    %31 = vector.load %arg14[%c64, %c0_7] : memref<576x256xbf16, #tpu.memory_space<vmem>>, vector<32x256xbf16>
    tpu.vector_store %arg14[%c64, %c0_7], %30 {strides = array<i32>} : memref<576x256xbf16, #tpu.memory_space<vmem>>, vector<32x256xbf16>,
    %32 = vector.extract_strided_slice %7 {offsets = [0, 255], sizes = [32, 1], strides = [1, 1]} : vector<32x256xbf16> to vector<32x1xbf16>
    %33 = vector.extract_strided_slice %7 {offsets = [0, 0], sizes = [32, 255], strides = [1, 1]} : vector<32x256xbf16> to vector<32x255xbf16>
    %34 = tpu.concatenate %32, %33 in 1 : vector<32x1xbf16>, vector<32x255xbf16> -> vector<32x256xbf16>
    %35 = vector.extract_strided_slice %7 {offsets = [0, 15], sizes = [32, 241], strides = [1, 1]} : vector<32x256xbf16> to vector<32x241xbf16>
    %36 = vector.extract_strided_slice %7 {offsets = [0, 0], sizes = [32, 15], strides = [1, 1]} : vector<32x256xbf16> to vector<32x15xbf16>
    %37 = tpu.concatenate %35, %36 in 1 : vector<32x241xbf16>, vector<32x15xbf16> -> vector<32x256xbf16>
    %38 = arith.select %9, %37, %34 : vector<32x256xi1>, vector<32x256xbf16>
    %c96 = arith.constant 96 : index
    %c0_8 = arith.constant 0 : index
    %39 = vector.load %arg14[%c96, %c0_8] : memref<576x256xbf16, #tpu.memory_space<vmem>>, vector<32x256xbf16>
    tpu.vector_store %arg14[%c96, %c0_8], %38 {strides = array<i32>} : memref<576x256xbf16, #tpu.memory_space<vmem>>, vector<32x256xbf16>,
    %c128 = arith.constant 128 : index
    %c0_9 = arith.constant 0 : index
    %40 = vector.load %arg14[%c128, %c0_9] : memref<576x256xbf16, #tpu.memory_space<vmem>>, vector<32x256xbf16>
    tpu.vector_store %arg14[%c128, %c0_9], %7 {strides = array<i32>} : memref<576x256xbf16, #tpu.memory_space<vmem>>, vector<32x256xbf16>,
    %41 = vector.extract_strided_slice %7 {offsets = [0, 1], sizes = [32, 255], strides = [1, 1]} : vector<32x256xbf16> to vector<32x255xbf16>
    %42 = vector.extract_strided_slice %7 {offsets = [0, 0], sizes = [32, 1], strides = [1, 1]} : vector<32x256xbf16> to vector<32x1xbf16>
    %43 = tpu.concatenate %41, %42 in 1 : vector<32x255xbf16>, vector<32x1xbf16> -> vector<32x256xbf16>
    %44 = vector.extract_strided_slice %7 {offsets = [0, 241], sizes = [32, 15], strides = [1, 1]} : vector<32x256xbf16> to vector<32x15xbf16>
    %45 = vector.extract_strided_slice %7 {offsets = [0, 0], sizes = [32, 241], strides = [1, 1]} : vector<32x256xbf16> to vector<32x241xbf16>
    %46 = tpu.concatenate %44, %45 in 1 : vector<32x15xbf16>, vector<32x241xbf16> -> vector<32x256xbf16>
    %47 = arith.select %11, %46, %43 : vector<32x256xi1>, vector<32x256xbf16>
    %c160 = arith.constant 160 : index
    %c0_10 = arith.constant 0 : index
    %48 = vector.load %arg14[%c160, %c0_10] : memref<576x256xbf16, #tpu.memory_space<vmem>>, vector<32x256xbf16>
    tpu.vector_store %arg14[%c160, %c0_10], %47 {strides = array<i32>} : memref<576x256xbf16, #tpu.memory_space<vmem>>, vector<32x256xbf16>,
    %49 = vector.extract_strided_slice %7 {offsets = [0, 15], sizes = [32, 241], strides = [1, 1]} : vector<32x256xbf16> to vector<32x241xbf16>
    %50 = vector.extract_strided_slice %7 {offsets = [0, 0], sizes = [32, 15], strides = [1, 1]} : vector<32x256xbf16> to vector<32x15xbf16>
    %51 = tpu.concatenate %49, %50 in 1 : vector<32x241xbf16>, vector<32x15xbf16> -> vector<32x256xbf16>
    %52 = vector.extract_strided_slice %7 {offsets = [0, 31], sizes = [32, 225], strides = [1, 1]} : vector<32x256xbf16> to vector<32x225xbf16>
    %53 = vector.extract_strided_slice %7 {offsets = [0, 0], sizes = [32, 31], strides = [1, 1]} : vector<32x256xbf16> to vector<32x31xbf16>
    %54 = tpu.concatenate %52, %53 in 1 : vector<32x225xbf16>, vector<32x31xbf16> -> vector<32x256xbf16>
    %55 = arith.select %9, %54, %51 : vector<32x256xi1>, vector<32x256xbf16>
    %c192 = arith.constant 192 : index
    %c0_11 = arith.constant 0 : index
    %56 = vector.load %arg14[%c192, %c0_11] : memref<576x256xbf16, #tpu.memory_space<vmem>>, vector<32x256xbf16>
    tpu.vector_store %arg14[%c192, %c0_11], %55 {strides = array<i32>} : memref<576x256xbf16, #tpu.memory_space<vmem>>, vector<32x256xbf16>,
    %57 = vector.extract_strided_slice %7 {offsets = [0, 16], sizes = [32, 240], strides = [1, 1]} : vector<32x256xbf16> to vector<32x240xbf16>
    %58 = vector.extract_strided_slice %7 {offsets = [0, 0], sizes = [32, 16], strides = [1, 1]} : vector<32x256xbf16> to vector<32x16xbf16>
    %59 = tpu.concatenate %57, %58 in 1 : vector<32x240xbf16>, vector<32x16xbf16> -> vector<32x256xbf16>
    %c224 = arith.constant 224 : index
    %c0_12 = arith.constant 0 : index
    %60 = vector.load %arg14[%c224, %c0_12] : memref<576x256xbf16, #tpu.memory_space<vmem>>, vector<32x256xbf16>
    tpu.vector_store %arg14[%c224, %c0_12], %59 {strides = array<i32>} : memref<576x256xbf16, #tpu.memory_space<vmem>>, vector<32x256xbf16>,
    %61 = vector.extract_strided_slice %7 {offsets = [0, 17], sizes = [32, 239], strides = [1, 1]} : vector<32x256xbf16> to vector<32x239xbf16>
    %62 = vector.extract_strided_slice %7 {offsets = [0, 0], sizes = [32, 17], strides = [1, 1]} : vector<32x256xbf16> to vector<32x17xbf16>
    %63 = tpu.concatenate %61, %62 in 1 : vector<32x239xbf16>, vector<32x17xbf16> -> vector<32x256xbf16>
    %64 = vector.extract_strided_slice %7 {offsets = [0, 1], sizes = [32, 255], strides = [1, 1]} : vector<32x256xbf16> to vector<32x255xbf16>
    %65 = vector.extract_strided_slice %7 {offsets = [0, 0], sizes = [32, 1], strides = [1, 1]} : vector<32x256xbf16> to vector<32x1xbf16>
    %66 = tpu.concatenate %64, %65 in 1 : vector<32x255xbf16>, vector<32x1xbf16> -> vector<32x256xbf16>
    %67 = arith.select %11, %66, %63 : vector<32x256xi1>, vector<32x256xbf16>
    %c256 = arith.constant 256 : index
    %c0_13 = arith.constant 0 : index
    %68 = vector.load %arg14[%c256, %c0_13] : memref<576x256xbf16, #tpu.memory_space<vmem>>, vector<32x256xbf16>
    tpu.vector_store %arg14[%c256, %c0_13], %67 {strides = array<i32>} : memref<576x256xbf16, #tpu.memory_space<vmem>>, vector<32x256xbf16>,
    %c0_14 = arith.constant 0 : index
    %c0_15 = arith.constant 0 : index
    %69 = vector.load %arg3[%c0_14, %c0_15] : memref<64x288xbf16, #tpu.memory_space<vmem>>, vector<64x288xbf16>
    %c0_16 = arith.constant 0 : index
    %c0_17 = arith.constant 0 : index
    %70 = vector.load %arg14[%c0_16, %c0_17] : memref<576x256xbf16, #tpu.memory_space<vmem>>, vector<288x256xbf16>
    %cst = arith.constant dense<0.000000e+00> : vector<64x256xf32>
    %71 = tpu.matmul %69, %70, %cst {dimension_numbers = #tpu.dot_dimension_numbers<[1], [0], [0], [1], [0, 0, 1, 1], [], []>} : vector<64x288xbf16>, vector<288x256xbf16>, vector<64x256xf32> -> vector<64x256xf32>
    %c0_18 = arith.constant 0 : index
    %c0_19 = arith.constant 0 : index
    %72 = vector.load %arg4[%c0_18, %c0_19] : memref<64x1xf32, #tpu.memory_space<vmem>>, vector<64x1xf32>
    %73 = vector.broadcast %72 : vector<64x1xf32> to vector<64x256xf32>
    %74 = arith.addf %71, %73 : vector<64x256xf32>
    %c0_20 = arith.constant 0 : index
    %c0_21 = arith.constant 0 : index
    %75 = vector.load %arg7[%c0_20, %c0_21] : memref<64x64xf32, #tpu.memory_space<vmem>>, vector<64x64xf32>
    %c0_22 = arith.constant 0 : index
    %c0_23 = arith.constant 0 : index
    %76 = vector.load %arg5[%c0_22, %c0_23] : memref<64x1xf32, #tpu.memory_space<vmem>>, vector<64x1xf32>
    %c0_24 = arith.constant 0 : index
    %c0_25 = arith.constant 0 : index
    %77 = vector.load %arg6[%c0_24, %c0_25] : memref<64x1xf32, #tpu.memory_space<vmem>>, vector<64x1xf32>
    %cst_26 = arith.constant dense<0.000000e+00> : vector<64xf32>
    %78 = vector.multi_reduction <add>, %74, %cst_26 [1] : vector<64x256xf32> to vector<64xf32>
    %79 = vector.shape_cast %78 : vector<64xf32> to vector<64x1xf32>
    %cst_27 = arith.constant dense<0.000000e+00> : vector<64x1xf32>
    %80 = tpu.matmul %75, %79, %cst_27 {dimension_numbers = #tpu.dot_dimension_numbers<[1], [0], [0], [1], [0, 0, 1, 1], [], []>} : vector<64x64xf32>, vector<64x1xf32>, vector<64x1xf32> -> vector<64x1xf32>
    %81 = vector.broadcast %80 : vector<64x1xf32> to vector<64x256xf32>
    %82 = arith.subf %74, %81 : vector<64x256xf32>
    %83 = arith.mulf %82, %82 : vector<64x256xf32>
    %cst_28 = arith.constant dense<0.000000e+00> : vector<64xf32>
    %84 = vector.multi_reduction <add>, %83, %cst_28 [1] : vector<64x256xf32> to vector<64xf32>
    %85 = vector.shape_cast %84 : vector<64xf32> to vector<64x1xf32>
    %cst_29 = arith.constant dense<0.000000e+00> : vector<64x1xf32>
    %86 = tpu.matmul %75, %85, %cst_29 {dimension_numbers = #tpu.dot_dimension_numbers<[1], [0], [0], [1], [0, 0, 1, 1], [], []>} : vector<64x64xf32>, vector<64x1xf32>, vector<64x1xf32> -> vector<64x1xf32>
    %cst_30 = arith.constant 9.99999974E-6 : f32
    %87 = vector.broadcast %cst_30 : f32 to vector<64x1xf32>
    %88 = arith.addf %86, %87 : vector<64x1xf32>
    %89 = math.rsqrt %88 : vector<64x1xf32>
    %90 = vector.broadcast %89 : vector<64x1xf32> to vector<64x256xf32>
    %91 = arith.mulf %82, %90 : vector<64x256xf32>
    %92 = vector.broadcast %76 : vector<64x1xf32> to vector<64x256xf32>
    %93 = arith.mulf %91, %92 : vector<64x256xf32>
    %94 = vector.broadcast %77 : vector<64x1xf32> to vector<64x256xf32>
    %95 = arith.addf %93, %94 : vector<64x256xf32>
    %cst_31 = arith.constant 5.000000e-01 : f32
    %96 = vector.broadcast %cst_31 : f32 to vector<64x256xf32>
    %97 = arith.mulf %96, %95 : vector<64x256xf32>
    %cst_32 = arith.constant 0.707106769 : f32
    %98 = vector.broadcast %cst_32 : f32 to vector<64x256xf32>
    %99 = arith.mulf %95, %98 : vector<64x256xf32>
    %100 = math.erf %99 : vector<64x256xf32>
    %cst_33 = arith.constant 1.000000e+00 : f32
    %101 = vector.broadcast %cst_33 : f32 to vector<64x256xf32>
    %102 = arith.addf %101, %100 : vector<64x256xf32>
    %103 = arith.mulf %97, %102 : vector<64x256xf32>
    %104 = arith.truncf %103 : vector<64x256xf32> to vector<64x256xbf16>
    %105 = vector.shape_cast %2 : vector<1x256xi1> to vector<1x256xi1>
    %106 = vector.broadcast %105 : vector<1x256xi1> to vector<64x256xi1>
    %107 = vector.shape_cast %4 : vector<1x256xi1> to vector<1x256xi1>
    %108 = vector.broadcast %107 : vector<1x256xi1> to vector<64x256xi1>
    %109 = vector.extract_strided_slice %104 {offsets = [0, 239], sizes = [64, 17], strides = [1, 1]} : vector<64x256xbf16> to vector<64x17xbf16>
    %110 = vector.extract_strided_slice %104 {offsets = [0, 0], sizes = [64, 239], strides = [1, 1]} : vector<64x256xbf16> to vector<64x239xbf16>
    %111 = tpu.concatenate %109, %110 in 1 : vector<64x17xbf16>, vector<64x239xbf16> -> vector<64x256xbf16>
    %112 = vector.extract_strided_slice %104 {offsets = [0, 255], sizes = [64, 1], strides = [1, 1]} : vector<64x256xbf16> to vector<64x1xbf16>
    %113 = vector.extract_strided_slice %104 {offsets = [0, 0], sizes = [64, 255], strides = [1, 1]} : vector<64x256xbf16> to vector<64x255xbf16>
    %114 = tpu.concatenate %112, %113 in 1 : vector<64x1xbf16>, vector<64x255xbf16> -> vector<64x256xbf16>
    %115 = arith.select %106, %114, %111 : vector<64x256xi1>, vector<64x256xbf16>
    %c0_34 = arith.constant 0 : index
    %c0_35 = arith.constant 0 : index
    %116 = vector.load %arg14[%c0_34, %c0_35] : memref<576x256xbf16, #tpu.memory_space<vmem>>, vector<64x256xbf16>
    tpu.vector_store %arg14[%c0_34, %c0_35], %115 {strides = array<i32>} : memref<576x256xbf16, #tpu.memory_space<vmem>>, vector<64x256xbf16>,
    %117 = vector.extract_strided_slice %104 {offsets = [0, 240], sizes = [64, 16], strides = [1, 1]} : vector<64x256xbf16> to vector<64x16xbf16>
    %118 = vector.extract_strided_slice %104 {offsets = [0, 0], sizes = [64, 240], strides = [1, 1]} : vector<64x256xbf16> to vector<64x240xbf16>
    %119 = tpu.concatenate %117, %118 in 1 : vector<64x16xbf16>, vector<64x240xbf16> -> vector<64x256xbf16>
    %c64_36 = arith.constant 64 : index
    %c0_37 = arith.constant 0 : index
    %120 = vector.load %arg14[%c64_36, %c0_37] : memref<576x256xbf16, #tpu.memory_space<vmem>>, vector<64x256xbf16>
    tpu.vector_store %arg14[%c64_36, %c0_37], %119 {strides = array<i32>} : memref<576x256xbf16, #tpu.memory_space<vmem>>, vector<64x256xbf16>,
    %121 = vector.extract_strided_slice %104 {offsets = [0, 241], sizes = [64, 15], strides = [1, 1]} : vector<64x256xbf16> to vector<64x15xbf16>
    %122 = vector.extract_strided_slice %104 {offsets = [0, 0], sizes = [64, 241], strides = [1, 1]} : vector<64x256xbf16> to vector<64x241xbf16>
    %123 = tpu.concatenate %121, %122 in 1 : vector<64x15xbf16>, vector<64x241xbf16> -> vector<64x256xbf16>
    %124 = vector.extract_strided_slice %104 {offsets = [0, 225], sizes = [64, 31], strides = [1, 1]} : vector<64x256xbf16> to vector<64x31xbf16>
    %125 = vector.extract_strided_slice %104 {offsets = [0, 0], sizes = [64, 225], strides = [1, 1]} : vector<64x256xbf16> to vector<64x225xbf16>
    %126 = tpu.concatenate %124, %125 in 1 : vector<64x31xbf16>, vector<64x225xbf16> -> vector<64x256xbf16>
    %127 = arith.select %108, %126, %123 : vector<64x256xi1>, vector<64x256xbf16>
    %c128_38 = arith.constant 128 : index
    %c0_39 = arith.constant 0 : index
    %128 = vector.load %arg14[%c128_38, %c0_39] : memref<576x256xbf16, #tpu.memory_space<vmem>>, vector<64x256xbf16>
    tpu.vector_store %arg14[%c128_38, %c0_39], %127 {strides = array<i32>} : memref<576x256xbf16, #tpu.memory_space<vmem>>, vector<64x256xbf16>,
    %129 = vector.extract_strided_slice %104 {offsets = [0, 255], sizes = [64, 1], strides = [1, 1]} : vector<64x256xbf16> to vector<64x1xbf16>
    %130 = vector.extract_strided_slice %104 {offsets = [0, 0], sizes = [64, 255], strides = [1, 1]} : vector<64x256xbf16> to vector<64x255xbf16>
    %131 = tpu.concatenate %129, %130 in 1 : vector<64x1xbf16>, vector<64x255xbf16> -> vector<64x256xbf16>
    %132 = vector.extract_strided_slice %104 {offsets = [0, 15], sizes = [64, 241], strides = [1, 1]} : vector<64x256xbf16> to vector<64x241xbf16>
    %133 = vector.extract_strided_slice %104 {offsets = [0, 0], sizes = [64, 15], strides = [1, 1]} : vector<64x256xbf16> to vector<64x15xbf16>
    %134 = tpu.concatenate %132, %133 in 1 : vector<64x241xbf16>, vector<64x15xbf16> -> vector<64x256xbf16>
    %135 = arith.select %106, %134, %131 : vector<64x256xi1>, vector<64x256xbf16>
    %c192_40 = arith.constant 192 : index
    %c0_41 = arith.constant 0 : index
    %136 = vector.load %arg14[%c192_40, %c0_41] : memref<576x256xbf16, #tpu.memory_space<vmem>>, vector<64x256xbf16>
    tpu.vector_store %arg14[%c192_40, %c0_41], %135 {strides = array<i32>} : memref<576x256xbf16, #tpu.memory_space<vmem>>, vector<64x256xbf16>,
    %c256_42 = arith.constant 256 : index
    %c0_43 = arith.constant 0 : index
    %137 = vector.load %arg14[%c256_42, %c0_43] : memref<576x256xbf16, #tpu.memory_space<vmem>>, vector<64x256xbf16>
    tpu.vector_store %arg14[%c256_42, %c0_43], %104 {strides = array<i32>} : memref<576x256xbf16, #tpu.memory_space<vmem>>, vector<64x256xbf16>,
    %138 = vector.extract_strided_slice %104 {offsets = [0, 1], sizes = [64, 255], strides = [1, 1]} : vector<64x256xbf16> to vector<64x255xbf16>
    %139 = vector.extract_strided_slice %104 {offsets = [0, 0], sizes = [64, 1], strides = [1, 1]} : vector<64x256xbf16> to vector<64x1xbf16>
    %140 = tpu.concatenate %138, %139 in 1 : vector<64x255xbf16>, vector<64x1xbf16> -> vector<64x256xbf16>
    %141 = vector.extract_strided_slice %104 {offsets = [0, 241], sizes = [64, 15], strides = [1, 1]} : vector<64x256xbf16> to vector<64x15xbf16>
    %142 = vector.extract_strided_slice %104 {offsets = [0, 0], sizes = [64, 241], strides = [1, 1]} : vector<64x256xbf16> to vector<64x241xbf16>
    %143 = tpu.concatenate %141, %142 in 1 : vector<64x15xbf16>, vector<64x241xbf16> -> vector<64x256xbf16>
    %144 = arith.select %108, %143, %140 : vector<64x256xi1>, vector<64x256xbf16>
    %c320 = arith.constant 320 : index
    %c0_44 = arith.constant 0 : index
    %145 = vector.load %arg14[%c320, %c0_44] : memref<576x256xbf16, #tpu.memory_space<vmem>>, vector<64x256xbf16>
    tpu.vector_store %arg14[%c320, %c0_44], %144 {strides = array<i32>} : memref<576x256xbf16, #tpu.memory_space<vmem>>, vector<64x256xbf16>,
    %146 = vector.extract_strided_slice %104 {offsets = [0, 15], sizes = [64, 241], strides = [1, 1]} : vector<64x256xbf16> to vector<64x241xbf16>
    %147 = vector.extract_strided_slice %104 {offsets = [0, 0], sizes = [64, 15], strides = [1, 1]} : vector<64x256xbf16> to vector<64x15xbf16>
    %148 = tpu.concatenate %146, %147 in 1 : vector<64x241xbf16>, vector<64x15xbf16> -> vector<64x256xbf16>
    %149 = vector.extract_strided_slice %104 {offsets = [0, 31], sizes = [64, 225], strides = [1, 1]} : vector<64x256xbf16> to vector<64x225xbf16>
    %150 = vector.extract_strided_slice %104 {offsets = [0, 0], sizes = [64, 31], strides = [1, 1]} : vector<64x256xbf16> to vector<64x31xbf16>
    %151 = tpu.concatenate %149, %150 in 1 : vector<64x225xbf16>, vector<64x31xbf16> -> vector<64x256xbf16>
    %152 = arith.select %106, %151, %148 : vector<64x256xi1>, vector<64x256xbf16>
    %c384 = arith.constant 384 : index
    %c0_45 = arith.constant 0 : index
    %153 = vector.load %arg14[%c384, %c0_45] : memref<576x256xbf16, #tpu.memory_space<vmem>>, vector<64x256xbf16>
    tpu.vector_store %arg14[%c384, %c0_45], %152 {strides = array<i32>} : memref<576x256xbf16, #tpu.memory_space<vmem>>, vector<64x256xbf16>,
    %154 = vector.extract_strided_slice %104 {offsets = [0, 16], sizes = [64, 240], strides = [1, 1]} : vector<64x256xbf16> to vector<64x240xbf16>
    %155 = vector.extract_strided_slice %104 {offsets = [0, 0], sizes = [64, 16], strides = [1, 1]} : vector<64x256xbf16> to vector<64x16xbf16>
    %156 = tpu.concatenate %154, %155 in 1 : vector<64x240xbf16>, vector<64x16xbf16> -> vector<64x256xbf16>
    %c448 = arith.constant 448 : index
    %c0_46 = arith.constant 0 : index
    %157 = vector.load %arg14[%c448, %c0_46] : memref<576x256xbf16, #tpu.memory_space<vmem>>, vector<64x256xbf16>
    tpu.vector_store %arg14[%c448, %c0_46], %156 {strides = array<i32>} : memref<576x256xbf16, #tpu.memory_space<vmem>>, vector<64x256xbf16>,
    %158 = vector.extract_strided_slice %104 {offsets = [0, 17], sizes = [64, 239], strides = [1, 1]} : vector<64x256xbf16> to vector<64x239xbf16>
    %159 = vector.extract_strided_slice %104 {offsets = [0, 0], sizes = [64, 17], strides = [1, 1]} : vector<64x256xbf16> to vector<64x17xbf16>
    %160 = tpu.concatenate %158, %159 in 1 : vector<64x239xbf16>, vector<64x17xbf16> -> vector<64x256xbf16>
    %161 = vector.extract_strided_slice %104 {offsets = [0, 1], sizes = [64, 255], strides = [1, 1]} : vector<64x256xbf16> to vector<64x255xbf16>
    %162 = vector.extract_strided_slice %104 {offsets = [0, 0], sizes = [64, 1], strides = [1, 1]} : vector<64x256xbf16> to vector<64x1xbf16>
    %163 = tpu.concatenate %161, %162 in 1 : vector<64x255xbf16>, vector<64x1xbf16> -> vector<64x256xbf16>
    %164 = arith.select %108, %163, %160 : vector<64x256xi1>, vector<64x256xbf16>
    %c512 = arith.constant 512 : index
    %c0_47 = arith.constant 0 : index
    %165 = vector.load %arg14[%c512, %c0_47] : memref<576x256xbf16, #tpu.memory_space<vmem>>, vector<64x256xbf16>
    tpu.vector_store %arg14[%c512, %c0_47], %164 {strides = array<i32>} : memref<576x256xbf16, #tpu.memory_space<vmem>>, vector<64x256xbf16>,
    %c0_48 = arith.constant 0 : index
    %c0_49 = arith.constant 0 : index
    %166 = vector.load %arg8[%c0_48, %c0_49] : memref<32x576xbf16, #tpu.memory_space<vmem>>, vector<32x576xbf16>
    %c0_50 = arith.constant 0 : index
    %c0_51 = arith.constant 0 : index
    %167 = vector.load %arg14[%c0_50, %c0_51] : memref<576x256xbf16, #tpu.memory_space<vmem>>, vector<576x256xbf16>
    %cst_52 = arith.constant dense<0.000000e+00> : vector<32x256xf32>
    %168 = tpu.matmul %166, %167, %cst_52 {dimension_numbers = #tpu.dot_dimension_numbers<[1], [0], [0], [1], [0, 0, 1, 1], [], []>} : vector<32x576xbf16>, vector<576x256xbf16>, vector<32x256xf32> -> vector<32x256xf32>
    %c0_53 = arith.constant 0 : index
    %c0_54 = arith.constant 0 : index
    %169 = vector.load %arg9[%c0_53, %c0_54] : memref<32x1xf32, #tpu.memory_space<vmem>>, vector<32x1xf32>
    %170 = vector.broadcast %169 : vector<32x1xf32> to vector<32x256xf32>
    %171 = arith.addf %168, %170 : vector<32x256xf32>
    %c0_55 = arith.constant 0 : index
    %c0_56 = arith.constant 0 : index
    %172 = vector.load %arg12[%c0_55, %c0_56] : memref<32x32xf32, #tpu.memory_space<vmem>>, vector<32x32xf32>
    %c0_57 = arith.constant 0 : index
    %c0_58 = arith.constant 0 : index
    %173 = vector.load %arg10[%c0_57, %c0_58] : memref<32x1xf32, #tpu.memory_space<vmem>>, vector<32x1xf32>
    %c0_59 = arith.constant 0 : index
    %c0_60 = arith.constant 0 : index
    %174 = vector.load %arg11[%c0_59, %c0_60] : memref<32x1xf32, #tpu.memory_space<vmem>>, vector<32x1xf32>
    %cst_61 = arith.constant dense<0.000000e+00> : vector<32xf32>
    %175 = vector.multi_reduction <add>, %171, %cst_61 [1] : vector<32x256xf32> to vector<32xf32>
    %176 = vector.shape_cast %175 : vector<32xf32> to vector<32x1xf32>
    %cst_62 = arith.constant dense<0.000000e+00> : vector<32x1xf32>
    %177 = tpu.matmul %172, %176, %cst_62 {dimension_numbers = #tpu.dot_dimension_numbers<[1], [0], [0], [1], [0, 0, 1, 1], [], []>} : vector<32x32xf32>, vector<32x1xf32>, vector<32x1xf32> -> vector<32x1xf32>
    %178 = vector.broadcast %177 : vector<32x1xf32> to vector<32x256xf32>
    %179 = arith.subf %171, %178 : vector<32x256xf32>
    %180 = arith.mulf %179, %179 : vector<32x256xf32>
    %cst_63 = arith.constant dense<0.000000e+00> : vector<32xf32>
    %181 = vector.multi_reduction <add>, %180, %cst_63 [1] : vector<32x256xf32> to vector<32xf32>
    %182 = vector.shape_cast %181 : vector<32xf32> to vector<32x1xf32>
    %cst_64 = arith.constant dense<0.000000e+00> : vector<32x1xf32>
    %183 = tpu.matmul %172, %182, %cst_64 {dimension_numbers = #tpu.dot_dimension_numbers<[1], [0], [0], [1], [0, 0, 1, 1], [], []>} : vector<32x32xf32>, vector<32x1xf32>, vector<32x1xf32> -> vector<32x1xf32>
    %cst_65 = arith.constant 9.99999974E-6 : f32
    %184 = vector.broadcast %cst_65 : f32 to vector<32x1xf32>
    %185 = arith.addf %183, %184 : vector<32x1xf32>
    %186 = math.rsqrt %185 : vector<32x1xf32>
    %187 = vector.broadcast %186 : vector<32x1xf32> to vector<32x256xf32>
    %188 = arith.mulf %179, %187 : vector<32x256xf32>
    %189 = vector.broadcast %173 : vector<32x1xf32> to vector<32x256xf32>
    %190 = arith.mulf %188, %189 : vector<32x256xf32>
    %191 = vector.broadcast %174 : vector<32x1xf32> to vector<32x256xf32>
    %192 = arith.addf %190, %191 : vector<32x256xf32>
    %cst_66 = arith.constant 5.000000e-01 : f32
    %193 = vector.broadcast %cst_66 : f32 to vector<32x256xf32>
    %194 = arith.mulf %193, %192 : vector<32x256xf32>
    %cst_67 = arith.constant 0.707106769 : f32
    %195 = vector.broadcast %cst_67 : f32 to vector<32x256xf32>
    %196 = arith.mulf %192, %195 : vector<32x256xf32>
    %197 = math.erf %196 : vector<32x256xf32>
    %cst_68 = arith.constant 1.000000e+00 : f32
    %198 = vector.broadcast %cst_68 : f32 to vector<32x256xf32>
    %199 = arith.addf %198, %197 : vector<32x256xf32>
    %200 = arith.mulf %194, %199 : vector<32x256xf32>
    %c0_69 = arith.constant 0 : index
    %c0_70 = arith.constant 0 : index
    %c0_71 = arith.constant 0 : index
    %201 = vector.load %arg13[%c0_69, %c0_70, %c0_71] : memref<1x32x256xf32, #tpu.memory_space<vmem>>, vector<1x32x256xf32>
    %202 = vector.shape_cast %201 : vector<1x32x256xf32> to vector<32x256xf32>
    %203 = vector.shape_cast %200 : vector<32x256xf32> to vector<1x32x256xf32>
    tpu.vector_store %arg13[%c0_69, %c0_70, %c0_71], %203 {strides = array<i32>} : memref<1x32x256xf32, #tpu.memory_space<vmem>>, vector<1x32x256xf32>,
    return
  }
  func.func @transform_0(%arg0: i32) -> (i32, i32, i32) {
    %c0_i32 = arith.constant 0 : i32
    %c0_i32_0 = arith.constant 0 : i32
    %c0_i32_1 = arith.constant 0 : i32
    return %arg0, %c0_i32, %c0_i32_0 : i32, i32, i32
  }
  func.func @transform_1(%arg0: i32) -> (i32, i32) {
    %c0_i32 = arith.constant 0 : i32
    %c0_i32_0 = arith.constant 0 : i32
    %c0_i32_1 = arith.constant 0 : i32
    return %c0_i32, %c0_i32_0 : i32, i32
  }
  func.func @transform_2(%arg0: i32) -> (i32, i32) {
    %c0_i32 = arith.constant 0 : i32
    %c0_i32_0 = arith.constant 0 : i32
    %c0_i32_1 = arith.constant 0 : i32
    return %c0_i32, %c0_i32_0 : i32, i32
  }
  func.func @transform_3(%arg0: i32) -> (i32, i32) {
    %c0_i32 = arith.constant 0 : i32
    %c0_i32_0 = arith.constant 0 : i32
    %c0_i32_1 = arith.constant 0 : i32
    return %c0_i32, %c0_i32_0 : i32, i32
  }
  func.func @transform_4(%arg0: i32) -> (i32, i32) {
    %c0_i32 = arith.constant 0 : i32
    %c0_i32_0 = arith.constant 0 : i32
    %c0_i32_1 = arith.constant 0 : i32
    return %c0_i32, %c0_i32_0 : i32, i32
  }
  func.func @transform_5(%arg0: i32) -> (i32, i32) {
    %c0_i32 = arith.constant 0 : i32
    %c0_i32_0 = arith.constant 0 : i32
    %c0_i32_1 = arith.constant 0 : i32
    return %c0_i32, %c0_i32_0 : i32, i32
  }
  func.func @transform_6(%arg0: i32) -> (i32, i32) {
    %c0_i32 = arith.constant 0 : i32
    %c0_i32_0 = arith.constant 0 : i32
    %c0_i32_1 = arith.constant 0 : i32
    return %c0_i32, %c0_i32_0 : i32, i32
  }
  func.func @transform_7(%arg0: i32) -> (i32, i32) {
    %c0_i32 = arith.constant 0 : i32
    %c0_i32_0 = arith.constant 0 : i32
    %c0_i32_1 = arith.constant 0 : i32
    return %c0_i32, %c0_i32_0 : i32, i32
  }
  func.func @transform_8(%arg0: i32) -> (i32, i32) {
    %c0_i32 = arith.constant 0 : i32
    %c0_i32_0 = arith.constant 0 : i32
    %c0_i32_1 = arith.constant 0 : i32
    return %c0_i32, %c0_i32_0 : i32, i32
  }
  func.func @transform_9(%arg0: i32) -> (i32, i32) {
    %c0_i32 = arith.constant 0 : i32
    %c0_i32_0 = arith.constant 0 : i32
    %c0_i32_1 = arith.constant 0 : i32
    return %c0_i32, %c0_i32_0 : i32, i32
  }
  func.func @transform_10(%arg0: i32) -> (i32, i32) {
    %c0_i32 = arith.constant 0 : i32
    %c0_i32_0 = arith.constant 0 : i32
    %c0_i32_1 = arith.constant 0 : i32
    return %c0_i32, %c0_i32_0 : i32, i32
  }
  func.func @transform_11(%arg0: i32) -> (i32, i32) {
    %c0_i32 = arith.constant 0 : i32
    %c0_i32_0 = arith.constant 0 : i32
    %c0_i32_1 = arith.constant 0 : i32
    return %c0_i32, %c0_i32_0 : i32, i32
  }
  func.func @transform_12(%arg0: i32) -> (i32, i32, i32) {
    %c0_i32 = arith.constant 0 : i32
    %c0_i32_0 = arith.constant 0 : i32
    %c0_i32_1 = arith.constant 0 : i32
    return %arg0, %c0_i32, %c0_i32_0 : i32, i32, i32
  }
}

</mosaic_0001>

<llo_original>
// kernel: decoder_block_forward.1
$region0: #{decoder_block_forward.1}
  #allocation0 [shape = 'u32[]', space=smem, size = 0x4, offset = 0x4, fixed_abs, tag = 'smem constant byte address 0x4 - core index']
  #allocation1 [shape = 'u32[144,128]{1,0:T(1,128)}', space=vmem, size = 0x12000, scoped, tag = 'internal scratch']
  #allocation2 [shape = 'bf16[576,256]{1,0:T(8,128)(2,1)}', space=vmem, size = 0x48000, scoped, tag = 'scratch operand']
  %s0 = inlined_call_operand.vmem [shape: f32[4,32,256], index: 0, kind: input, shape index: {}]
  %s1 = inlined_call_operand.vmem [shape: s32[1,256], index: 1, kind: input, shape index: {}]
  %s2 = inlined_call_operand.vmem [shape: bf16[64,288], index: 2, kind: input, shape index: {}]
  %s3 = inlined_call_operand.vmem [shape: f32[64,1], index: 3, kind: input, shape index: {}]
  %s4 = inlined_call_operand.vmem [shape: f32[64,1], index: 4, kind: input, shape index: {}]
  %s5 = inlined_call_operand.vmem [shape: f32[64,1], index: 5, kind: input, shape index: {}]
  %s6 = inlined_call_operand.vmem [shape: f32[64,64], index: 6, kind: input, shape index: {}]
  %s7 = inlined_call_operand.vmem [shape: bf16[32,576], index: 7, kind: input, shape index: {}]
  %s8 = inlined_call_operand.vmem [shape: f32[32,1], index: 8, kind: input, shape index: {}]
  %s9 = inlined_call_operand.vmem [shape: f32[32,1], index: 9, kind: input, shape index: {}]
  %s10 = inlined_call_operand.vmem [shape: f32[32,1], index: 10, kind: input, shape index: {}]
  %s11 = inlined_call_operand.vmem [shape: f32[32,32], index: 11, kind: input, shape index: {}]
  %s12 = inlined_call_operand.vmem [shape: f32[4,32,256], index: 12, kind: output, shape index: {}]
  %s13 = sld [smem:[#allocation0]]
  $region81: #{decoder_block_forward.1} parent=0
    _
  %s15 = ssub.s32 1, %s13
  %s16 = scalar_select 0, %s15, %s13
  loop: start=0, step=1, limit=6
  $region2: #{decoder_block_forward.1} parent=0 // loop_pre_header
    _
  $region3: #{decoder_block_forward.1} parent=0 // loop_header
    %s18 = sphi 0, %s22
    %p19 = scmp.ge.s32.totalorder %s18, 6
    %s28 = sphi 0, %s30
    %s31 = sphi 0, %s28
    %s32 = sphi 0, %s31
    %s48 = sphi 0, %s32
    %s52 = sphi 0, %s52
    %s54 = sphi 0, %s52
    %s55 = sphi 0, %s54
    %s69 = sphi 0, %s55
    %s73 = sphi 0, %s73
    %s75 = sphi 0, %s73
    %s76 = sphi 0, %s75
    %s90 = sphi 0, %s76
    %s94 = sphi 0, %s94
    %s96 = sphi 0, %s94
    %s97 = sphi 0, %s96
    %s111 = sphi 0, %s97
    %s115 = sphi 0, %s115
    %s117 = sphi 0, %s115
    %s118 = sphi 0, %s117
    %s132 = sphi 0, %s118
    %s136 = sphi 0, %s136
    %s138 = sphi 0, %s136
    %s139 = sphi 0, %s138
    %s153 = sphi 0, %s139
    %s157 = sphi 0, %s157
    %s159 = sphi 0, %s157
    %s160 = sphi 0, %s159
    %s174 = sphi 0, %s160
    %s178 = sphi 0, %s178
    %s180 = sphi 0, %s178
    %s181 = sphi 0, %s180
    %s195 = sphi 0, %s181
    %s199 = sphi 0, %s199
    %s201 = sphi 0, %s199
    %s202 = sphi 0, %s201
    %s216 = sphi 0, %s202
    %s220 = sphi 0, %s220
    %s222 = sphi 0, %s220
    %s223 = sphi 0, %s222
    %s237 = sphi 0, %s223
    %s241 = sphi 0, %s241
    %s243 = sphi 0, %s241
    %s244 = sphi 0, %s243
    %s258 = sphi 0, %s244
    %s262 = sphi 0, %s262
    %s264 = sphi 0, %s262
    %s265 = sphi 0, %s264
    %s279 = sphi 0, %s265
    %s285 = sphi 0, %s287
    %s288 = sphi 0, %s285
    %s289 = sphi 0, %s288
    %s305 = sphi 0, %s289
  $region4: #{decoder_block_forward.1} parent=0 // loop_header_branch
    %21 = sbr.rel (%p19) target = $region8
  $region5: #{decoder_block_forward.1} parent=0 // loop_body
    %s23 = ssub.s32 %s18, 1
    %s24 = ssub.s32 %s18, 2
    %s25 = sadd.s32 %s18, 1
    %s26 = ssub.s32 %s18, %s25
    %p27 = scmp.eq.s32.totalorder %s26, 0
    %s29 = sadd.s32 %s28, 1
    %s30 = scalar_select %p27, %s28, %s29
    %p33 = pneg %p27
    %p34 = scmp.eq.s32.totalorder %s18, 3
    %p35 = por %p33, %p34
    %p36 = scmp.ne.s32.totalorder %s28, %s31
    %p37 = scmp.eq.s32.totalorder %s18, 0
    %p38 = por %p36, %p37
    %p39 = scmp.ne.s32.totalorder %s28, %s31
    %p40 = scmp.eq.s32.totalorder %s23, 3
    %p41 = por %p39, %p40
    %p42 = scmp.ne.s32.totalorder %s31, %s32
    %p43 = scmp.eq.s32.totalorder %s23, 0
    %p44 = por %p42, %p43
    %p45 = scmp.ne.s32.totalorder %s31, %s32
    %p46 = scmp.eq.s32.totalorder %s24, 3
    %p47 = por %p45, %p46
    %p49 = scmp.ne.s32.totalorder %s32, %s48
    %p50 = scmp.eq.s32.totalorder %s24, 0
    %p51 = por %p49, %p50
    %s53 = sadd.s32 %s52, 1
    %p56 = scmp.eq.s32.totalorder %s18, 3
    %p57 = scmp.ne.s32.totalorder %s52, %s54
    %p58 = scmp.eq.s32.totalorder %s18, 0
    %p59 = por %p57, %p58
    %p60 = scmp.ne.s32.totalorder %s52, %s54
    %p61 = scmp.eq.s32.totalorder %s23, 3
    %p62 = por %p60, %p61
    %p63 = scmp.ne.s32.totalorder %s54, %s55
    %p64 = scmp.eq.s32.totalorder %s23, 0
    %p65 = por %p63, %p64
    %p66 = scmp.ne.s32.totalorder %s54, %s55
    %p67 = scmp.eq.s32.totalorder %s24, 3
    %p68 = por %p66, %p67
    %p70 = scmp.ne.s32.totalorder %s55, %s69
    %p71 = scmp.eq.s32.totalorder %s24, 0
    %p72 = por %p70, %p71
    %s74 = sadd.s32 %s73, 1
    %p77 = scmp.eq.s32.totalorder %s18, 3
    %p78 = scmp.ne.s32.totalorder %s73, %s75
    %p79 = scmp.eq.s32.totalorder %s18, 0
    %p80 = por %p78, %p79
    %p81 = scmp.ne.s32.totalorder %s73, %s75
    %p82 = scmp.eq.s32.totalorder %s23, 3
    %p83 = por %p81, %p82
    %p84 = scmp.ne.s32.totalorder %s75, %s76
    %p85 = scmp.eq.s32.totalorder %s23, 0
    %p86 = por %p84, %p85
    %p87 = scmp.ne.s32.totalorder %s75, %s76
    %p88 = scmp.eq.s32.totalorder %s24, 3
    %p89 = por %p87, %p88
    %p91 = scmp.ne.s32.totalorder %s76, %s90
    %p92 = scmp.eq.s32.totalorder %s24, 0
    %p93 = por %p91, %p92
    %s95 = sadd.s32 %s94, 1
    %p98 = scmp.eq.s32.totalorder %s18, 3
    %p99 = scmp.ne.s32.totalorder %s94, %s96
    %p100 = scmp.eq.s32.totalorder %s18, 0
    %p101 = por %p99, %p100
    %p102 = scmp.ne.s32.totalorder %s94, %s96
    %p103 = scmp.eq.s32.totalorder %s23, 3
    %p104 = por %p102, %p103
    %p105 = scmp.ne.s32.totalorder %s96, %s97
    %p106 = scmp.eq.s32.totalorder %s23, 0
    %p107 = por %p105, %p106
    %p108 = scmp.ne.s32.totalorder %s96, %s97
    %p109 = scmp.eq.s32.totalorder %s24, 3
    %p110 = por %p108, %p109
    %p112 = scmp.ne.s32.totalorder %s97, %s111
    %p113 = scmp.eq.s32.totalorder %s24, 0
    %p114 = por %p112, %p113
    %s116 = sadd.s32 %s115, 1
    %p119 = scmp.eq.s32.totalorder %s18, 3
    %p120 = scmp.ne.s32.totalorder %s115, %s117
    %p121 = scmp.eq.s32.totalorder %s18, 0
    %p122 = por %p120, %p121
    %p123 = scmp.ne.s32.totalorder %s115, %s117
    %p124 = scmp.eq.s32.totalorder %s23, 3
    %p125 = por %p123, %p124
    %p126 = scmp.ne.s32.totalorder %s117, %s118
    %p127 = scmp.eq.s32.totalorder %s23, 0
    %p128 = por %p126, %p127
    %p129 = scmp.ne.s32.totalorder %s117, %s118
    %p130 = scmp.eq.s32.totalorder %s24, 3
    %p131 = por %p129, %p130
    %p133 = scmp.ne.s32.totalorder %s118, %s132
    %p134 = scmp.eq.s32.totalorder %s24, 0
    %p135 = por %p133, %p134
    %s137 = sadd.s32 %s136, 1
    %p140 = scmp.eq.s32.totalorder %s18, 3
    %p141 = scmp.ne.s32.totalorder %s136, %s138
    %p142 = scmp.eq.s32.totalorder %s18, 0
    %p143 = por %p141, %p142
    %p144 = scmp.ne.s32.totalorder %s136, %s138
    %p145 = scmp.eq.s32.totalorder %s23, 3
    %p146 = por %p144, %p145
    %p147 = scmp.ne.s32.totalorder %s138, %s139
    %p148 = scmp.eq.s32.totalorder %s23, 0
    %p149 = por %p147, %p148
    %p150 = scmp.ne.s32.totalorder %s138, %s139
    %p151 = scmp.eq.s32.totalorder %s24, 3
    %p152 = por %p150, %p151
    %p154 = scmp.ne.s32.totalorder %s139, %s153
    %p155 = scmp.eq.s32.totalorder %s24, 0
    %p156 = por %p154, %p155
    %s158 = sadd.s32 %s157, 1
    %p161 = scmp.eq.s32.totalorder %s18, 3
    %p162 = scmp.ne.s32.totalorder %s157, %s159
    %p163 = scmp.eq.s32.totalorder %s18, 0
    %p164 = por %p162, %p163
    %p165 = scmp.ne.s32.totalorder %s157, %s159
    %p166 = scmp.eq.s32.totalorder %s23, 3
    %p167 = por %p165, %p166
    %p168 = scmp.ne.s32.totalorder %s159, %s160
    %p169 = scmp.eq.s32.totalorder %s23, 0
    %p170 = por %p168, %p169
    %p171 = scmp.ne.s32.totalorder %s159, %s160
    %p172 = scmp.eq.s32.totalorder %s24, 3
    %p173 = por %p171, %p172
    %p175 = scmp.ne.s32.totalorder %s160, %s174
    %p176 = scmp.eq.s32.totalorder %s24, 0
    %p177 = por %p175, %p176
    %s179 = sadd.s32 %s178, 1
    %p182 = scmp.eq.s32.totalorder %s18, 3
    %p183 = scmp.ne.s32.totalorder %s178, %s180
    %p184 = scmp.eq.s32.totalorder %s18, 0
    %p185 = por %p183, %p184
    %p186 = scmp.ne.s32.totalorder %s178, %s180
    %p187 = scmp.eq.s32.totalorder %s23, 3
    %p188 = por %p186, %p187
    %p189 = scmp.ne.s32.totalorder %s180, %s181
    %p190 = scmp.eq.s32.totalorder %s23, 0
    %p191 = por %p189, %p190
    %p192 = scmp.ne.s32.totalorder %s180, %s181
    %p193 = scmp.eq.s32.totalorder %s24, 3
    %p194 = por %p192, %p193
    %p196 = scmp.ne.s32.totalorder %s181, %s195
    %p197 = scmp.eq.s32.totalorder %s24, 0
    %p198 = por %p196, %p197
    %s200 = sadd.s32 %s199, 1
    %p203 = scmp.eq.s32.totalorder %s18, 3
    %p204 = scmp.ne.s32.totalorder %s199, %s201
    %p205 = scmp.eq.s32.totalorder %s18, 0
    %p206 = por %p204, %p205
    %p207 = scmp.ne.s32.totalorder %s199, %s201
    %p208 = scmp.eq.s32.totalorder %s23, 3
    %p209 = por %p207, %p208
    %p210 = scmp.ne.s32.totalorder %s201, %s202
    %p211 = scmp.eq.s32.totalorder %s23, 0
    %p212 = por %p210, %p211
    %p213 = scmp.ne.s32.totalorder %s201, %s202
    %p214 = scmp.eq.s32.totalorder %s24, 3
    %p215 = por %p213, %p214
    %p217 = scmp.ne.s32.totalorder %s202, %s216
    %p218 = scmp.eq.s32.totalorder %s24, 0
    %p219 = por %p217, %p218
    %s221 = sadd.s32 %s220, 1
    %p224 = scmp.eq.s32.totalorder %s18, 3
    %p225 = scmp.ne.s32.totalorder %s220, %s222
    %p226 = scmp.eq.s32.totalorder %s18, 0
    %p227 = por %p225, %p226
    %p228 = scmp.ne.s32.totalorder %s220, %s222
    %p229 = scmp.eq.s32.totalorder %s23, 3
    %p230 = por %p228, %p229
    %p231 = scmp.ne.s32.totalorder %s222, %s223
    %p232 = scmp.eq.s32.totalorder %s23, 0
    %p233 = por %p231, %p232
    %p234 = scmp.ne.s32.totalorder %s222, %s223
    %p235 = scmp.eq.s32.totalorder %s24, 3
    %p236 = por %p234, %p235
    %p238 = scmp.ne.s32.totalorder %s223, %s237
    %p239 = scmp.eq.s32.totalorder %s24, 0
    %p240 = por %p238, %p239
    %s242 = sadd.s32 %s241, 1
    %p245 = scmp.eq.s32.totalorder %s18, 3
    %p246 = scmp.ne.s32.totalorder %s241, %s243
    %p247 = scmp.eq.s32.totalorder %s18, 0
    %p248 = por %p246, %p247
    %p249 = scmp.ne.s32.totalorder %s241, %s243
    %p250 = scmp.eq.s32.totalorder %s23, 3
    %p251 = por %p249, %p250
    %p252 = scmp.ne.s32.totalorder %s243, %s244
    %p253 = scmp.eq.s32.totalorder %s23, 0
    %p254 = por %p252, %p253
    %p255 = scmp.ne.s32.totalorder %s243, %s244
    %p256 = scmp.eq.s32.totalorder %s24, 3
    %p257 = por %p255, %p256
    %p259 = scmp.ne.s32.totalorder %s244, %s258
    %p260 = scmp.eq.s32.totalorder %s24, 0
    %p261 = por %p259, %p260
    %s263 = sadd.s32 %s262, 1
    %p266 = scmp.eq.s32.totalorder %s18, 3
    %p267 = scmp.ne.s32.totalorder %s262, %s264
    %p268 = scmp.eq.s32.totalorder %s18, 0
    %p269 = por %p267, %p268
    %p270 = scmp.ne.s32.totalorder %s262, %s264
    %p271 = scmp.eq.s32.totalorder %s23, 3
    %p272 = por %p270, %p271
    %p273 = scmp.ne.s32.totalorder %s264, %s265
    %p274 = scmp.eq.s32.totalorder %s23, 0
    %p275 = por %p273, %p274
    %p276 = scmp.ne.s32.totalorder %s264, %s265
    %p277 = scmp.eq.s32.totalorder %s24, 3
    %p278 = por %p276, %p277
    %p280 = scmp.ne.s32.totalorder %s265, %s279
    %p281 = scmp.eq.s32.totalorder %s24, 0
    %p282 = por %p280, %p281
    %s283 = ssub.s32 %s18, %s25
    %p284 = scmp.eq.s32.totalorder %s283, 0
    %s286 = sadd.s32 %s285, 1
    %s287 = scalar_select %p284, %s285, %s286
    %p290 = pneg %p284
    %p291 = scmp.eq.s32.totalorder %s18, 3
    %p292 = por %p290, %p291
    %p293 = scmp.ne.s32.totalorder %s285, %s288
    %p294 = scmp.eq.s32.totalorder %s18, 0
    %p295 = por %p293, %p294
    %p296 = scmp.ne.s32.totalorder %s285, %s288
    %p297 = scmp.eq.s32.totalorder %s23, 3
    %p298 = por %p296, %p297
    %p299 = scmp.ne.s32.totalorder %s288, %s289
    %p300 = scmp.eq.s32.totalorder %s23, 0
    %p301 = por %p299, %p300
    %p302 = scmp.ne.s32.totalorder %s288, %s289
    %p303 = scmp.eq.s32.totalorder %s24, 3
    %p304 = por %p302, %p303
    %p306 = scmp.ne.s32.totalorder %s289, %s305
    %p307 = scmp.eq.s32.totalorder %s24, 0
    %p308 = por %p306, %p307
    %p309 = scmp.le.s32.totalorder 1, %s18
    %p310 = scmp.lt.s32.totalorder %s18, 5
    %p311 = pnand %p309, %p310
    %p312 = pneg %p311
    // Predicated region
    $region9: #{decoder_block_forward.1} parent=5 // pred_check
      _
    $region10: #{decoder_block_forward.1} parent=5 // pred_check_branch
      %314 = sbr.rel (%p311) target = $region12
    $region11: #{decoder_block_forward.1} parent=5 // pred_region
      %s315 = ssub.s32 %s18, 1
      // Predicated region
      $region13: #{decoder_block_forward.1} parent=11 // pred_check
        %p316 = pneg %p65
      $region14: #{decoder_block_forward.1} parent=11 // pred_check_branch
        %318 = sbr.rel (%p316) target = $region16
      $region15: #{decoder_block_forward.1} parent=11 // pred_region
        _
      $region16: #{decoder_block_forward.1} parent=11 // pred_fallthru
        _
      // Predicated region
      $region17: #{decoder_block_forward.1} parent=11 // pred_check
        %p319 = pneg %p86
      $region18: #{decoder_block_forward.1} parent=11 // pred_check_branch
        %321 = sbr.rel (%p319) target = $region20
      $region19: #{decoder_block_forward.1} parent=11 // pred_region
        _
      $region20: #{decoder_block_forward.1} parent=11 // pred_fallthru
        _
      // Predicated region
      $region21: #{decoder_block_forward.1} parent=11 // pred_check
        %p322 = pneg %p107
      $region22: #{decoder_block_forward.1} parent=11 // pred_check_branch
        %324 = sbr.rel (%p322) target = $region24
      $region23: #{decoder_block_forward.1} parent=11 // pred_region
        _
      $region24: #{decoder_block_forward.1} parent=11 // pred_fallthru
        _
      // Predicated region
      $region25: #{decoder_block_forward.1} parent=11 // pred_check
        %p325 = pneg %p128
      $region26: #{decoder_block_forward.1} parent=11 // pred_check_branch
        %327 = sbr.rel (%p325) target = $region28
      $region27: #{decoder_block_forward.1} parent=11 // pred_region
        _
      $region28: #{decoder_block_forward.1} parent=11 // pred_fallthru
        _
      // Predicated region
      $region29: #{decoder_block_forward.1} parent=11 // pred_check
        %p328 = pneg %p149
      $region30: #{decoder_block_forward.1} parent=11 // pred_check_branch
        %330 = sbr.rel (%p328) target = $region32
      $region31: #{decoder_block_forward.1} parent=11 // pred_region
        _
      $region32: #{decoder_block_forward.1} parent=11 // pred_fallthru
        _
      // Predicated region
      $region33: #{decoder_block_forward.1} parent=11 // pred_check
        %p331 = pneg %p170
      $region34: #{decoder_block_forward.1} parent=11 // pred_check_branch
        %333 = sbr.rel (%p331) target = $region36
      $region35: #{decoder_block_forward.1} parent=11 // pred_region
        _
      $region36: #{decoder_block_forward.1} parent=11 // pred_fallthru
        _
      // Predicated region
      $region37: #{decoder_block_forward.1} parent=11 // pred_check
        %p334 = pneg %p191
      $region38: #{decoder_block_forward.1} parent=11 // pred_check_branch
        %336 = sbr.rel (%p334) target = $region40
      $region39: #{decoder_block_forward.1} parent=11 // pred_region
        _
      $region40: #{decoder_block_forward.1} parent=11 // pred_fallthru
        _
      // Predicated region
      $region41: #{decoder_block_forward.1} parent=11 // pred_check
        %p337 = pneg %p212
      $region42: #{decoder_block_forward.1} parent=11 // pred_check_branch
        %339 = sbr.rel (%p337) target = $region44
      $region43: #{decoder_block_forward.1} parent=11 // pred_region
        _
      $region44: #{decoder_block_forward.1} parent=11 // pred_fallthru
        _
      // Predicated region
      $region45: #{decoder_block_forward.1} parent=11 // pred_check
        %p340 = pneg %p233
      $region46: #{decoder_block_forward.1} parent=11 // pred_check_branch
        %342 = sbr.rel (%p340) target = $region48
      $region47: #{decoder_block_forward.1} parent=11 // pred_region
        _
      $region48: #{decoder_block_forward.1} parent=11 // pred_fallthru
        _
      // Predicated region
      $region49: #{decoder_block_forward.1} parent=11 // pred_check
        %p343 = pneg %p254
      $region50: #{decoder_block_forward.1} parent=11 // pred_check_branch
        %345 = sbr.rel (%p343) target = $region52
      $region51: #{decoder_block_forward.1} parent=11 // pred_region
        _
      $region52: #{decoder_block_forward.1} parent=11 // pred_fallthru
        _
      // Predicated region
      $region53: #{decoder_block_forward.1} parent=11 // pred_check
        %p346 = pneg %p275
      $region54: #{decoder_block_forward.1} parent=11 // pred_check_branch
        %348 = sbr.rel (%p346) target = $region56
      $region55: #{decoder_block_forward.1} parent=11 // pred_region
        _
      $region56: #{decoder_block_forward.1} parent=11 // pred_fallthru
        _
    $region12: #{decoder_block_forward.1} parent=5 // pred_fallthru
      _
    %p349 = scmp.lt.s32.totalorder %s18, 4
    // Predicated region
    $region57: #{decoder_block_forward.1} parent=5 // pred_check
      %p350 = pneg %p349
    $region58: #{decoder_block_forward.1} parent=5 // pred_check_branch
      %352 = sbr.rel (%p350) target = $region60
    $region59: #{decoder_block_forward.1} parent=5 // pred_region
      // Predicated region
      $region61: #{decoder_block_forward.1} parent=59 // pred_check
        %p353 = pneg %p38
      $region62: #{decoder_block_forward.1} parent=59 // pred_check_branch
        %355 = sbr.rel (%p353) target = $region64
      $region63: #{decoder_block_forward.1} parent=59 // pred_region
        %p356 = scmp.lt.s32.totalorder %s18, 3
        %s357 = scalar_select %p356, %s18, 3
        %s358 = smul.addr %s357, 8
        %s359 = smul.addr %s358, 8
        %s360 = scalar_lea.vmem %s0, %s359
      $region64: #{decoder_block_forward.1} parent=59 // pred_fallthru
        _
    $region60: #{decoder_block_forward.1} parent=5 // pred_fallthru
      _
    %p361 = scmp.le.s32.totalorder 1, %s18
    %p362 = scmp.lt.s32.totalorder %s18, 5
    %p363 = pnand %p361, %p362
    %p364 = pneg %p363
    // Predicated region
    $region65: #{decoder_block_forward.1} parent=5 // pred_check
      _
    $region66: #{decoder_block_forward.1} parent=5 // pred_check_branch
      %366 = sbr.rel (%p363) target = $region68
    $region67: #{decoder_block_forward.1} parent=5 // pred_region
      %s367 = ssub.s32 %s18, 1
      %p368 = scmp.lt.s32.totalorder %s23, 3
      %s369 = scalar_select %p368, %s23, 3
      %s370 = smul.addr %s369, 8
      %s371 = smul.addr %s370, 8
      %s372 = scalar_lea.vmem %s0, %s371
      %p373 = pneg %p44
      %p374 = pneg %p41
      %p375 = pneg %p65
      %p376 = pneg %p62
      %p377 = pneg %p86
      %p378 = pneg %p83
      %p379 = pneg %p107
      %p380 = pneg %p104
      %p381 = pneg %p128
      %p382 = pneg %p125
      %p383 = pneg %p149
      %p384 = pneg %p146
      %p385 = pneg %p170
      %p386 = pneg %p167
      %p387 = pneg %p191
      %p388 = pneg %p188
      %p389 = pneg %p212
      %p390 = pneg %p209
      %p391 = pneg %p233
      %p392 = pneg %p230
      %p393 = pneg %p254
      %p394 = pneg %p251
      %p395 = pneg %p275
      %p396 = pneg %p272
      %p397 = pneg %p301
      %p398 = pneg %p298
      %p399 = scmp.lt.s32.totalorder %s23, 3
      %s400 = scalar_select %p399, %s23, 3
      %s401 = smul.addr %s400, 8
      %s402 = smul.addr %s401, 8
      %s403 = scalar_lea.vmem %s12, %s402
      %p404 = scmp.lt.s32.totalorder %s23, 3
      %s405 = scalar_select %p404, %s23, 3
      %s406 = smul.addr %s405, 8
      %s407 = smul.addr %s406, 8
      %s408 = scalar_lea.vmem %s0, %s407
      %p409 = scmp.lt.s32.totalorder %s23, 3
      %s410 = scalar_select %p409, %s23, 3
      %s411 = smul.addr %s410, 8
      %s412 = smul.addr %s411, 8
      %s413 = scalar_lea.vmem %s12, %s412
      %v417 = vld [vmem:[%s1] sm:$0x3]
      %vm418 = vcmp.eq.s32.totalorder %v417, 0
      %vm419 = vcmp.eq.s32.totalorder %v417, 15
      %v420 = vld [vmem:[%s408] sm:$0xff]
      %v421 = vld [vmem:[%s408 + $0x8] sm:$0xff]
      %v422 = vld [vmem:[%s408 + $0x10] sm:$0xff]
      %v423 = vld [vmem:[%s408 + $0x18] sm:$0xff]
      %v424 = vld [vmem:[%s408 + $0x20] sm:$0xff]
      %v425 = vld [vmem:[%s408 + $0x28] sm:$0xff]
      %v426 = vld [vmem:[%s408 + $0x30] sm:$0xff]
      %v427 = vld [vmem:[%s408 + $0x38] sm:$0xff]
      %v428 = vpack.c.bf16 %v422, %v420
      %v429 = vpack.c.bf16 %v423, %v421
      %v430 = vpack.c.bf16 %v426, %v424
      %v431 = vpack.c.bf16 %v427, %v425
      %v432 = vsel %vm418, 1, 0
      %v433 = vlaneseq
      %v434 = vshrl.u32 %v433, 7
      %v435 = vsub.s32 0, %v434
      %v436 = vrot.slane %v432, %v435
      %v437 = vlaneseq
      %v438 = vshrl.u32 %v437, 7
      %v439 = vsub.s32 1, %v438
      %v440 = vrot.slane %v432, %v439
      %vm441 = vcmp.eq.s32.totalorder %v436, 1
      %vm442 = vcmp.eq.s32.totalorder %v440, 1
      %v443 = vsel %vm419, 1, 0
      %v444 = vlaneseq
      %v445 = vshrl.u32 %v444, 7
      %v446 = vsub.s32 0, %v445
      %v447 = vrot.slane %v443, %v446
      %v448 = vlaneseq
      %v449 = vshrl.u32 %v448, 7
      %v450 = vsub.s32 1, %v449
      %v451 = vrot.slane %v443, %v450
      %vm452 = vcmp.eq.s32.totalorder %v447, 1
      %vm453 = vcmp.eq.s32.totalorder %v451, 1
      %456 = vrot.lane.b32.xlu0 %v429, 17
      %v457 = vpop.permute.xlu0 %456
      %458 = vrot.lane.b32.xlu0 %v431, 17
      %v459 = vpop.permute.xlu0 %458
      %462 = vrot.lane.b32.xlu0 %v428, 17
      %v463 = vpop.permute.xlu0 %462
      %464 = vrot.lane.b32.xlu0 %v430, 17
      %v465 = vpop.permute.xlu0 %464
      %vm466 = vcmask 138240
      %v467 = vsel %vm466, %v463, %v457
      %v468 = vsel %vm466, %v465, %v459
      %vm471 = vcmask 138240
      %v474 = vsel %vm471, %v457, %v463
      %v478 = vsel %vm471, %v459, %v465
      %480 = vrot.lane.b32.xlu0 %v429, 1
      %v481 = vpop.permute.xlu0 %480
      %482 = vrot.lane.b32.xlu0 %v431, 1
      %v483 = vpop.permute.xlu0 %482
      %484 = vrot.lane.b32.xlu0 %v428, 1
      %v485 = vpop.permute.xlu0 %484
      %486 = vrot.lane.b32.xlu0 %v430, 1
      %v487 = vpop.permute.xlu0 %486
      %vm488 = vcmask 7168
      %v489 = vsel %vm488, %v485, %v481
      %v490 = vsel %vm488, %v487, %v483
      %vm493 = vcmask 7168
      %v496 = vsel %vm493, %v481, %v485
      %v500 = vsel %vm493, %v483, %v487
      %vm502 = vmpackc.low %vm442, %vm441
      %v503 = vsel %vm502, 65537, 0
      %v504 = vlaneseq
      %v505 = vshrl.u32 %v504, 7
      %v506 = vsub.s32 0, %v505
      %v507 = vrot.slane %v503, %v506
      %v508 = vlaneseq
      %v509 = vshrl.u32 %v508, 7
      %v510 = vsub.s32 4, %v509
      %v511 = vrot.slane %v503, %v510
      %vm512 = vcmp.ne.s16.totalorder %v507, 0
      %vm513 = vcmp.ne.s16.totalorder %v511, 0
      %v514 = vsel %vm512, %v496, %v474
      %v515 = vsel %vm513, %v489, %v467
      %v516 = vsel %vm512, %v500, %v478
      %v517 = vsel %vm513, %v490, %v468
      %v522 = vunpack.c.l.b16 %v514
      %v523 = vunpack.c.l.b16 %v515
      %v524 = vunpack.c.h.b16 %v514
      %v525 = vunpack.c.h.b16 %v515
      %v526 = vunpack.c.l.b16 %v516
      %v527 = vunpack.c.l.b16 %v517
      %v528 = vunpack.c.h.b16 %v516
      %v529 = vunpack.c.h.b16 %v517
      %v530 = vpack.c.b16 %v523, %v522
      %v531 = vpack.c.b16 %v525, %v524
      %v532 = vpack.c.b16 %v527, %v526
      %v533 = vpack.c.b16 %v529, %v528
      %538 = vst [vmem:[#allocation2] sm:$0xff] %v530
      %539 = vst [vmem:[#allocation2 + $0x8] sm:$0xff] %v531
      %540 = vst [vmem:[#allocation2 + $0x10] sm:$0xff] %v532
      %541 = vst [vmem:[#allocation2 + $0x18] sm:$0xff] %v533
      %542 = vrot.lane.b32.xlu0 %v429, 16
      %v543 = vpop.permute.xlu0 %542
      %544 = vrot.lane.b32.xlu0 %v431, 16
      %v545 = vpop.permute.xlu0 %544
      %546 = vrot.lane.b32.xlu0 %v428, 16
      %v547 = vpop.permute.xlu0 %546
      %548 = vrot.lane.b32.xlu0 %v430, 16
      %v549 = vpop.permute.xlu0 %548
      %vm550 = vcmask 130048
      %v551 = vsel %vm550, %v547, %v543
      %v552 = vsel %vm550, %v549, %v545
      %vm553 = vcmask 130048
      %v556 = vsel %vm553, %v543, %v547
      %v559 = vsel %vm553, %v545, %v549
      %v562 = vunpack.c.l.b16 %v556
      %v563 = vunpack.c.l.b16 %v551
      %v564 = vunpack.c.h.b16 %v556
      %v565 = vunpack.c.h.b16 %v551
      %v566 = vunpack.c.l.b16 %v559
      %v567 = vunpack.c.l.b16 %v552
      %v568 = vunpack.c.h.b16 %v559
      %v569 = vunpack.c.h.b16 %v552
      %v570 = vpack.c.b16 %v563, %v562
      %v571 = vpack.c.b16 %v565, %v564
      %v572 = vpack.c.b16 %v567, %v566
      %v573 = vpack.c.b16 %v569, %v568
      %578 = vst [vmem:[#allocation2 + $0x20] sm:$0xff] %v570
      %579 = vst [vmem:[#allocation2 + $0x28] sm:$0xff] %v571
      %580 = vst [vmem:[#allocation2 + $0x30] sm:$0xff] %v572
      %581 = vst [vmem:[#allocation2 + $0x38] sm:$0xff] %v573
      %582 = vrot.lane.b32.xlu0 %v429, 15
      %v583 = vpop.permute.xlu0 %582
      %584 = vrot.lane.b32.xlu0 %v431, 15
      %v585 = vpop.permute.xlu0 %584
      %586 = vrot.lane.b32.xlu0 %v428, 15
      %v587 = vpop.permute.xlu0 %586
      %588 = vrot.lane.b32.xlu0 %v430, 15
      %v589 = vpop.permute.xlu0 %588
      %vm590 = vcmask 121856
      %v591 = vsel %vm590, %v587, %v583
      %v592 = vsel %vm590, %v589, %v585
      %vm595 = vcmask 121856
      %v598 = vsel %vm595, %v583, %v587
      %v602 = vsel %vm595, %v585, %v589
      %604 = vrot.lane.b32.xlu0 %v429, 31
      %v605 = vpop.permute.xlu0 %604
      %606 = vrot.lane.b32.xlu0 %v431, 31
      %v607 = vpop.permute.xlu0 %606
      %608 = vrot.lane.b32.xlu0 %v428, 31
      %v609 = vpop.permute.xlu0 %608
      %610 = vrot.lane.b32.xlu0 %v430, 31
      %v611 = vpop.permute.xlu0 %610
      %vm612 = vcmask 252928
      %v613 = vsel %vm612, %v609, %v605
      %v614 = vsel %vm612, %v611, %v607
      %vm617 = vcmask 252928
      %v620 = vsel %vm617, %v605, %v609
      %v624 = vsel %vm617, %v607, %v611
      %vm626 = vmpackc.low %vm453, %vm452
      %v627 = vsel %vm626, 65537, 0
      %v628 = vlaneseq
      %v629 = vshrl.u32 %v628, 7
      %v630 = vsub.s32 0, %v629
      %v631 = vrot.slane %v627, %v630
      %v632 = vlaneseq
      %v633 = vshrl.u32 %v632, 7
      %v634 = vsub.s32 4, %v633
      %v635 = vrot.slane %v627, %v634
      %vm636 = vcmp.ne.s16.totalorder %v631, 0
      %vm637 = vcmp.ne.s16.totalorder %v635, 0
      %v638 = vsel %vm636, %v620, %v598
      %v639 = vsel %vm637, %v613, %v591
      %v640 = vsel %vm636, %v624, %v602
      %v641 = vsel %vm637, %v614, %v592
      %v646 = vunpack.c.l.b16 %v638
      %v647 = vunpack.c.l.b16 %v639
      %v648 = vunpack.c.h.b16 %v638
      %v649 = vunpack.c.h.b16 %v639
      %v650 = vunpack.c.l.b16 %v640
      %v651 = vunpack.c.l.b16 %v641
      %v652 = vunpack.c.h.b16 %v640
      %v653 = vunpack.c.h.b16 %v641
      %v654 = vpack.c.b16 %v647, %v646
      %v655 = vpack.c.b16 %v649, %v648
      %v656 = vpack.c.b16 %v651, %v650
      %v657 = vpack.c.b16 %v653, %v652
      %662 = vst [vmem:[#allocation2 + $0x40] sm:$0xff] %v654
      %663 = vst [vmem:[#allocation2 + $0x48] sm:$0xff] %v655
      %664 = vst [vmem:[#allocation2 + $0x50] sm:$0xff] %v656
      %665 = vst [vmem:[#allocation2 + $0x58] sm:$0xff] %v657
      %666 = vrot.lane.b32.xlu0 %v428, 113
      %v667 = vpop.permute.xlu0 %666
      %668 = vrot.lane.b32.xlu0 %v429, 113
      %v669 = vpop.permute.xlu0 %668
      %670 = vrot.lane.b32.xlu0 %v430, 113
      %v671 = vpop.permute.xlu0 %670
      %672 = vrot.lane.b32.xlu0 %v431, 113
      %v673 = vpop.permute.xlu0 %672
      %vm674 = vcmask 924672
      %v675 = vsel %vm674, %v667, %v669
      %v676 = vsel %vm674, %v671, %v673
      %vm679 = vcmask 924672
      %v682 = vsel %vm679, %v669, %v667
      %v686 = vsel %vm679, %v673, %v671
      %v688 = vsel %vm512, %v675, %v496
      %v689 = vsel %vm513, %v682, %v489
      %v690 = vsel %vm512, %v676, %v500
      %v691 = vsel %vm513, %v686, %v490
      %v696 = vunpack.c.l.b16 %v688
      %v697 = vunpack.c.l.b16 %v689
      %v698 = vunpack.c.h.b16 %v688
      %v699 = vunpack.c.h.b16 %v689
      %v700 = vunpack.c.l.b16 %v690
      %v701 = vunpack.c.l.b16 %v691
      %v702 = vunpack.c.h.b16 %v690
      %v703 = vunpack.c.h.b16 %v691
      %v704 = vpack.c.b16 %v697, %v696
      %v705 = vpack.c.b16 %v699, %v698
      %v706 = vpack.c.b16 %v701, %v700
      %v707 = vpack.c.b16 %v703, %v702
      %712 = vst [vmem:[#allocation2 + $0x60] sm:$0xff] %v704
      %713 = vst [vmem:[#allocation2 + $0x68] sm:$0xff] %v705
      %714 = vst [vmem:[#allocation2 + $0x70] sm:$0xff] %v706
      %715 = vst [vmem:[#allocation2 + $0x78] sm:$0xff] %v707
      %v716 = vunpack.c.l.b16 %v428
      %v717 = vunpack.c.l.b16 %v429
      %v718 = vunpack.c.h.b16 %v428
      %v719 = vunpack.c.h.b16 %v429
      %v720 = vunpack.c.l.b16 %v430
      %v721 = vunpack.c.l.b16 %v431
      %v722 = vunpack.c.h.b16 %v430
      %v723 = vunpack.c.h.b16 %v431
      %v724 = vpack.c.b16 %v717, %v716
      %v725 = vpack.c.b16 %v719, %v718
      %v726 = vpack.c.b16 %v721, %v720
      %v727 = vpack.c.b16 %v723, %v722
      %732 = vst [vmem:[#allocation2 + $0x80] sm:$0xff] %v724
      %733 = vst [vmem:[#allocation2 + $0x88] sm:$0xff] %v725
      %734 = vst [vmem:[#allocation2 + $0x90] sm:$0xff] %v726
      %735 = vst [vmem:[#allocation2 + $0x98] sm:$0xff] %v727
      %736 = vrot.lane.b32.xlu0 %v428, 127
      %v737 = vpop.permute.xlu0 %736
      %738 = vrot.lane.b32.xlu0 %v429, 127
      %v739 = vpop.permute.xlu0 %738
      %740 = vrot.lane.b32.xlu0 %v430, 127
      %v741 = vpop.permute.xlu0 %740
      %742 = vrot.lane.b32.xlu0 %v431, 127
      %v743 = vpop.permute.xlu0 %742
      %vm744 = vcmask 1039360
      %v745 = vsel %vm744, %v737, %v739
      %v746 = vsel %vm744, %v741, %v743
      %vm749 = vcmask 1039360
      %v752 = vsel %vm749, %v739, %v737
      %v756 = vsel %vm749, %v743, %v741
      %v758 = vsel %vm636, %v598, %v745
      %v759 = vsel %vm637, %v591, %v752
      %v760 = vsel %vm636, %v602, %v746
      %v761 = vsel %vm637, %v592, %v756
      %v766 = vunpack.c.l.b16 %v758
      %v767 = vunpack.c.l.b16 %v759
      %v768 = vunpack.c.h.b16 %v758
      %v769 = vunpack.c.h.b16 %v759
      %v770 = vunpack.c.l.b16 %v760
      %v771 = vunpack.c.l.b16 %v761
      %v772 = vunpack.c.h.b16 %v760
      %v773 = vunpack.c.h.b16 %v761
      %v774 = vpack.c.b16 %v767, %v766
      %v775 = vpack.c.b16 %v769, %v768
      %v776 = vpack.c.b16 %v771, %v770
      %v777 = vpack.c.b16 %v773, %v772
      %782 = vst [vmem:[#allocation2 + $0xa0] sm:$0xff] %v774
      %783 = vst [vmem:[#allocation2 + $0xa8] sm:$0xff] %v775
      %784 = vst [vmem:[#allocation2 + $0xb0] sm:$0xff] %v776
      %785 = vst [vmem:[#allocation2 + $0xb8] sm:$0xff] %v777
      %786 = vrot.lane.b32.xlu0 %v428, 97
      %v787 = vpop.permute.xlu0 %786
      %788 = vrot.lane.b32.xlu0 %v429, 97
      %v789 = vpop.permute.xlu0 %788
      %790 = vrot.lane.b32.xlu0 %v430, 97
      %v791 = vpop.permute.xlu0 %790
      %792 = vrot.lane.b32.xlu0 %v431, 97
      %v793 = vpop.permute.xlu0 %792
      %vm794 = vcmask 793600
      %v795 = vsel %vm794, %v787, %v789
      %v796 = vsel %vm794, %v791, %v793
      %vm799 = vcmask 793600
      %v802 = vsel %vm799, %v789, %v787
      %v806 = vsel %vm799, %v793, %v791
      %v808 = vsel %vm512, %v795, %v675
      %v809 = vsel %vm513, %v802, %v682
      %v810 = vsel %vm512, %v796, %v676
      %v811 = vsel %vm513, %v806, %v686
      %v816 = vunpack.c.l.b16 %v808
      %v817 = vunpack.c.l.b16 %v809
      %v818 = vunpack.c.h.b16 %v808
      %v819 = vunpack.c.h.b16 %v809
      %v820 = vunpack.c.l.b16 %v810
      %v821 = vunpack.c.l.b16 %v811
      %v822 = vunpack.c.h.b16 %v810
      %v823 = vunpack.c.h.b16 %v811
      %v824 = vpack.c.b16 %v817, %v816
      %v825 = vpack.c.b16 %v819, %v818
      %v826 = vpack.c.b16 %v821, %v820
      %v827 = vpack.c.b16 %v823, %v822
      %832 = vst [vmem:[#allocation2 + $0xc0] sm:$0xff] %v824
      %833 = vst [vmem:[#allocation2 + $0xc8] sm:$0xff] %v825
      %834 = vst [vmem:[#allocation2 + $0xd0] sm:$0xff] %v826
      %835 = vst [vmem:[#allocation2 + $0xd8] sm:$0xff] %v827
      %836 = vrot.lane.b32.xlu0 %v428, 112
      %v837 = vpop.permute.xlu0 %836
      %838 = vrot.lane.b32.xlu0 %v429, 112
      %v839 = vpop.permute.xlu0 %838
      %840 = vrot.lane.b32.xlu0 %v430, 112
      %v841 = vpop.permute.xlu0 %840
      %842 = vrot.lane.b32.xlu0 %v431, 112
      %v843 = vpop.permute.xlu0 %842
      %vm844 = vcmask 916480
      %v845 = vsel %vm844, %v837, %v839
      %v846 = vsel %vm844, %v841, %v843
      %vm847 = vcmask 916480
      %v850 = vsel %vm847, %v839, %v837
      %v853 = vsel %vm847, %v843, %v841
      %v856 = vunpack.c.l.b16 %v845
      %v857 = vunpack.c.l.b16 %v850
      %v858 = vunpack.c.h.b16 %v845
      %v859 = vunpack.c.h.b16 %v850
      %v860 = vunpack.c.l.b16 %v846
      %v861 = vunpack.c.l.b16 %v853
      %v862 = vunpack.c.h.b16 %v846
      %v863 = vunpack.c.h.b16 %v853
      %v864 = vpack.c.b16 %v857, %v856
      %v865 = vpack.c.b16 %v859, %v858
      %v866 = vpack.c.b16 %v861, %v860
      %v867 = vpack.c.b16 %v863, %v862
      %872 = vst [vmem:[#allocation2 + $0xe0] sm:$0xff] %v864
      %873 = vst [vmem:[#allocation2 + $0xe8] sm:$0xff] %v865
      %874 = vst [vmem:[#allocation2 + $0xf0] sm:$0xff] %v866
      %875 = vst [vmem:[#allocation2 + $0xf8] sm:$0xff] %v867
      %876 = vrot.lane.b32.xlu0 %v428, 111
      %v877 = vpop.permute.xlu0 %876
      %878 = vrot.lane.b32.xlu0 %v429, 111
      %v879 = vpop.permute.xlu0 %878
      %880 = vrot.lane.b32.xlu0 %v430, 111
      %v881 = vpop.permute.xlu0 %880
      %882 = vrot.lane.b32.xlu0 %v431, 111
      %v883 = vpop.permute.xlu0 %882
      %vm884 = vcmask 908288
      %v885 = vsel %vm884, %v877, %v879
      %v886 = vsel %vm884, %v881, %v883
      %vm889 = vcmask 908288
      %v892 = vsel %vm889, %v879, %v877
      %v896 = vsel %vm889, %v883, %v881
      %v898 = vsel %vm636, %v745, %v885
      %v899 = vsel %vm637, %v752, %v892
      %v900 = vsel %vm636, %v746, %v886
      %v901 = vsel %vm637, %v756, %v896
      %v906 = vunpack.c.l.b16 %v898
      %v907 = vunpack.c.l.b16 %v899
      %v908 = vunpack.c.h.b16 %v898
      %v909 = vunpack.c.h.b16 %v899
      %v910 = vunpack.c.l.b16 %v900
      %v911 = vunpack.c.l.b16 %v901
      %v912 = vunpack.c.h.b16 %v900
      %v913 = vunpack.c.h.b16 %v901
      %v914 = vpack.c.b16 %v907, %v906
      %v915 = vpack.c.b16 %v909, %v908
      %v916 = vpack.c.b16 %v911, %v910
      %v917 = vpack.c.b16 %v913, %v912
      %922 = vst [vmem:[#allocation2 + $0x100] sm:$0xff] %v914
      %923 = vst [vmem:[#allocation2 + $0x108] sm:$0xff] %v915
      %924 = vst [vmem:[#allocation2 + $0x110] sm:$0xff] %v916
      %925 = vst [vmem:[#allocation2 + $0x118] sm:$0xff] %v917
      %v926 = vld [vmem:[%s2] sm:$0xff]
      %v927 = vld [vmem:[%s2 + $0x8] sm:$0xf]
      %v928 = vld [vmem:[%s2 + $0xc] sm:$0xff]
      %v929 = vld [vmem:[%s2 + $0x14] sm:$0xf]
      %v930 = vld [vmem:[%s2 + $0x18] sm:$0xff]
      %v931 = vld [vmem:[%s2 + $0x20] sm:$0xf]
      %v932 = vld [vmem:[%s2 + $0x24] sm:$0xff]
      %v933 = vld [vmem:[%s2 + $0x2c] sm:$0xf]
      %v934 = vld [vmem:[%s2 + $0x30] sm:$0xff]
      %v935 = vld [vmem:[%s2 + $0x38] sm:$0xf]
      %v936 = vld [vmem:[%s2 + $0x3c] sm:$0xff]
      %v937 = vld [vmem:[%s2 + $0x44] sm:$0xf]
      %v938 = vld [vmem:[%s2 + $0x48] sm:$0xff]
      %v939 = vld [vmem:[%s2 + $0x50] sm:$0xf]
      %v940 = vld [vmem:[%s2 + $0x54] sm:$0xff]
      %v941 = vld [vmem:[%s2 + $0x5c] sm:$0xf]
      %v942 = vld [vmem:[#allocation2] sm:$0xff]
      %v943 = vld [vmem:[#allocation2 + $0x8] sm:$0xff]
      %v944 = vld [vmem:[#allocation2 + $0x10] sm:$0xff]
      %v945 = vld [vmem:[#allocation2 + $0x18] sm:$0xff]
      %v946 = vld [vmem:[#allocation2 + $0x20] sm:$0xff]
      %v947 = vld [vmem:[#allocation2 + $0x28] sm:$0xff]
      %v948 = vld [vmem:[#allocation2 + $0x30] sm:$0xff]
      %v949 = vld [vmem:[#allocation2 + $0x38] sm:$0xff]
      %v950 = vld [vmem:[#allocation2 + $0x40] sm:$0xff]
      %v951 = vld [vmem:[#allocation2 + $0x48] sm:$0xff]
      %v952 = vld [vmem:[#allocation2 + $0x50] sm:$0xff]
      %v953 = vld [vmem:[#allocation2 + $0x58] sm:$0xff]
      %v954 = vld [vmem:[#allocation2 + $0x60] sm:$0xff]
      %v955 = vld [vmem:[#allocation2 + $0x68] sm:$0xff]
      %v956 = vld [vmem:[#allocation2 + $0x70] sm:$0xff]
      %v957 = vld [vmem:[#allocation2 + $0x78] sm:$0xff]
      %v958 = vld [vmem:[#allocation2 + $0x80] sm:$0xff]
      %v959 = vld [vmem:[#allocation2 + $0x88] sm:$0xff]
      %v960 = vld [vmem:[#allocation2 + $0x90] sm:$0xff]
      %v961 = vld [vmem:[#allocation2 + $0x98] sm:$0xff]
      %v962 = vld [vmem:[#allocation2 + $0xa0] sm:$0xff]
      %v963 = vld [vmem:[#allocation2 + $0xa8] sm:$0xff]
      %v964 = vld [vmem:[#allocation2 + $0xb0] sm:$0xff]
      %v965 = vld [vmem:[#allocation2 + $0xb8] sm:$0xff]
      %v966 = vld [vmem:[#allocation2 + $0xc0] sm:$0xff]
      %v967 = vld [vmem:[#allocation2 + $0xc8] sm:$0xff]
      %v968 = vld [vmem:[#allocation2 + $0xd0] sm:$0xff]
      %v969 = vld [vmem:[#allocation2 + $0xd8] sm:$0xff]
      %v970 = vld [vmem:[#allocation2 + $0xe0] sm:$0xff]
      %v971 = vld [vmem:[#allocation2 + $0xe8] sm:$0xff]
      %v972 = vld [vmem:[#allocation2 + $0xf0] sm:$0xff]
      %v973 = vld [vmem:[#allocation2 + $0xf8] sm:$0xff]
      %v974 = vld [vmem:[#allocation2 + $0x100] sm:$0xff]
      %v975 = vld [vmem:[#allocation2 + $0x108] sm:$0xff]
      %v976 = vld [vmem:[#allocation2 + $0x110] sm:$0xff]
      %v977 = vld [vmem:[#allocation2 + $0x118] sm:$0xff]
      %v978 = vld [vmem:[%s3] sm:$0xff]
      %v979 = vld [vmem:[%s3 + $0x8] sm:$0xff]
      %v980 = vld [vmem:[%s3 + $0x10] sm:$0xff]
      %v981 = vld [vmem:[%s3 + $0x18] sm:$0xff]
      %v982 = vld [vmem:[%s3 + $0x20] sm:$0xff]
      %v983 = vld [vmem:[%s3 + $0x28] sm:$0xff]
      %v984 = vld [vmem:[%s3 + $0x30] sm:$0xff]
      %v985 = vld [vmem:[%s3 + $0x38] sm:$0xff]
      %987 = vset.pattern.permute.xlu0 0
      %988 = vperm.xlu0 %987, %v978
      %v989 = vpop.permute.xlu0 %988
      %992 = vset.pattern.permute.xlu0 0
      %993 = vperm.xlu0 %992, %v979
      %v994 = vpop.permute.xlu0 %993
      %997 = vset.pattern.permute.xlu0 0
      %998 = vperm.xlu0 %997, %v980
      %v999 = vpop.permute.xlu0 %998
      %1002 = vset.pattern.permute.xlu0 0
      %1003 = vperm.xlu0 %1002, %v981
      %v1004 = vpop.permute.xlu0 %1003
      %1007 = vset.pattern.permute.xlu0 0
      %1008 = vperm.xlu0 %1007, %v982
      %v1009 = vpop.permute.xlu0 %1008
      %1012 = vset.pattern.permute.xlu0 0
      %1013 = vperm.xlu0 %1012, %v983
      %v1014 = vpop.permute.xlu0 %1013
      %1017 = vset.pattern.permute.xlu0 0
      %1018 = vperm.xlu0 %1017, %v984
      %v1019 = vpop.permute.xlu0 %1018
      %1022 = vset.pattern.permute.xlu0 0
      %1023 = vperm.xlu0 %1022, %v985
      %v1024 = vpop.permute.xlu0 %1023
      %v1042 = vunpack.c.l.b16 %v926
      %v1043 = vunpack.c.h.b16 %v926
      %v1044 = vunpack.c.l.b16 %v927
      %v1045 = vunpack.c.l.b16 %v928
      %v1046 = vunpack.c.h.b16 %v928
      %v1047 = vunpack.c.l.b16 %v929
      %v1048 = vunpack.c.l.b16 %v930
      %v1049 = vunpack.c.h.b16 %v930
      %v1050 = vunpack.c.l.b16 %v931
      %v1051 = vunpack.c.l.b16 %v932
      %v1052 = vunpack.c.h.b16 %v932
      %v1053 = vunpack.c.l.b16 %v933
      %v1054 = vunpack.c.l.b16 %v934
      %v1055 = vunpack.c.h.b16 %v934
      %v1056 = vunpack.c.l.b16 %v935
      %v1057 = vunpack.c.l.b16 %v936
      %v1058 = vunpack.c.h.b16 %v936
      %v1059 = vunpack.c.l.b16 %v937
      %v1060 = vunpack.c.l.b16 %v938
      %v1061 = vunpack.c.h.b16 %v938
      %v1062 = vunpack.c.l.b16 %v939
      %v1063 = vunpack.c.l.b16 %v940
      %v1064 = vunpack.c.h.b16 %v940
      %v1065 = vunpack.c.l.b16 %v941
      %v1066 = vpack.c.b16 %v1045, %v1042
      %v1067 = vpack.c.b16 %v1046, %v1043
      %v1068 = vpack.c.b16 %v1047, %v1044
      %v1069 = vpack.c.b16 %v1051, %v1048
      %v1070 = vpack.c.b16 %v1052, %v1049
      %v1071 = vpack.c.b16 %v1053, %v1050
      %v1072 = vpack.c.b16 %v1057, %v1054
      %v1073 = vpack.c.b16 %v1058, %v1055
      %v1074 = vpack.c.b16 %v1059, %v1056
      %v1075 = vpack.c.b16 %v1063, %v1060
      %v1076 = vpack.c.b16 %v1064, %v1061
      %v1077 = vpack.c.b16 %v1065, %v1062
      %v1122 = vunpack.c.l.b16 %v942
      %v1123 = vunpack.c.h.b16 %v942
      %v1124 = vunpack.c.l.b16 %v943
      %v1125 = vunpack.c.h.b16 %v943
      %v1126 = vunpack.c.l.b16 %v944
      %v1127 = vunpack.c.h.b16 %v944
      %v1128 = vunpack.c.l.b16 %v945
      %v1129 = vunpack.c.h.b16 %v945
      %v1130 = vunpack.c.l.b16 %v946
      %v1131 = vunpack.c.h.b16 %v946
      %v1132 = vunpack.c.l.b16 %v947
      %v1133 = vunpack.c.h.b16 %v947
      %v1134 = vunpack.c.l.b16 %v948
      %v1135 = vunpack.c.h.b16 %v948
      %v1136 = vunpack.c.l.b16 %v949
      %v1137 = vunpack.c.h.b16 %v949
      %v1138 = vunpack.c.l.b16 %v950
      %v1139 = vunpack.c.h.b16 %v950
      %v1140 = vunpack.c.l.b16 %v951
      %v1141 = vunpack.c.h.b16 %v951
      %v1142 = vunpack.c.l.b16 %v952
      %v1143 = vunpack.c.h.b16 %v952
      %v1144 = vunpack.c.l.b16 %v953
      %v1145 = vunpack.c.h.b16 %v953
      %v1146 = vunpack.c.l.b16 %v954
      %v1147 = vunpack.c.h.b16 %v954
      %v1148 = vunpack.c.l.b16 %v955
      %v1149 = vunpack.c.h.b16 %v955
      %v1150 = vunpack.c.l.b16 %v956
      %v1151 = vunpack.c.h.b16 %v956
      %v1152 = vunpack.c.l.b16 %v957
      %v1153 = vunpack.c.h.b16 %v957
      %v1154 = vunpack.c.l.b16 %v958
      %v1155 = vunpack.c.h.b16 %v958
      %v1156 = vunpack.c.l.b16 %v959
      %v1157 = vunpack.c.h.b16 %v959
      %v1158 = vunpack.c.l.b16 %v960
      %v1159 = vunpack.c.h.b16 %v960
      %v1160 = vunpack.c.l.b16 %v961
      %v1161 = vunpack.c.h.b16 %v961
      %v1162 = vunpack.c.l.b16 %v962
      %v1163 = vunpack.c.h.b16 %v962
      %v1164 = vunpack.c.l.b16 %v963
      %v1165 = vunpack.c.h.b16 %v963
      %v1166 = vunpack.c.l.b16 %v964
      %v1167 = vunpack.c.h.b16 %v964
      %v1168 = vunpack.c.l.b16 %v965
      %v1169 = vunpack.c.h.b16 %v965
      %v1170 = vunpack.c.l.b16 %v966
      %v1171 = vunpack.c.h.b16 %v966
      %v1172 = vunpack.c.l.b16 %v967
      %v1173 = vunpack.c.h.b16 %v967
      %v1174 = vunpack.c.l.b16 %v968
      %v1175 = vunpack.c.h.b16 %v968
      %v1176 = vunpack.c.l.b16 %v969
      %v1177 = vunpack.c.h.b16 %v969
      %v1178 = vunpack.c.l.b16 %v970
      %v1179 = vunpack.c.h.b16 %v970
      %v1180 = vunpack.c.l.b16 %v971
      %v1181 = vunpack.c.h.b16 %v971
      %v1182 = vunpack.c.l.b16 %v972
      %v1183 = vunpack.c.h.b16 %v972
      %v1184 = vunpack.c.l.b16 %v973
      %v1185 = vunpack.c.h.b16 %v973
      %v1186 = vunpack.c.l.b16 %v974
      %v1187 = vunpack.c.h.b16 %v974
      %v1188 = vunpack.c.l.b16 %v975
      %v1189 = vunpack.c.h.b16 %v975
      %v1190 = vunpack.c.l.b16 %v976
      %v1191 = vunpack.c.h.b16 %v976
      %v1192 = vunpack.c.l.b16 %v977
      %v1193 = vunpack.c.h.b16 %v977
      %v1194 = vpack.c.b16 %v1124, %v1122
      %v1195 = vpack.c.b16 %v1125, %v1123
      %v1196 = vpack.c.b16 %v1128, %v1126
      %v1197 = vpack.c.b16 %v1129, %v1127
      %v1198 = vpack.c.b16 %v1132, %v1130
      %v1199 = vpack.c.b16 %v1133, %v1131
      %v1200 = vpack.c.b16 %v1136, %v1134
      %v1201 = vpack.c.b16 %v1137, %v1135
      %v1202 = vpack.c.b16 %v1140, %v1138
      %v1203 = vpack.c.b16 %v1141, %v1139
      %v1204 = vpack.c.b16 %v1144, %v1142
      %v1205 = vpack.c.b16 %v1145, %v1143
      %v1206 = vpack.c.b16 %v1148, %v1146
      %v1207 = vpack.c.b16 %v1149, %v1147
      %v1208 = vpack.c.b16 %v1152, %v1150
      %v1209 = vpack.c.b16 %v1153, %v1151
      %v1210 = vpack.c.b16 %v1156, %v1154
      %v1211 = vpack.c.b16 %v1157, %v1155
      %v1212 = vpack.c.b16 %v1160, %v1158
      %v1213 = vpack.c.b16 %v1161, %v1159
      %v1214 = vpack.c.b16 %v1164, %v1162
      %v1215 = vpack.c.b16 %v1165, %v1163
      %v1216 = vpack.c.b16 %v1168, %v1166
      %v1217 = vpack.c.b16 %v1169, %v1167
      %v1218 = vpack.c.b16 %v1172, %v1170
      %v1219 = vpack.c.b16 %v1173, %v1171
      %v1220 = vpack.c.b16 %v1176, %v1174
      %v1221 = vpack.c.b16 %v1177, %v1175
      %v1222 = vpack.c.b16 %v1180, %v1178
      %v1223 = vpack.c.b16 %v1181, %v1179
      %v1224 = vpack.c.b16 %v1184, %v1182
      %v1225 = vpack.c.b16 %v1185, %v1183
      %v1226 = vpack.c.b16 %v1188, %v1186
      %v1227 = vpack.c.b16 %v1189, %v1187
      %v1228 = vpack.c.b16 %v1192, %v1190
      %v1229 = vpack.c.b16 %v1193, %v1191
      %vm1266 = vcmask 261120
      %v1268 = vsel %vm1266, %v1068, 0
      %v1271 = vsel %vm1266, %v1071, 0
      %v1274 = vsel %vm1266, %v1074, 0
      %v1277 = vsel %vm1266, %v1077, 0
      %1279 = vmatprep.subr.bf16.mxu0 %v1209
      %1280 = vmatpush1.bf16.msra.mxu0 %v1208
      %1281 = vmatprep.subr.bf16.mxu0 %v1207
      %1282 = vmatpush1.bf16.msra.mxu0 %v1206
      %1283 = vmatprep.subr.bf16.mxu0 %v1205
      %1284 = vmatpush1.bf16.msra.mxu0 %v1204
      %1285 = vmatprep.subr.bf16.mxu0 %v1203
      %1286 = vmatpush1.bf16.msra.mxu0 %v1202
      %1287 = vmatprep.subr.bf16.mxu0 %v1201
      %1288 = vmatpush1.bf16.msra.mxu0 %v1200
      %1289 = vmatprep.subr.bf16.mxu0 %v1199
      %1290 = vmatpush1.bf16.msra.mxu0 %v1198
      %1291 = vmatprep.subr.bf16.mxu0 %v1197
      %1292 = vmatpush1.bf16.msra.mxu0 %v1196
      %1293 = vmatprep.subr.bf16.mxu0 %v1195
      %1294 = vmatpush1.bf16.msra.mxu0 %v1194
      %1295 = vmatprep.subr.bf16.mxu0 %v1225
      %1296 = vmatpush2.bf16.msra.mxu0 %v1224
      %1297 = vmatprep.subr.bf16.mxu0 %v1223
      %1298 = vmatpush2.bf16.msra.mxu0 %v1222
      %1299 = vmatprep.subr.bf16.mxu0 %v1221
      %1300 = vmatpush2.bf16.msra.mxu0 %v1220
      %1301 = vmatprep.subr.bf16.mxu0 %v1219
      %1302 = vmatpush2.bf16.msra.mxu0 %v1218
      %1303 = vmatprep.subr.bf16.mxu0 %v1217
      %1304 = vmatpush2.bf16.msra.mxu0 %v1216
      %1305 = vmatprep.subr.bf16.mxu0 %v1215
      %1306 = vmatpush2.bf16.msra.mxu0 %v1214
      %1307 = vmatprep.subr.bf16.mxu0 %v1213
      %1308 = vmatpush2.bf16.msra.mxu0 %v1212
      %1309 = vmatprep.subr.bf16.mxu0 %v1211
      %1310 = vmatpush2.bf16.msra.mxu0 %v1210
      %1311 = vmatprep.mubr.bf16.mxu0 %v1067
      %1312 = vmatmul.mubr.bf16.gmra.mxu0 %v1066
      %v1313 = vpop.f32.mrf.mxu0
      %v1314 = vadd.f32 %v989, %v1313
      %v1315 = vpop.f32.mrf.mxu0
      %v1316 = vadd.f32 %v989, %v1315
      %v1317 = vpop.f32.mrf.mxu0
      %v1318 = vadd.f32 %v994, %v1317
      %v1319 = vpop.f32.mrf.mxu0
      %v1320 = vadd.f32 %v994, %v1319
      %1321 = vmatprep.mubr.bf16.mxu0 %v1070
      %1322 = vmatmul.mubr.bf16.gmra.mxu0 %v1069
      %v1323 = vpop.f32.mrf.mxu0
      %v1324 = vadd.f32 %v999, %v1323
      %v1325 = vpop.f32.mrf.mxu0
      %v1326 = vadd.f32 %v999, %v1325
      %v1327 = vpop.f32.mrf.mxu0
      %v1328 = vadd.f32 %v1004, %v1327
      %v1329 = vpop.f32.mrf.mxu0
      %v1330 = vadd.f32 %v1004, %v1329
      %1331 = vmatprep.mubr.bf16.mxu0 %v1073
      %1332 = vmatmul.mubr.bf16.gmra.mxu0 %v1072
      %v1333 = vpop.f32.mrf.mxu0
      %v1334 = vadd.f32 %v1009, %v1333
      %v1335 = vpop.f32.mrf.mxu0
      %v1336 = vadd.f32 %v1009, %v1335
      %v1337 = vpop.f32.mrf.mxu0
      %v1338 = vadd.f32 %v1014, %v1337
      %v1339 = vpop.f32.mrf.mxu0
      %v1340 = vadd.f32 %v1014, %v1339
      %1341 = vmatprep.mubr.bf16.mxu0 %v1076
      %1342 = vmatmul.mubr.bf16.gmra.mxu0 %v1075
      %v1343 = vpop.f32.mrf.mxu0
      %v1344 = vadd.f32 %v1019, %v1343
      %v1345 = vpop.f32.mrf.mxu0
      %v1346 = vadd.f32 %v1019, %v1345
      %v1347 = vpop.f32.mrf.mxu0
      %v1348 = vadd.f32 %v1024, %v1347
      %v1349 = vpop.f32.mrf.mxu0
      %v1350 = vadd.f32 %v1024, %v1349
      %1351 = vdwg.mxu0
      %1352 = vmatprep.subr.bf16.mxu0 0
      %1353 = vmatpush1.bf16.msra.mxu0 0
      %1354 = vmatprep.subr.bf16.mxu0 0
      %1355 = vmatpush1.bf16.msra.mxu0 0
      %1356 = vmatprep.subr.bf16.mxu0 0
      %1357 = vmatpush1.bf16.msra.mxu0 0
      %1358 = vmatprep.subr.bf16.mxu0 0
      %1359 = vmatpush1.bf16.msra.mxu0 0
      %1360 = vmatprep.subr.bf16.mxu0 0
      %1361 = vmatpush1.bf16.msra.mxu0 0
      %1362 = vmatprep.subr.bf16.mxu0 0
      %1363 = vmatpush1.bf16.msra.mxu0 0
      %1364 = vmatprep.subr.bf16.mxu0 %v1229
      %1365 = vmatpush1.bf16.msra.mxu0 %v1228
      %1366 = vmatprep.subr.bf16.mxu0 %v1227
      %1367 = vmatpush1.bf16.msra.mxu0 %v1226
      %1368 = vmatprep.subr.bf16.mxu0 0
      %1369 = vmatpush2.bf16.msra.mxu0 0
      %1370 = vmatprep.subr.bf16.mxu0 0
      %1371 = vmatpush2.bf16.msra.mxu0 0
      %1372 = vmatprep.subr.bf16.mxu0 0
      %1373 = vmatpush2.bf16.msra.mxu0 0
      %1374 = vmatprep.subr.bf16.mxu0 0
      %1375 = vmatpush2.bf16.msra.mxu0 0
      %1376 = vmatprep.subr.bf16.mxu0 0
      %1377 = vmatpush2.bf16.msra.mxu0 0
      %1378 = vmatprep.subr.bf16.mxu0 0
      %1379 = vmatpush2.bf16.msra.mxu0 0
      %1380 = vmatprep.subr.bf16.mxu0 0
      %1381 = vmatpush2.bf16.msra.mxu0 0
      %1382 = vmatprep.subr.bf16.mxu0 0
      %1383 = vmatpush2.bf16.msra.mxu0 0
      %1384 = vmatprep.mubr.bf16.mxu0 0
      %1385 = vmatmul.mubr.bf16.gmra.mxu0 %v1268
      %v1386 = vpop.f32.mrf.mxu0
      %v1387 = vadd.f32 %v1314, %v1386
      %v1388 = vpop.f32.mrf.mxu0
      %v1389 = vadd.f32 %v1316, %v1388
      %v1390 = vpop.f32.mrf.mxu0
      %v1391 = vadd.f32 %v1318, %v1390
      %v1392 = vpop.f32.mrf.mxu0
      %v1393 = vadd.f32 %v1320, %v1392
      %1394 = vmatprep.mubr.bf16.mxu0 0
      %1395 = vmatmul.mubr.bf16.gmra.mxu0 %v1271
      %v1396 = vpop.f32.mrf.mxu0
      %v1397 = vadd.f32 %v1324, %v1396
      %v1398 = vpop.f32.mrf.mxu0
      %v1399 = vadd.f32 %v1326, %v1398
      %v1400 = vpop.f32.mrf.mxu0
      %v1401 = vadd.f32 %v1328, %v1400
      %v1402 = vpop.f32.mrf.mxu0
      %v1403 = vadd.f32 %v1330, %v1402
      %1404 = vmatprep.mubr.bf16.mxu0 0
      %1405 = vmatmul.mubr.bf16.gmra.mxu0 %v1274
      %v1406 = vpop.f32.mrf.mxu0
      %v1407 = vadd.f32 %v1334, %v1406
      %v1408 = vpop.f32.mrf.mxu0
      %v1409 = vadd.f32 %v1336, %v1408
      %v1410 = vpop.f32.mrf.mxu0
      %v1411 = vadd.f32 %v1338, %v1410
      %v1412 = vpop.f32.mrf.mxu0
      %v1413 = vadd.f32 %v1340, %v1412
      %1414 = vmatprep.mubr.bf16.mxu0 0
      %1415 = vmatmul.mubr.bf16.gmra.mxu0 %v1277
      %v1416 = vpop.f32.mrf.mxu0
      %v1417 = vadd.f32 %v1344, %v1416
      %v1418 = vpop.f32.mrf.mxu0
      %v1419 = vadd.f32 %v1346, %v1418
      %v1420 = vpop.f32.mrf.mxu0
      %v1421 = vadd.f32 %v1348, %v1420
      %v1422 = vpop.f32.mrf.mxu0
      %v1423 = vadd.f32 %v1350, %v1422
      %1424 = vdwg.mxu0
      %v1425 = vld [vmem:[%s6] sm:$0xff]
      %v1426 = vld [vmem:[%s6 + $0x8] sm:$0xff]
      %v1427 = vld [vmem:[%s6 + $0x10] sm:$0xff]
      %v1428 = vld [vmem:[%s6 + $0x18] sm:$0xff]
      %v1429 = vld [vmem:[%s6 + $0x20] sm:$0xff]
      %v1430 = vld [vmem:[%s6 + $0x28] sm:$0xff]
      %v1431 = vld [vmem:[%s6 + $0x30] sm:$0xff]
      %v1432 = vld [vmem:[%s6 + $0x38] sm:$0xff]
      %v1433 = vld [vmem:[%s4] sm:$0xff]
      %v1434 = vld [vmem:[%s4 + $0x8] sm:$0xff]
      %v1435 = vld [vmem:[%s4 + $0x10] sm:$0xff]
      %v1436 = vld [vmem:[%s4 + $0x18] sm:$0xff]
      %v1437 = vld [vmem:[%s4 + $0x20] sm:$0xff]
      %v1438 = vld [vmem:[%s4 + $0x28] sm:$0xff]
      %v1439 = vld [vmem:[%s4 + $0x30] sm:$0xff]
      %v1440 = vld [vmem:[%s4 + $0x38] sm:$0xff]
      %v1441 = vld [vmem:[%s5] sm:$0xff]
      %v1442 = vld [vmem:[%s5 + $0x8] sm:$0xff]
      %v1443 = vld [vmem:[%s5 + $0x10] sm:$0xff]
      %v1444 = vld [vmem:[%s5 + $0x18] sm:$0xff]
      %v1445 = vld [vmem:[%s5 + $0x20] sm:$0xff]
      %v1446 = vld [vmem:[%s5 + $0x28] sm:$0xff]
      %v1447 = vld [vmem:[%s5 + $0x30] sm:$0xff]
      %v1448 = vld [vmem:[%s5 + $0x38] sm:$0xff]
      %v1449 = vadd.f32 %v1387, %v1389
      %1450 = vadd.xlane.f32.xlu0 %v1449
      %v1451 = vpop.xlane.xlu0 %1450
      %v1452 = vadd.f32 %v1391, %v1393
      %1453 = vadd.xlane.f32.xlu0 %v1452
      %v1454 = vpop.xlane.xlu0 %1453
      %v1455 = vadd.f32 %v1397, %v1399
      %1456 = vadd.xlane.f32.xlu0 %v1455
      %v1457 = vpop.xlane.xlu0 %1456
      %v1458 = vadd.f32 %v1401, %v1403
      %1459 = vadd.xlane.f32.xlu0 %v1458
      %v1460 = vpop.xlane.xlu0 %1459
      %v1461 = vadd.f32 %v1407, %v1409
      %1462 = vadd.xlane.f32.xlu0 %v1461
      %v1463 = vpop.xlane.xlu0 %1462
      %v1464 = vadd.f32 %v1411, %v1413
      %1465 = vadd.xlane.f32.xlu0 %v1464
      %v1466 = vpop.xlane.xlu0 %1465
      %v1467 = vadd.f32 %v1417, %v1419
      %1468 = vadd.xlane.f32.xlu0 %v1467
      %v1469 = vpop.xlane.xlu0 %1468
      %v1470 = vadd.f32 %v1421, %v1423
      %1471 = vadd.xlane.f32.xlu0 %v1470
      %v1472 = vpop.xlane.xlu0 %1471
      %vm1473 = vcmask 523264
      %v1475 = vsel %vm1473, %v1425, 0
      %v1478 = vsel %vm1473, %v1426, 0
      %v1481 = vsel %vm1473, %v1427, 0
      %v1484 = vsel %vm1473, %v1428, 0
      %v1487 = vsel %vm1473, %v1429, 0
      %v1490 = vsel %vm1473, %v1430, 0
      %v1493 = vsel %vm1473, %v1431, 0
      %v1496 = vsel %vm1473, %v1432, 0
      %1498 = vmatprep.subr.mxu0 0.0
      %1499 = vmatpush1.msra.mxu0 0.0
      %1500 = vmatprep.subr.mxu0 0.0
      %1501 = vmatpush1.msra.mxu0 0.0
      %1502 = vmatprep.subr.mxu0 0.0
      %1503 = vmatpush1.msra.mxu0 0.0
      %1504 = vmatprep.subr.mxu0 0.0
      %1505 = vmatpush1.msra.mxu0 0.0
      %1506 = vmatprep.subr.mxu0 0.0
      %1507 = vmatpush1.msra.mxu0 0.0
      %1508 = vmatprep.subr.mxu0 0.0
      %1509 = vmatpush1.msra.mxu0 0.0
      %1510 = vmatprep.subr.mxu0 0.0
      %1511 = vmatpush1.msra.mxu0 0.0
      %1512 = vmatprep.subr.mxu0 0.0
      %1513 = vmatpush1.msra.mxu0 0.0
      %1514 = vmatprep.subr.mxu0 0.0
      %1515 = vmatpush1.msra.mxu0 %v1472
      %1516 = vmatprep.subr.mxu0 0.0
      %1517 = vmatpush1.msra.mxu0 %v1469
      %1518 = vmatprep.subr.mxu0 0.0
      %1519 = vmatpush1.msra.mxu0 %v1466
      %1520 = vmatprep.subr.mxu0 0.0
      %1521 = vmatpush1.msra.mxu0 %v1463
      %1522 = vmatprep.subr.mxu0 0.0
      %1523 = vmatpush1.msra.mxu0 %v1460
      %1524 = vmatprep.subr.mxu0 0.0
      %1525 = vmatpush1.msra.mxu0 %v1457
      %1526 = vmatprep.subr.mxu0 0.0
      %1527 = vmatpush1.msra.mxu0 %v1454
      %1528 = vmatprep.subr.mxu0 0.0
      %1529 = vmatpush1.msra.mxu0 %v1451
      %1530 = vmatprep.subr.mxu0 0.0
      %1531 = vmatpush2.msra.mxu0 0.0
      %1532 = vmatprep.subr.mxu0 0.0
      %1533 = vmatpush2.msra.mxu0 0.0
      %1534 = vmatprep.subr.mxu0 0.0
      %1535 = vmatpush2.msra.mxu0 0.0
      %1536 = vmatprep.subr.mxu0 0.0
      %1537 = vmatpush2.msra.mxu0 0.0
      %1538 = vmatprep.subr.mxu0 0.0
      %1539 = vmatpush2.msra.mxu0 0.0
      %1540 = vmatprep.subr.mxu0 0.0
      %1541 = vmatpush2.msra.mxu0 0.0
      %1542 = vmatprep.subr.mxu0 0.0
      %1543 = vmatpush2.msra.mxu0 0.0
      %1544 = vmatprep.subr.mxu0 0.0
      %1545 = vmatpush2.msra.mxu0 0.0
      %1546 = vmatprep.subr.mxu0 0.0
      %1547 = vmatpush2.msra.mxu0 0.0
      %1548 = vmatprep.subr.mxu0 0.0
      %1549 = vmatpush2.msra.mxu0 0.0
      %1550 = vmatprep.subr.mxu0 0.0
      %1551 = vmatpush2.msra.mxu0 0.0
      %1552 = vmatprep.subr.mxu0 0.0
      %1553 = vmatpush2.msra.mxu0 0.0
      %1554 = vmatprep.subr.mxu0 0.0
      %1555 = vmatpush2.msra.mxu0 0.0
      %1556 = vmatprep.subr.mxu0 0.0
      %1557 = vmatpush2.msra.mxu0 0.0
      %1558 = vmatprep.subr.mxu0 0.0
      %1559 = vmatpush2.msra.mxu0 0.0
      %1560 = vmatprep.subr.mxu0 0.0
      %1561 = vmatpush2.msra.mxu0 0.0
      %1562 = vmatprep.mubr.f32.mxu0 0.0
      %1563 = vmatmul.mubr.f32.gmra.mxu0 %v1475
      %v1564 = vpop.f32.mrf.mxu0
      %v1565 = vadd.f32 0.0, %v1564
      %v1566 = vpop.f32.mrf.mxu0
      %1567 = vmatprep.mubr.f32.mxu0 0.0
      %1568 = vmatmul.mubr.f32.gmra.mxu0 %v1478
      %v1569 = vpop.f32.mrf.mxu0
      %v1570 = vadd.f32 0.0, %v1569
      %v1571 = vpop.f32.mrf.mxu0
      %1572 = vmatprep.mubr.f32.mxu0 0.0
      %1573 = vmatmul.mubr.f32.gmra.mxu0 %v1481
      %v1574 = vpop.f32.mrf.mxu0
      %v1575 = vadd.f32 0.0, %v1574
      %v1576 = vpop.f32.mrf.mxu0
      %1577 = vmatprep.mubr.f32.mxu0 0.0
      %1578 = vmatmul.mubr.f32.gmra.mxu0 %v1484
      %v1579 = vpop.f32.mrf.mxu0
      %v1580 = vadd.f32 0.0, %v1579
      %v1581 = vpop.f32.mrf.mxu0
      %1582 = vmatprep.mubr.f32.mxu0 0.0
      %1583 = vmatmul.mubr.f32.gmra.mxu0 %v1487
      %v1584 = vpop.f32.mrf.mxu0
      %v1585 = vadd.f32 0.0, %v1584
      %v1586 = vpop.f32.mrf.mxu0
      %1587 = vmatprep.mubr.f32.mxu0 0.0
      %1588 = vmatmul.mubr.f32.gmra.mxu0 %v1490
      %v1589 = vpop.f32.mrf.mxu0
      %v1590 = vadd.f32 0.0, %v1589
      %v1591 = vpop.f32.mrf.mxu0
      %1592 = vmatprep.mubr.f32.mxu0 0.0
      %1593 = vmatmul.mubr.f32.gmra.mxu0 %v1493
      %v1594 = vpop.f32.mrf.mxu0
      %v1595 = vadd.f32 0.0, %v1594
      %v1596 = vpop.f32.mrf.mxu0
      %1597 = vmatprep.mubr.f32.mxu0 0.0
      %1598 = vmatmul.mubr.f32.gmra.mxu0 %v1496
      %v1599 = vpop.f32.mrf.mxu0
      %v1600 = vadd.f32 0.0, %v1599
      %v1601 = vpop.f32.mrf.mxu0
      %1602 = vdwg.mxu0
      %1604 = vset.pattern.permute.xlu0 0
      %1605 = vperm.xlu0 %1604, %v1565
      %v1606 = vpop.permute.xlu0 %1605
      %1609 = vset.pattern.permute.xlu0 0
      %1610 = vperm.xlu0 %1609, %v1570
      %v1611 = vpop.permute.xlu0 %1610
      %1614 = vset.pattern.permute.xlu0 0
      %1615 = vperm.xlu0 %1614, %v1575
      %v1616 = vpop.permute.xlu0 %1615
      %1619 = vset.pattern.permute.xlu0 0
      %1620 = vperm.xlu0 %1619, %v1580
      %v1621 = vpop.permute.xlu0 %1620
      %1624 = vset.pattern.permute.xlu0 0
      %1625 = vperm.xlu0 %1624, %v1585
      %v1626 = vpop.permute.xlu0 %1625
      %1629 = vset.pattern.permute.xlu0 0
      %1630 = vperm.xlu0 %1629, %v1590
      %v1631 = vpop.permute.xlu0 %1630
      %1634 = vset.pattern.permute.xlu0 0
      %1635 = vperm.xlu0 %1634, %v1595
      %v1636 = vpop.permute.xlu0 %1635
      %1639 = vset.pattern.permute.xlu0 0
      %1640 = vperm.xlu0 %1639, %v1600
      %v1641 = vpop.permute.xlu0 %1640
      %v1643 = vsub.f32 %v1387, %v1606
      %v1644 = vsub.f32 %v1389, %v1606
      %v1645 = vsub.f32 %v1391, %v1611
      %v1646 = vsub.f32 %v1393, %v1611
      %v1647 = vsub.f32 %v1397, %v1616
      %v1648 = vsub.f32 %v1399, %v1616
      %v1649 = vsub.f32 %v1401, %v1621
      %v1650 = vsub.f32 %v1403, %v1621
      %v1651 = vsub.f32 %v1407, %v1626
      %v1652 = vsub.f32 %v1409, %v1626
      %v1653 = vsub.f32 %v1411, %v1631
      %v1654 = vsub.f32 %v1413, %v1631
      %v1655 = vsub.f32 %v1417, %v1636
      %v1656 = vsub.f32 %v1419, %v1636
      %v1657 = vsub.f32 %v1421, %v1641
      %v1658 = vsub.f32 %v1423, %v1641
      %v1659 = vmul.f32 %v1643, %v1643
      %v1660 = vmul.f32 %v1644, %v1644
      %v1661 = vmul.f32 %v1645, %v1645
      %v1662 = vmul.f32 %v1646, %v1646
      %v1663 = vmul.f32 %v1647, %v1647
      %v1664 = vmul.f32 %v1648, %v1648
      %v1665 = vmul.f32 %v1649, %v1649
      %v1666 = vmul.f32 %v1650, %v1650
      %v1667 = vmul.f32 %v1651, %v1651
      %v1668 = vmul.f32 %v1652, %v1652
      %v1669 = vmul.f32 %v1653, %v1653
      %v1670 = vmul.f32 %v1654, %v1654
      %v1671 = vmul.f32 %v1655, %v1655
      %v1672 = vmul.f32 %v1656, %v1656
      %v1673 = vmul.f32 %v1657, %v1657
      %v1674 = vmul.f32 %v1658, %v1658
      %v1675 = vadd.f32 %v1659, %v1660
      %1676 = vadd.xlane.f32.xlu0 %v1675
      %v1677 = vpop.xlane.xlu0 %1676
      %v1678 = vadd.f32 %v1661, %v1662
      %1679 = vadd.xlane.f32.xlu0 %v1678
      %v1680 = vpop.xlane.xlu0 %1679
      %v1681 = vadd.f32 %v1663, %v1664
      %1682 = vadd.xlane.f32.xlu0 %v1681
      %v1683 = vpop.xlane.xlu0 %1682
      %v1684 = vadd.f32 %v1665, %v1666
      %1685 = vadd.xlane.f32.xlu0 %v1684
      %v1686 = vpop.xlane.xlu0 %1685
      %v1687 = vadd.f32 %v1667, %v1668
      %1688 = vadd.xlane.f32.xlu0 %v1687
      %v1689 = vpop.xlane.xlu0 %1688
      %v1690 = vadd.f32 %v1669, %v1670
      %1691 = vadd.xlane.f32.xlu0 %v1690
      %v1692 = vpop.xlane.xlu0 %1691
      %v1693 = vadd.f32 %v1671, %v1672
      %1694 = vadd.xlane.f32.xlu0 %v1693
      %v1695 = vpop.xlane.xlu0 %1694
      %v1696 = vadd.f32 %v1673, %v1674
      %1697 = vadd.xlane.f32.xlu0 %v1696
      %v1698 = vpop.xlane.xlu0 %1697
      %1699 = vmatprep.subr.mxu0 0.0
      %1700 = vmatpush1.msra.mxu0 0.0
      %1701 = vmatprep.subr.mxu0 0.0
      %1702 = vmatpush1.msra.mxu0 0.0
      %1703 = vmatprep.subr.mxu0 0.0
      %1704 = vmatpush1.msra.mxu0 0.0
      %1705 = vmatprep.subr.mxu0 0.0
      %1706 = vmatpush1.msra.mxu0 0.0
      %1707 = vmatprep.subr.mxu0 0.0
      %1708 = vmatpush1.msra.mxu0 0.0
      %1709 = vmatprep.subr.mxu0 0.0
      %1710 = vmatpush1.msra.mxu0 0.0
      %1711 = vmatprep.subr.mxu0 0.0
      %1712 = vmatpush1.msra.mxu0 0.0
      %1713 = vmatprep.subr.mxu0 0.0
      %1714 = vmatpush1.msra.mxu0 0.0
      %1715 = vmatprep.subr.mxu0 0.0
      %1716 = vmatpush1.msra.mxu0 %v1698
      %1717 = vmatprep.subr.mxu0 0.0
      %1718 = vmatpush1.msra.mxu0 %v1695
      %1719 = vmatprep.subr.mxu0 0.0
      %1720 = vmatpush1.msra.mxu0 %v1692
      %1721 = vmatprep.subr.mxu0 0.0
      %1722 = vmatpush1.msra.mxu0 %v1689
      %1723 = vmatprep.subr.mxu0 0.0
      %1724 = vmatpush1.msra.mxu0 %v1686
      %1725 = vmatprep.subr.mxu0 0.0
      %1726 = vmatpush1.msra.mxu0 %v1683
      %1727 = vmatprep.subr.mxu0 0.0
      %1728 = vmatpush1.msra.mxu0 %v1680
      %1729 = vmatprep.subr.mxu0 0.0
      %1730 = vmatpush1.msra.mxu0 %v1677
      %1731 = vmatprep.subr.mxu0 0.0
      %1732 = vmatpush2.msra.mxu0 0.0
      %1733 = vmatprep.subr.mxu0 0.0
      %1734 = vmatpush2.msra.mxu0 0.0
      %1735 = vmatprep.subr.mxu0 0.0
      %1736 = vmatpush2.msra.mxu0 0.0
      %1737 = vmatprep.subr.mxu0 0.0
      %1738 = vmatpush2.msra.mxu0 0.0
      %1739 = vmatprep.subr.mxu0 0.0
      %1740 = vmatpush2.msra.mxu0 0.0
      %1741 = vmatprep.subr.mxu0 0.0
      %1742 = vmatpush2.msra.mxu0 0.0
      %1743 = vmatprep.subr.mxu0 0.0
      %1744 = vmatpush2.msra.mxu0 0.0
      %1745 = vmatprep.subr.mxu0 0.0
      %1746 = vmatpush2.msra.mxu0 0.0
      %1747 = vmatprep.subr.mxu0 0.0
      %1748 = vmatpush2.msra.mxu0 0.0
      %1749 = vmatprep.subr.mxu0 0.0
      %1750 = vmatpush2.msra.mxu0 0.0
      %1751 = vmatprep.subr.mxu0 0.0
      %1752 = vmatpush2.msra.mxu0 0.0
      %1753 = vmatprep.subr.mxu0 0.0
      %1754 = vmatpush2.msra.mxu0 0.0
      %1755 = vmatprep.subr.mxu0 0.0
      %1756 = vmatpush2.msra.mxu0 0.0
      %1757 = vmatprep.subr.mxu0 0.0
      %1758 = vmatpush2.msra.mxu0 0.0
      %1759 = vmatprep.subr.mxu0 0.0
      %1760 = vmatpush2.msra.mxu0 0.0
      %1761 = vmatprep.subr.mxu0 0.0
      %1762 = vmatpush2.msra.mxu0 0.0
      %1763 = vmatprep.mubr.f32.mxu0 0.0
      %1764 = vmatmul.mubr.f32.gmra.mxu0 %v1475
      %v1765 = vpop.f32.mrf.mxu0
      %v1766 = vadd.f32 1e-05, %v1765
      %v1767 = vpop.f32.mrf.mxu0
      %1768 = vmatprep.mubr.f32.mxu0 0.0
      %1769 = vmatmul.mubr.f32.gmra.mxu0 %v1478
      %v1770 = vpop.f32.mrf.mxu0
      %v1771 = vadd.f32 1e-05, %v1770
      %v1772 = vpop.f32.mrf.mxu0
      %1773 = vmatprep.mubr.f32.mxu0 0.0
      %1774 = vmatmul.mubr.f32.gmra.mxu0 %v1481
      %v1775 = vpop.f32.mrf.mxu0
      %v1776 = vadd.f32 1e-05, %v1775
      %v1777 = vpop.f32.mrf.mxu0
      %1778 = vmatprep.mubr.f32.mxu0 0.0
      %1779 = vmatmul.mubr.f32.gmra.mxu0 %v1484
      %v1780 = vpop.f32.mrf.mxu0
      %v1781 = vadd.f32 1e-05, %v1780
      %v1782 = vpop.f32.mrf.mxu0
      %1783 = vmatprep.mubr.f32.mxu0 0.0
      %1784 = vmatmul.mubr.f32.gmra.mxu0 %v1487
      %v1785 = vpop.f32.mrf.mxu0
      %v1786 = vadd.f32 1e-05, %v1785
      %v1787 = vpop.f32.mrf.mxu0
      %1788 = vmatprep.mubr.f32.mxu0 0.0
      %1789 = vmatmul.mubr.f32.gmra.mxu0 %v1490
      %v1790 = vpop.f32.mrf.mxu0
      %v1791 = vadd.f32 1e-05, %v1790
      %v1792 = vpop.f32.mrf.mxu0
      %1793 = vmatprep.mubr.f32.mxu0 0.0
      %1794 = vmatmul.mubr.f32.gmra.mxu0 %v1493
      %v1795 = vpop.f32.mrf.mxu0
      %v1796 = vadd.f32 1e-05, %v1795
      %v1797 = vpop.f32.mrf.mxu0
      %1798 = vmatprep.mubr.f32.mxu0 0.0
      %1799 = vmatmul.mubr.f32.gmra.mxu0 %v1496
      %v1800 = vpop.f32.mrf.mxu0
      %v1801 = vadd.f32 1e-05, %v1800
      %v1802 = vpop.f32.mrf.mxu0
      %1803 = vdwg.mxu0
      %v1804 = vrsqrt.pop %v1766
      %v1805 = vrsqrt.pop %v1771
      %v1806 = vrsqrt.pop %v1776
      %v1807 = vrsqrt.pop %v1781
      %v1808 = vrsqrt.pop %v1786
      %v1809 = vrsqrt.pop %v1791
      %v1810 = vrsqrt.pop %v1796
      %v1811 = vrsqrt.pop %v1801
      %1813 = vset.pattern.permute.xlu0 0
      %1814 = vperm.xlu0 %1813, %v1804
      %v1815 = vpop.permute.xlu0 %1814
      %1818 = vset.pattern.permute.xlu0 0
      %1819 = vperm.xlu0 %1818, %v1805
      %v1820 = vpop.permute.xlu0 %1819
      %1823 = vset.pattern.permute.xlu0 0
      %1824 = vperm.xlu0 %1823, %v1806
      %v1825 = vpop.permute.xlu0 %1824
      %1828 = vset.pattern.permute.xlu0 0
      %1829 = vperm.xlu0 %1828, %v1807
      %v1830 = vpop.permute.xlu0 %1829
      %1833 = vset.pattern.permute.xlu0 0
      %1834 = vperm.xlu0 %1833, %v1808
      %v1835 = vpop.permute.xlu0 %1834
      %1838 = vset.pattern.permute.xlu0 0
      %1839 = vperm.xlu0 %1838, %v1809
      %v1840 = vpop.permute.xlu0 %1839
      %1843 = vset.pattern.permute.xlu0 0
      %1844 = vperm.xlu0 %1843, %v1810
      %v1845 = vpop.permute.xlu0 %1844
      %1848 = vset.pattern.permute.xlu0 0
      %1849 = vperm.xlu0 %1848, %v1811
      %v1850 = vpop.permute.xlu0 %1849
      %v1852 = vmul.f32 %v1643, %v1815
      %v1853 = vmul.f32 %v1644, %v1815
      %v1854 = vmul.f32 %v1645, %v1820
      %v1855 = vmul.f32 %v1646, %v1820
      %v1856 = vmul.f32 %v1647, %v1825
      %v1857 = vmul.f32 %v1648, %v1825
      %v1858 = vmul.f32 %v1649, %v1830
      %v1859 = vmul.f32 %v1650, %v1830
      %v1860 = vmul.f32 %v1651, %v1835
      %v1861 = vmul.f32 %v1652, %v1835
      %v1862 = vmul.f32 %v1653, %v1840
      %v1863 = vmul.f32 %v1654, %v1840
      %v1864 = vmul.f32 %v1655, %v1845
      %v1865 = vmul.f32 %v1656, %v1845
      %v1866 = vmul.f32 %v1657, %v1850
      %v1867 = vmul.f32 %v1658, %v1850
      %1869 = vset.pattern.permute.xlu0 0
      %1870 = vperm.xlu0 %1869, %v1433
      %v1871 = vpop.permute.xlu0 %1870
      %1874 = vset.pattern.permute.xlu0 0
      %1875 = vperm.xlu0 %1874, %v1434
      %v1876 = vpop.permute.xlu0 %1875
      %1879 = vset.pattern.permute.xlu0 0
      %1880 = vperm.xlu0 %1879, %v1435
      %v1881 = vpop.permute.xlu0 %1880
      %1884 = vset.pattern.permute.xlu0 0
      %1885 = vperm.xlu0 %1884, %v1436
      %v1886 = vpop.permute.xlu0 %1885
      %1889 = vset.pattern.permute.xlu0 0
      %1890 = vperm.xlu0 %1889, %v1437
      %v1891 = vpop.permute.xlu0 %1890
      %1894 = vset.pattern.permute.xlu0 0
      %1895 = vperm.xlu0 %1894, %v1438
      %v1896 = vpop.permute.xlu0 %1895
      %1899 = vset.pattern.permute.xlu0 0
      %1900 = vperm.xlu0 %1899, %v1439
      %v1901 = vpop.permute.xlu0 %1900
      %1904 = vset.pattern.permute.xlu0 0
      %1905 = vperm.xlu0 %1904, %v1440
      %v1906 = vpop.permute.xlu0 %1905
      %v1908 = vmul.f32 %v1852, %v1871
      %v1909 = vmul.f32 %v1853, %v1871
      %v1910 = vmul.f32 %v1854, %v1876
      %v1911 = vmul.f32 %v1855, %v1876
      %v1912 = vmul.f32 %v1856, %v1881
      %v1913 = vmul.f32 %v1857, %v1881
      %v1914 = vmul.f32 %v1858, %v1886
      %v1915 = vmul.f32 %v1859, %v1886
      %v1916 = vmul.f32 %v1860, %v1891
      %v1917 = vmul.f32 %v1861, %v1891
      %v1918 = vmul.f32 %v1862, %v1896
      %v1919 = vmul.f32 %v1863, %v1896
      %v1920 = vmul.f32 %v1864, %v1901
      %v1921 = vmul.f32 %v1865, %v1901
      %v1922 = vmul.f32 %v1866, %v1906
      %v1923 = vmul.f32 %v1867, %v1906
      %1925 = vset.pattern.permute.xlu0 0
      %1926 = vperm.xlu0 %1925, %v1441
      %v1927 = vpop.permute.xlu0 %1926
      %1930 = vset.pattern.permute.xlu0 0
      %1931 = vperm.xlu0 %1930, %v1442
      %v1932 = vpop.permute.xlu0 %1931
      %1935 = vset.pattern.permute.xlu0 0
      %1936 = vperm.xlu0 %1935, %v1443
      %v1937 = vpop.permute.xlu0 %1936
      %1940 = vset.pattern.permute.xlu0 0
      %1941 = vperm.xlu0 %1940, %v1444
      %v1942 = vpop.permute.xlu0 %1941
      %1945 = vset.pattern.permute.xlu0 0
      %1946 = vperm.xlu0 %1945, %v1445
      %v1947 = vpop.permute.xlu0 %1946
      %1950 = vset.pattern.permute.xlu0 0
      %1951 = vperm.xlu0 %1950, %v1446
      %v1952 = vpop.permute.xlu0 %1951
      %1955 = vset.pattern.permute.xlu0 0
      %1956 = vperm.xlu0 %1955, %v1447
      %v1957 = vpop.permute.xlu0 %1956
      %1960 = vset.pattern.permute.xlu0 0
      %1961 = vperm.xlu0 %1960, %v1448
      %v1962 = vpop.permute.xlu0 %1961
      %v1964 = vadd.f32 %v1908, %v1927
      %v1965 = vadd.f32 %v1909, %v1927
      %v1966 = vadd.f32 %v1910, %v1932
      %v1967 = vadd.f32 %v1911, %v1932
      %v1968 = vadd.f32 %v1912, %v1937
      %v1969 = vadd.f32 %v1913, %v1937
      %v1970 = vadd.f32 %v1914, %v1942
      %v1971 = vadd.f32 %v1915, %v1942
      %v1972 = vadd.f32 %v1916, %v1947
      %v1973 = vadd.f32 %v1917, %v1947
      %v1974 = vadd.f32 %v1918, %v1952
      %v1975 = vadd.f32 %v1919, %v1952
      %v1976 = vadd.f32 %v1920, %v1957
      %v1977 = vadd.f32 %v1921, %v1957
      %v1978 = vadd.f32 %v1922, %v1962
      %v1979 = vadd.f32 %v1923, %v1962
      %v1980 = vmul.f32 %v1964, 0.5
      %v1981 = vmul.f32 %v1965, 0.5
      %v1982 = vmul.f32 %v1966, 0.5
      %v1983 = vmul.f32 %v1967, 0.5
      %v1984 = vmul.f32 %v1968, 0.5
      %v1985 = vmul.f32 %v1969, 0.5
      %v1986 = vmul.f32 %v1970, 0.5
      %v1987 = vmul.f32 %v1971, 0.5
      %v1988 = vmul.f32 %v1972, 0.5
      %v1989 = vmul.f32 %v1973, 0.5
      %v1990 = vmul.f32 %v1974, 0.5
      %v1991 = vmul.f32 %v1975, 0.5
      %v1992 = vmul.f32 %v1976, 0.5
      %v1993 = vmul.f32 %v1977, 0.5
      %v1994 = vmul.f32 %v1978, 0.5
      %v1995 = vmul.f32 %v1979, 0.5
      %v1996 = vmul.f32 %v1964, 0.70710677
      %v1997 = vmul.f32 %v1965, 0.70710677
      %v1998 = vmul.f32 %v1966, 0.70710677
      %v1999 = vmul.f32 %v1967, 0.70710677
      %v2000 = vmul.f32 %v1968, 0.70710677
      %v2001 = vmul.f32 %v1969, 0.70710677
      %v2002 = vmul.f32 %v1970, 0.70710677
      %v2003 = vmul.f32 %v1971, 0.70710677
      %v2004 = vmul.f32 %v1972, 0.70710677
      %v2005 = vmul.f32 %v1973, 0.70710677
      %v2006 = vmul.f32 %v1974, 0.70710677
      %v2007 = vmul.f32 %v1975, 0.70710677
      %v2008 = vmul.f32 %v1976, 0.70710677
      %v2009 = vmul.f32 %v1977, 0.70710677
      %v2010 = vmul.f32 %v1978, 0.70710677
      %v2011 = vmul.f32 %v1979, 0.70710677
      %v2012 = verf.f32.pop %v1996
      %v2013 = verf.f32.pop %v1997
      %v2014 = verf.f32.pop %v1998
      %v2015 = verf.f32.pop %v1999
      %v2016 = verf.f32.pop %v2000
      %v2017 = verf.f32.pop %v2001
      %v2018 = verf.f32.pop %v2002
      %v2019 = verf.f32.pop %v2003
      %v2020 = verf.f32.pop %v2004
      %v2021 = verf.f32.pop %v2005
      %v2022 = verf.f32.pop %v2006
      %v2023 = verf.f32.pop %v2007
      %v2024 = verf.f32.pop %v2008
      %v2025 = verf.f32.pop %v2009
      %v2026 = verf.f32.pop %v2010
      %v2027 = verf.f32.pop %v2011
      %v2028 = vadd.f32 %v2012, 1.0
      %v2029 = vadd.f32 %v2013, 1.0
      %v2030 = vadd.f32 %v2014, 1.0
      %v2031 = vadd.f32 %v2015, 1.0
      %v2032 = vadd.f32 %v2016, 1.0
      %v2033 = vadd.f32 %v2017, 1.0
      %v2034 = vadd.f32 %v2018, 1.0
      %v2035 = vadd.f32 %v2019, 1.0
      %v2036 = vadd.f32 %v2020, 1.0
      %v2037 = vadd.f32 %v2021, 1.0
      %v2038 = vadd.f32 %v2022, 1.0
      %v2039 = vadd.f32 %v2023, 1.0
      %v2040 = vadd.f32 %v2024, 1.0
      %v2041 = vadd.f32 %v2025, 1.0
      %v2042 = vadd.f32 %v2026, 1.0
      %v2043 = vadd.f32 %v2027, 1.0
      %v2044 = vmul.f32 %v1980, %v2028
      %v2045 = vmul.f32 %v1981, %v2029
      %v2046 = vmul.f32 %v1982, %v2030
      %v2047 = vmul.f32 %v1983, %v2031
      %v2048 = vmul.f32 %v1984, %v2032
      %v2049 = vmul.f32 %v1985, %v2033
      %v2050 = vmul.f32 %v1986, %v2034
      %v2051 = vmul.f32 %v1987, %v2035
      %v2052 = vmul.f32 %v1988, %v2036
      %v2053 = vmul.f32 %v1989, %v2037
      %v2054 = vmul.f32 %v1990, %v2038
      %v2055 = vmul.f32 %v1991, %v2039
      %v2056 = vmul.f32 %v1992, %v2040
      %v2057 = vmul.f32 %v1993, %v2041
      %v2058 = vmul.f32 %v1994, %v2042
      %v2059 = vmul.f32 %v1995, %v2043
      %v2060 = vpack.c.bf16 %v2046, %v2044
      %v2061 = vpack.c.bf16 %v2047, %v2045
      %v2062 = vpack.c.bf16 %v2050, %v2048
      %v2063 = vpack.c.bf16 %v2051, %v2049
      %v2064 = vpack.c.bf16 %v2054, %v2052
      %v2065 = vpack.c.bf16 %v2055, %v2053
      %v2066 = vpack.c.bf16 %v2058, %v2056
      %v2067 = vpack.c.bf16 %v2059, %v2057
      %2072 = vrot.lane.b32.xlu0 %v2061, 17
      %v2073 = vpop.permute.xlu0 %2072
      %2074 = vrot.lane.b32.xlu0 %v2063, 17
      %v2075 = vpop.permute.xlu0 %2074
      %2076 = vrot.lane.b32.xlu0 %v2065, 17
      %v2077 = vpop.permute.xlu0 %2076
      %2078 = vrot.lane.b32.xlu0 %v2067, 17
      %v2079 = vpop.permute.xlu0 %2078
      %2084 = vrot.lane.b32.xlu0 %v2060, 17
      %v2085 = vpop.permute.xlu0 %2084
      %2086 = vrot.lane.b32.xlu0 %v2062, 17
      %v2087 = vpop.permute.xlu0 %2086
      %2088 = vrot.lane.b32.xlu0 %v2064, 17
      %v2089 = vpop.permute.xlu0 %2088
      %2090 = vrot.lane.b32.xlu0 %v2066, 17
      %v2091 = vpop.permute.xlu0 %2090
      %v2092 = vsel %vm466, %v2085, %v2073
      %v2093 = vsel %vm466, %v2087, %v2075
      %v2094 = vsel %vm466, %v2089, %v2077
      %v2095 = vsel %vm466, %v2091, %v2079
      %v2102 = vsel %vm471, %v2073, %v2085
      %v2106 = vsel %vm471, %v2075, %v2087
      %v2110 = vsel %vm471, %v2077, %v2089
      %v2114 = vsel %vm471, %v2079, %v2091
      %2116 = vrot.lane.b32.xlu0 %v2061, 1
      %v2117 = vpop.permute.xlu0 %2116
      %2118 = vrot.lane.b32.xlu0 %v2063, 1
      %v2119 = vpop.permute.xlu0 %2118
      %2120 = vrot.lane.b32.xlu0 %v2065, 1
      %v2121 = vpop.permute.xlu0 %2120
      %2122 = vrot.lane.b32.xlu0 %v2067, 1
      %v2123 = vpop.permute.xlu0 %2122
      %2124 = vrot.lane.b32.xlu0 %v2060, 1
      %v2125 = vpop.permute.xlu0 %2124
      %2126 = vrot.lane.b32.xlu0 %v2062, 1
      %v2127 = vpop.permute.xlu0 %2126
      %2128 = vrot.lane.b32.xlu0 %v2064, 1
      %v2129 = vpop.permute.xlu0 %2128
      %2130 = vrot.lane.b32.xlu0 %v2066, 1
      %v2131 = vpop.permute.xlu0 %2130
      %v2132 = vsel %vm488, %v2125, %v2117
      %v2133 = vsel %vm488, %v2127, %v2119
      %v2134 = vsel %vm488, %v2129, %v2121
      %v2135 = vsel %vm488, %v2131, %v2123
      %v2142 = vsel %vm493, %v2117, %v2125
      %v2146 = vsel %vm493, %v2119, %v2127
      %v2150 = vsel %vm493, %v2121, %v2129
      %v2154 = vsel %vm493, %v2123, %v2131
      %v2156 = vsel %vm512, %v2142, %v2102
      %v2157 = vsel %vm513, %v2132, %v2092
      %v2158 = vsel %vm512, %v2146, %v2106
      %v2159 = vsel %vm513, %v2133, %v2093
      %v2160 = vsel %vm512, %v2150, %v2110
      %v2161 = vsel %vm513, %v2134, %v2094
      %v2162 = vsel %vm512, %v2154, %v2114
      %v2163 = vsel %vm513, %v2135, %v2095
      %v2172 = vunpack.c.l.b16 %v2156
      %v2173 = vunpack.c.l.b16 %v2157
      %v2174 = vunpack.c.h.b16 %v2156
      %v2175 = vunpack.c.h.b16 %v2157
      %v2176 = vunpack.c.l.b16 %v2158
      %v2177 = vunpack.c.l.b16 %v2159
      %v2178 = vunpack.c.h.b16 %v2158
      %v2179 = vunpack.c.h.b16 %v2159
      %v2180 = vunpack.c.l.b16 %v2160
      %v2181 = vunpack.c.l.b16 %v2161
      %v2182 = vunpack.c.h.b16 %v2160
      %v2183 = vunpack.c.h.b16 %v2161
      %v2184 = vunpack.c.l.b16 %v2162
      %v2185 = vunpack.c.l.b16 %v2163
      %v2186 = vunpack.c.h.b16 %v2162
      %v2187 = vunpack.c.h.b16 %v2163
      %v2188 = vpack.c.b16 %v2173, %v2172
      %v2189 = vpack.c.b16 %v2175, %v2174
      %v2190 = vpack.c.b16 %v2177, %v2176
      %v2191 = vpack.c.b16 %v2179, %v2178
      %v2192 = vpack.c.b16 %v2181, %v2180
      %v2193 = vpack.c.b16 %v2183, %v2182
      %v2194 = vpack.c.b16 %v2185, %v2184
      %v2195 = vpack.c.b16 %v2187, %v2186
      %2204 = vst [vmem:[#allocation2] sm:$0xff] %v2188
      %2205 = vst [vmem:[#allocation2 + $0x8] sm:$0xff] %v2189
      %2206 = vst [vmem:[#allocation2 + $0x10] sm:$0xff] %v2190
      %2207 = vst [vmem:[#allocation2 + $0x18] sm:$0xff] %v2191
      %2208 = vst [vmem:[#allocation2 + $0x20] sm:$0xff] %v2192
      %2209 = vst [vmem:[#allocation2 + $0x28] sm:$0xff] %v2193
      %2210 = vst [vmem:[#allocation2 + $0x30] sm:$0xff] %v2194
      %2211 = vst [vmem:[#allocation2 + $0x38] sm:$0xff] %v2195
      %2212 = vrot.lane.b32.xlu0 %v2061, 16
      %v2213 = vpop.permute.xlu0 %2212
      %2214 = vrot.lane.b32.xlu0 %v2063, 16
      %v2215 = vpop.permute.xlu0 %2214
      %2216 = vrot.lane.b32.xlu0 %v2065, 16
      %v2217 = vpop.permute.xlu0 %2216
      %2218 = vrot.lane.b32.xlu0 %v2067, 16
      %v2219 = vpop.permute.xlu0 %2218
      %2220 = vrot.lane.b32.xlu0 %v2060, 16
      %v2221 = vpop.permute.xlu0 %2220
      %2222 = vrot.lane.b32.xlu0 %v2062, 16
      %v2223 = vpop.permute.xlu0 %2222
      %2224 = vrot.lane.b32.xlu0 %v2064, 16
      %v2225 = vpop.permute.xlu0 %2224
      %2226 = vrot.lane.b32.xlu0 %v2066, 16
      %v2227 = vpop.permute.xlu0 %2226
      %v2228 = vsel %vm550, %v2221, %v2213
      %v2229 = vsel %vm550, %v2223, %v2215
      %v2230 = vsel %vm550, %v2225, %v2217
      %v2231 = vsel %vm550, %v2227, %v2219
      %v2234 = vsel %vm553, %v2213, %v2221
      %v2237 = vsel %vm553, %v2215, %v2223
      %v2240 = vsel %vm553, %v2217, %v2225
      %v2243 = vsel %vm553, %v2219, %v2227
      %v2248 = vunpack.c.l.b16 %v2234
      %v2249 = vunpack.c.l.b16 %v2228
      %v2250 = vunpack.c.h.b16 %v2234
      %v2251 = vunpack.c.h.b16 %v2228
      %v2252 = vunpack.c.l.b16 %v2237
      %v2253 = vunpack.c.l.b16 %v2229
      %v2254 = vunpack.c.h.b16 %v2237
      %v2255 = vunpack.c.h.b16 %v2229
      %v2256 = vunpack.c.l.b16 %v2240
      %v2257 = vunpack.c.l.b16 %v2230
      %v2258 = vunpack.c.h.b16 %v2240
      %v2259 = vunpack.c.h.b16 %v2230
      %v2260 = vunpack.c.l.b16 %v2243
      %v2261 = vunpack.c.l.b16 %v2231
      %v2262 = vunpack.c.h.b16 %v2243
      %v2263 = vunpack.c.h.b16 %v2231
      %v2264 = vpack.c.b16 %v2249, %v2248
      %v2265 = vpack.c.b16 %v2251, %v2250
      %v2266 = vpack.c.b16 %v2253, %v2252
      %v2267 = vpack.c.b16 %v2255, %v2254
      %v2268 = vpack.c.b16 %v2257, %v2256
      %v2269 = vpack.c.b16 %v2259, %v2258
      %v2270 = vpack.c.b16 %v2261, %v2260
      %v2271 = vpack.c.b16 %v2263, %v2262
      %2280 = vst [vmem:[#allocation2 + $0x40] sm:$0xff] %v2264
      %2281 = vst [vmem:[#allocation2 + $0x48] sm:$0xff] %v2265
      %2282 = vst [vmem:[#allocation2 + $0x50] sm:$0xff] %v2266
      %2283 = vst [vmem:[#allocation2 + $0x58] sm:$0xff] %v2267
      %2284 = vst [vmem:[#allocation2 + $0x60] sm:$0xff] %v2268
      %2285 = vst [vmem:[#allocation2 + $0x68] sm:$0xff] %v2269
      %2286 = vst [vmem:[#allocation2 + $0x70] sm:$0xff] %v2270
      %2287 = vst [vmem:[#allocation2 + $0x78] sm:$0xff] %v2271
      %2288 = vrot.lane.b32.xlu0 %v2061, 15
      %v2289 = vpop.permute.xlu0 %2288
      %2290 = vrot.lane.b32.xlu0 %v2063, 15
      %v2291 = vpop.permute.xlu0 %2290
      %2292 = vrot.lane.b32.xlu0 %v2065, 15
      %v2293 = vpop.permute.xlu0 %2292
      %2294 = vrot.lane.b32.xlu0 %v2067, 15
      %v2295 = vpop.permute.xlu0 %2294
      %2296 = vrot.lane.b32.xlu0 %v2060, 15
      %v2297 = vpop.permute.xlu0 %2296
      %2298 = vrot.lane.b32.xlu0 %v2062, 15
      %v2299 = vpop.permute.xlu0 %2298
      %2300 = vrot.lane.b32.xlu0 %v2064, 15
      %v2301 = vpop.permute.xlu0 %2300
      %2302 = vrot.lane.b32.xlu0 %v2066, 15
      %v2303 = vpop.permute.xlu0 %2302
      %v2304 = vsel %vm590, %v2297, %v2289
      %v2305 = vsel %vm590, %v2299, %v2291
      %v2306 = vsel %vm590, %v2301, %v2293
      %v2307 = vsel %vm590, %v2303, %v2295
      %v2314 = vsel %vm595, %v2289, %v2297
      %v2318 = vsel %vm595, %v2291, %v2299
      %v2322 = vsel %vm595, %v2293, %v2301
      %v2326 = vsel %vm595, %v2295, %v2303
      %2328 = vrot.lane.b32.xlu0 %v2061, 31
      %v2329 = vpop.permute.xlu0 %2328
      %2330 = vrot.lane.b32.xlu0 %v2063, 31
      %v2331 = vpop.permute.xlu0 %2330
      %2332 = vrot.lane.b32.xlu0 %v2065, 31
      %v2333 = vpop.permute.xlu0 %2332
      %2334 = vrot.lane.b32.xlu0 %v2067, 31
      %v2335 = vpop.permute.xlu0 %2334
      %2336 = vrot.lane.b32.xlu0 %v2060, 31
      %v2337 = vpop.permute.xlu0 %2336
      %2338 = vrot.lane.b32.xlu0 %v2062, 31
      %v2339 = vpop.permute.xlu0 %2338
      %2340 = vrot.lane.b32.xlu0 %v2064, 31
      %v2341 = vpop.permute.xlu0 %2340
      %2342 = vrot.lane.b32.xlu0 %v2066, 31
      %v2343 = vpop.permute.xlu0 %2342
      %v2344 = vsel %vm612, %v2337, %v2329
      %v2345 = vsel %vm612, %v2339, %v2331
      %v2346 = vsel %vm612, %v2341, %v2333
      %v2347 = vsel %vm612, %v2343, %v2335
      %v2354 = vsel %vm617, %v2329, %v2337
      %v2358 = vsel %vm617, %v2331, %v2339
      %v2362 = vsel %vm617, %v2333, %v2341
      %v2366 = vsel %vm617, %v2335, %v2343
      %v2368 = vsel %vm636, %v2354, %v2314
      %v2369 = vsel %vm637, %v2344, %v2304
      %v2370 = vsel %vm636, %v2358, %v2318
      %v2371 = vsel %vm637, %v2345, %v2305
      %v2372 = vsel %vm636, %v2362, %v2322
      %v2373 = vsel %vm637, %v2346, %v2306
      %v2374 = vsel %vm636, %v2366, %v2326
      %v2375 = vsel %vm637, %v2347, %v2307
      %v2384 = vunpack.c.l.b16 %v2368
      %v2385 = vunpack.c.l.b16 %v2369
      %v2386 = vunpack.c.h.b16 %v2368
      %v2387 = vunpack.c.h.b16 %v2369
      %v2388 = vunpack.c.l.b16 %v2370
      %v2389 = vunpack.c.l.b16 %v2371
      %v2390 = vunpack.c.h.b16 %v2370
      %v2391 = vunpack.c.h.b16 %v2371
      %v2392 = vunpack.c.l.b16 %v2372
      %v2393 = vunpack.c.l.b16 %v2373
      %v2394 = vunpack.c.h.b16 %v2372
      %v2395 = vunpack.c.h.b16 %v2373
      %v2396 = vunpack.c.l.b16 %v2374
      %v2397 = vunpack.c.l.b16 %v2375
      %v2398 = vunpack.c.h.b16 %v2374
      %v2399 = vunpack.c.h.b16 %v2375
      %v2400 = vpack.c.b16 %v2385, %v2384
      %v2401 = vpack.c.b16 %v2387, %v2386
      %v2402 = vpack.c.b16 %v2389, %v2388
      %v2403 = vpack.c.b16 %v2391, %v2390
      %v2404 = vpack.c.b16 %v2393, %v2392
      %v2405 = vpack.c.b16 %v2395, %v2394
      %v2406 = vpack.c.b16 %v2397, %v2396
      %v2407 = vpack.c.b16 %v2399, %v2398
      %2416 = vst [vmem:[#allocation2 + $0x80] sm:$0xff] %v2400
      %2417 = vst [vmem:[#allocation2 + $0x88] sm:$0xff] %v2401
      %2418 = vst [vmem:[#allocation2 + $0x90] sm:$0xff] %v2402
      %2419 = vst [vmem:[#allocation2 + $0x98] sm:$0xff] %v2403
      %2420 = vst [vmem:[#allocation2 + $0xa0] sm:$0xff] %v2404
      %2421 = vst [vmem:[#allocation2 + $0xa8] sm:$0xff] %v2405
      %2422 = vst [vmem:[#allocation2 + $0xb0] sm:$0xff] %v2406
      %2423 = vst [vmem:[#allocation2 + $0xb8] sm:$0xff] %v2407
      %2424 = vrot.lane.b32.xlu0 %v2060, 113
      %v2425 = vpop.permute.xlu0 %2424
      %2426 = vrot.lane.b32.xlu0 %v2061, 113
      %v2427 = vpop.permute.xlu0 %2426
      %2428 = vrot.lane.b32.xlu0 %v2062, 113
      %v2429 = vpop.permute.xlu0 %2428
      %2430 = vrot.lane.b32.xlu0 %v2063, 113
      %v2431 = vpop.permute.xlu0 %2430
      %2432 = vrot.lane.b32.xlu0 %v2064, 113
      %v2433 = vpop.permute.xlu0 %2432
      %2434 = vrot.lane.b32.xlu0 %v2065, 113
      %v2435 = vpop.permute.xlu0 %2434
      %2436 = vrot.lane.b32.xlu0 %v2066, 113
      %v2437 = vpop.permute.xlu0 %2436
      %2438 = vrot.lane.b32.xlu0 %v2067, 113
      %v2439 = vpop.permute.xlu0 %2438
      %v2440 = vsel %vm674, %v2425, %v2427
      %v2441 = vsel %vm674, %v2429, %v2431
      %v2442 = vsel %vm674, %v2433, %v2435
      %v2443 = vsel %vm674, %v2437, %v2439
      %v2450 = vsel %vm679, %v2427, %v2425
      %v2454 = vsel %vm679, %v2431, %v2429
      %v2458 = vsel %vm679, %v2435, %v2433
      %v2462 = vsel %vm679, %v2439, %v2437
      %v2464 = vsel %vm512, %v2440, %v2142
      %v2465 = vsel %vm513, %v2450, %v2132
      %v2466 = vsel %vm512, %v2441, %v2146
      %v2467 = vsel %vm513, %v2454, %v2133
      %v2468 = vsel %vm512, %v2442, %v2150
      %v2469 = vsel %vm513, %v2458, %v2134
      %v2470 = vsel %vm512, %v2443, %v2154
      %v2471 = vsel %vm513, %v2462, %v2135
      %v2480 = vunpack.c.l.b16 %v2464
      %v2481 = vunpack.c.l.b16 %v2465
      %v2482 = vunpack.c.h.b16 %v2464
      %v2483 = vunpack.c.h.b16 %v2465
      %v2484 = vunpack.c.l.b16 %v2466
      %v2485 = vunpack.c.l.b16 %v2467
      %v2486 = vunpack.c.h.b16 %v2466
      %v2487 = vunpack.c.h.b16 %v2467
      %v2488 = vunpack.c.l.b16 %v2468
      %v2489 = vunpack.c.l.b16 %v2469
      %v2490 = vunpack.c.h.b16 %v2468
      %v2491 = vunpack.c.h.b16 %v2469
      %v2492 = vunpack.c.l.b16 %v2470
      %v2493 = vunpack.c.l.b16 %v2471
      %v2494 = vunpack.c.h.b16 %v2470
      %v2495 = vunpack.c.h.b16 %v2471
      %v2496 = vpack.c.b16 %v2481, %v2480
      %v2497 = vpack.c.b16 %v2483, %v2482
      %v2498 = vpack.c.b16 %v2485, %v2484
      %v2499 = vpack.c.b16 %v2487, %v2486
      %v2500 = vpack.c.b16 %v2489, %v2488
      %v2501 = vpack.c.b16 %v2491, %v2490
      %v2502 = vpack.c.b16 %v2493, %v2492
      %v2503 = vpack.c.b16 %v2495, %v2494
      %2512 = vst [vmem:[#allocation2 + $0xc0] sm:$0xff] %v2496
      %2513 = vst [vmem:[#allocation2 + $0xc8] sm:$0xff] %v2497
      %2514 = vst [vmem:[#allocation2 + $0xd0] sm:$0xff] %v2498
      %2515 = vst [vmem:[#allocation2 + $0xd8] sm:$0xff] %v2499
      %2516 = vst [vmem:[#allocation2 + $0xe0] sm:$0xff] %v2500
      %2517 = vst [vmem:[#allocation2 + $0xe8] sm:$0xff] %v2501
      %2518 = vst [vmem:[#allocation2 + $0xf0] sm:$0xff] %v2502
      %2519 = vst [vmem:[#allocation2 + $0xf8] sm:$0xff] %v2503
      %v2520 = vunpack.c.l.b16 %v2060
      %v2521 = vunpack.c.l.b16 %v2061
      %v2522 = vunpack.c.h.b16 %v2060
      %v2523 = vunpack.c.h.b16 %v2061
      %v2524 = vunpack.c.l.b16 %v2062
      %v2525 = vunpack.c.l.b16 %v2063
      %v2526 = vunpack.c.h.b16 %v2062
      %v2527 = vunpack.c.h.b16 %v2063
      %v2528 = vunpack.c.l.b16 %v2064
      %v2529 = vunpack.c.l.b16 %v2065
      %v2530 = vunpack.c.h.b16 %v2064
      %v2531 = vunpack.c.h.b16 %v2065
      %v2532 = vunpack.c.l.b16 %v2066
      %v2533 = vunpack.c.l.b16 %v2067
      %v2534 = vunpack.c.h.b16 %v2066
      %v2535 = vunpack.c.h.b16 %v2067
      %v2536 = vpack.c.b16 %v2521, %v2520
      %v2537 = vpack.c.b16 %v2523, %v2522
      %v2538 = vpack.c.b16 %v2525, %v2524
      %v2539 = vpack.c.b16 %v2527, %v2526
      %v2540 = vpack.c.b16 %v2529, %v2528
      %v2541 = vpack.c.b16 %v2531, %v2530
      %v2542 = vpack.c.b16 %v2533, %v2532
      %v2543 = vpack.c.b16 %v2535, %v2534
      %2552 = vst [vmem:[#allocation2 + $0x100] sm:$0xff] %v2536
      %2553 = vst [vmem:[#allocation2 + $0x108] sm:$0xff] %v2537
      %2554 = vst [vmem:[#allocation2 + $0x110] sm:$0xff] %v2538
      %2555 = vst [vmem:[#allocation2 + $0x118] sm:$0xff] %v2539
      %2556 = vst [vmem:[#allocation2 + $0x120] sm:$0xff] %v2540
      %2557 = vst [vmem:[#allocation2 + $0x128] sm:$0xff] %v2541
      %2558 = vst [vmem:[#allocation2 + $0x130] sm:$0xff] %v2542
      %2559 = vst [vmem:[#allocation2 + $0x138] sm:$0xff] %v2543
      %2560 = vrot.lane.b32.xlu0 %v2060, 127
      %v2561 = vpop.permute.xlu0 %2560
      %2562 = vrot.lane.b32.xlu0 %v2061, 127
      %v2563 = vpop.permute.xlu0 %2562
      %2564 = vrot.lane.b32.xlu0 %v2062, 127
      %v2565 = vpop.permute.xlu0 %2564
      %2566 = vrot.lane.b32.xlu0 %v2063, 127
      %v2567 = vpop.permute.xlu0 %2566
      %2568 = vrot.lane.b32.xlu0 %v2064, 127
      %v2569 = vpop.permute.xlu0 %2568
      %2570 = vrot.lane.b32.xlu0 %v2065, 127
      %v2571 = vpop.permute.xlu0 %2570
      %2572 = vrot.lane.b32.xlu0 %v2066, 127
      %v2573 = vpop.permute.xlu0 %2572
      %2574 = vrot.lane.b32.xlu0 %v2067, 127
      %v2575 = vpop.permute.xlu0 %2574
      %v2576 = vsel %vm744, %v2561, %v2563
      %v2577 = vsel %vm744, %v2565, %v2567
      %v2578 = vsel %vm744, %v2569, %v2571
      %v2579 = vsel %vm744, %v2573, %v2575
      %v2586 = vsel %vm749, %v2563, %v2561
      %v2590 = vsel %vm749, %v2567, %v2565
      %v2594 = vsel %vm749, %v2571, %v2569
      %v2598 = vsel %vm749, %v2575, %v2573
      %v2600 = vsel %vm636, %v2314, %v2576
      %v2601 = vsel %vm637, %v2304, %v2586
      %v2602 = vsel %vm636, %v2318, %v2577
      %v2603 = vsel %vm637, %v2305, %v2590
      %v2604 = vsel %vm636, %v2322, %v2578
      %v2605 = vsel %vm637, %v2306, %v2594
      %v2606 = vsel %vm636, %v2326, %v2579
      %v2607 = vsel %vm637, %v2307, %v2598
      %v2616 = vunpack.c.l.b16 %v2600
      %v2617 = vunpack.c.l.b16 %v2601
      %v2618 = vunpack.c.h.b16 %v2600
      %v2619 = vunpack.c.h.b16 %v2601
      %v2620 = vunpack.c.l.b16 %v2602
      %v2621 = vunpack.c.l.b16 %v2603
      %v2622 = vunpack.c.h.b16 %v2602
      %v2623 = vunpack.c.h.b16 %v2603
      %v2624 = vunpack.c.l.b16 %v2604
      %v2625 = vunpack.c.l.b16 %v2605
      %v2626 = vunpack.c.h.b16 %v2604
      %v2627 = vunpack.c.h.b16 %v2605
      %v2628 = vunpack.c.l.b16 %v2606
      %v2629 = vunpack.c.l.b16 %v2607
      %v2630 = vunpack.c.h.b16 %v2606
      %v2631 = vunpack.c.h.b16 %v2607
      %v2632 = vpack.c.b16 %v2617, %v2616
      %v2633 = vpack.c.b16 %v2619, %v2618
      %v2634 = vpack.c.b16 %v2621, %v2620
      %v2635 = vpack.c.b16 %v2623, %v2622
      %v2636 = vpack.c.b16 %v2625, %v2624
      %v2637 = vpack.c.b16 %v2627, %v2626
      %v2638 = vpack.c.b16 %v2629, %v2628
      %v2639 = vpack.c.b16 %v2631, %v2630
      %2648 = vst [vmem:[#allocation2 + $0x140] sm:$0xff] %v2632
      %2649 = vst [vmem:[#allocation2 + $0x148] sm:$0xff] %v2633
      %2650 = vst [vmem:[#allocation2 + $0x150] sm:$0xff] %v2634
      %2651 = vst [vmem:[#allocation2 + $0x158] sm:$0xff] %v2635
      %2652 = vst [vmem:[#allocation2 + $0x160] sm:$0xff] %v2636
      %2653 = vst [vmem:[#allocation2 + $0x168] sm:$0xff] %v2637
      %2654 = vst [vmem:[#allocation2 + $0x170] sm:$0xff] %v2638
      %2655 = vst [vmem:[#allocation2 + $0x178] sm:$0xff] %v2639
      %2656 = vrot.lane.b32.xlu0 %v2060, 97
      %v2657 = vpop.permute.xlu0 %2656
      %2658 = vrot.lane.b32.xlu0 %v2061, 97
      %v2659 = vpop.permute.xlu0 %2658
      %2660 = vrot.lane.b32.xlu0 %v2062, 97
      %v2661 = vpop.permute.xlu0 %2660
      %2662 = vrot.lane.b32.xlu0 %v2063, 97
      %v2663 = vpop.permute.xlu0 %2662
      %2664 = vrot.lane.b32.xlu0 %v2064, 97
      %v2665 = vpop.permute.xlu0 %2664
      %2666 = vrot.lane.b32.xlu0 %v2065, 97
      %v2667 = vpop.permute.xlu0 %2666
      %2668 = vrot.lane.b32.xlu0 %v2066, 97
      %v2669 = vpop.permute.xlu0 %2668
      %2670 = vrot.lane.b32.xlu0 %v2067, 97
      %v2671 = vpop.permute.xlu0 %2670
      %v2672 = vsel %vm794, %v2657, %v2659
      %v2673 = vsel %vm794, %v2661, %v2663
      %v2674 = vsel %vm794, %v2665, %v2667
      %v2675 = vsel %vm794, %v2669, %v2671
      %v2682 = vsel %vm799, %v2659, %v2657
      %v2686 = vsel %vm799, %v2663, %v2661
      %v2690 = vsel %vm799, %v2667, %v2665
      %v2694 = vsel %vm799, %v2671, %v2669
      %v2696 = vsel %vm512, %v2672, %v2440
      %v2697 = vsel %vm513, %v2682, %v2450
      %v2698 = vsel %vm512, %v2673, %v2441
      %v2699 = vsel %vm513, %v2686, %v2454
      %v2700 = vsel %vm512, %v2674, %v2442
      %v2701 = vsel %vm513, %v2690, %v2458
      %v2702 = vsel %vm512, %v2675, %v2443
      %v2703 = vsel %vm513, %v2694, %v2462
      %v2712 = vunpack.c.l.b16 %v2696
      %v2713 = vunpack.c.l.b16 %v2697
      %v2714 = vunpack.c.h.b16 %v2696
      %v2715 = vunpack.c.h.b16 %v2697
      %v2716 = vunpack.c.l.b16 %v2698
      %v2717 = vunpack.c.l.b16 %v2699
      %v2718 = vunpack.c.h.b16 %v2698
      %v2719 = vunpack.c.h.b16 %v2699
      %v2720 = vunpack.c.l.b16 %v2700
      %v2721 = vunpack.c.l.b16 %v2701
      %v2722 = vunpack.c.h.b16 %v2700
      %v2723 = vunpack.c.h.b16 %v2701
      %v2724 = vunpack.c.l.b16 %v2702
      %v2725 = vunpack.c.l.b16 %v2703
      %v2726 = vunpack.c.h.b16 %v2702
      %v2727 = vunpack.c.h.b16 %v2703
      %v2728 = vpack.c.b16 %v2713, %v2712
      %v2729 = vpack.c.b16 %v2715, %v2714
      %v2730 = vpack.c.b16 %v2717, %v2716
      %v2731 = vpack.c.b16 %v2719, %v2718
      %v2732 = vpack.c.b16 %v2721, %v2720
      %v2733 = vpack.c.b16 %v2723, %v2722
      %v2734 = vpack.c.b16 %v2725, %v2724
      %v2735 = vpack.c.b16 %v2727, %v2726
      %2744 = vst [vmem:[#allocation2 + $0x180] sm:$0xff] %v2728
      %2745 = vst [vmem:[#allocation2 + $0x188] sm:$0xff] %v2729
      %2746 = vst [vmem:[#allocation2 + $0x190] sm:$0xff] %v2730
      %2747 = vst [vmem:[#allocation2 + $0x198] sm:$0xff] %v2731
      %2748 = vst [vmem:[#allocation2 + $0x1a0] sm:$0xff] %v2732
      %2749 = vst [vmem:[#allocation2 + $0x1a8] sm:$0xff] %v2733
      %2750 = vst [vmem:[#allocation2 + $0x1b0] sm:$0xff] %v2734
      %2751 = vst [vmem:[#allocation2 + $0x1b8] sm:$0xff] %v2735
      %2752 = vrot.lane.b32.xlu0 %v2060, 112
      %v2753 = vpop.permute.xlu0 %2752
      %2754 = vrot.lane.b32.xlu0 %v2061, 112
      %v2755 = vpop.permute.xlu0 %2754
      %2756 = vrot.lane.b32.xlu0 %v2062, 112
      %v2757 = vpop.permute.xlu0 %2756
      %2758 = vrot.lane.b32.xlu0 %v2063, 112
      %v2759 = vpop.permute.xlu0 %2758
      %2760 = vrot.lane.b32.xlu0 %v2064, 112
      %v2761 = vpop.permute.xlu0 %2760
      %2762 = vrot.lane.b32.xlu0 %v2065, 112
      %v2763 = vpop.permute.xlu0 %2762
      %2764 = vrot.lane.b32.xlu0 %v2066, 112
      %v2765 = vpop.permute.xlu0 %2764
      %2766 = vrot.lane.b32.xlu0 %v2067, 112
      %v2767 = vpop.permute.xlu0 %2766
      %v2768 = vsel %vm844, %v2753, %v2755
      %v2769 = vsel %vm844, %v2757, %v2759
      %v2770 = vsel %vm844, %v2761, %v2763
      %v2771 = vsel %vm844, %v2765, %v2767
      %v2774 = vsel %vm847, %v2755, %v2753
      %v2777 = vsel %vm847, %v2759, %v2757
      %v2780 = vsel %vm847, %v2763, %v2761
      %v2783 = vsel %vm847, %v2767, %v2765
      %v2788 = vunpack.c.l.b16 %v2768
      %v2789 = vunpack.c.l.b16 %v2774
      %v2790 = vunpack.c.h.b16 %v2768
      %v2791 = vunpack.c.h.b16 %v2774
      %v2792 = vunpack.c.l.b16 %v2769
      %v2793 = vunpack.c.l.b16 %v2777
      %v2794 = vunpack.c.h.b16 %v2769
      %v2795 = vunpack.c.h.b16 %v2777
      %v2796 = vunpack.c.l.b16 %v2770
      %v2797 = vunpack.c.l.b16 %v2780
      %v2798 = vunpack.c.h.b16 %v2770
      %v2799 = vunpack.c.h.b16 %v2780
      %v2800 = vunpack.c.l.b16 %v2771
      %v2801 = vunpack.c.l.b16 %v2783
      %v2802 = vunpack.c.h.b16 %v2771
      %v2803 = vunpack.c.h.b16 %v2783
      %v2804 = vpack.c.b16 %v2789, %v2788
      %v2805 = vpack.c.b16 %v2791, %v2790
      %v2806 = vpack.c.b16 %v2793, %v2792
      %v2807 = vpack.c.b16 %v2795, %v2794
      %v2808 = vpack.c.b16 %v2797, %v2796
      %v2809 = vpack.c.b16 %v2799, %v2798
      %v2810 = vpack.c.b16 %v2801, %v2800
      %v2811 = vpack.c.b16 %v2803, %v2802
      %2820 = vst [vmem:[#allocation2 + $0x1c0] sm:$0xff] %v2804
      %2821 = vst [vmem:[#allocation2 + $0x1c8] sm:$0xff] %v2805
      %2822 = vst [vmem:[#allocation2 + $0x1d0] sm:$0xff] %v2806
      %2823 = vst [vmem:[#allocation2 + $0x1d8] sm:$0xff] %v2807
      %2824 = vst [vmem:[#allocation2 + $0x1e0] sm:$0xff] %v2808
      %2825 = vst [vmem:[#allocation2 + $0x1e8] sm:$0xff] %v2809
      %2826 = vst [vmem:[#allocation2 + $0x1f0] sm:$0xff] %v2810
      %2827 = vst [vmem:[#allocation2 + $0x1f8] sm:$0xff] %v2811
      %2828 = vrot.lane.b32.xlu0 %v2060, 111
      %v2829 = vpop.permute.xlu0 %2828
      %2830 = vrot.lane.b32.xlu0 %v2061, 111
      %v2831 = vpop.permute.xlu0 %2830
      %2832 = vrot.lane.b32.xlu0 %v2062, 111
      %v2833 = vpop.permute.xlu0 %2832
      %2834 = vrot.lane.b32.xlu0 %v2063, 111
      %v2835 = vpop.permute.xlu0 %2834
      %2836 = vrot.lane.b32.xlu0 %v2064, 111
      %v2837 = vpop.permute.xlu0 %2836
      %2838 = vrot.lane.b32.xlu0 %v2065, 111
      %v2839 = vpop.permute.xlu0 %2838
      %2840 = vrot.lane.b32.xlu0 %v2066, 111
      %v2841 = vpop.permute.xlu0 %2840
      %2842 = vrot.lane.b32.xlu0 %v2067, 111
      %v2843 = vpop.permute.xlu0 %2842
      %v2844 = vsel %vm884, %v2829, %v2831
      %v2845 = vsel %vm884, %v2833, %v2835
      %v2846 = vsel %vm884, %v2837, %v2839
      %v2847 = vsel %vm884, %v2841, %v2843
      %v2854 = vsel %vm889, %v2831, %v2829
      %v2858 = vsel %vm889, %v2835, %v2833
      %v2862 = vsel %vm889, %v2839, %v2837
      %v2866 = vsel %vm889, %v2843, %v2841
      %v2868 = vsel %vm636, %v2576, %v2844
      %v2869 = vsel %vm637, %v2586, %v2854
      %v2870 = vsel %vm636, %v2577, %v2845
      %v2871 = vsel %vm637, %v2590, %v2858
      %v2872 = vsel %vm636, %v2578, %v2846
      %v2873 = vsel %vm637, %v2594, %v2862
      %v2874 = vsel %vm636, %v2579, %v2847
      %v2875 = vsel %vm637, %v2598, %v2866
      %v2884 = vunpack.c.l.b16 %v2868
      %v2885 = vunpack.c.l.b16 %v2869
      %v2886 = vunpack.c.h.b16 %v2868
      %v2887 = vunpack.c.h.b16 %v2869
      %v2888 = vunpack.c.l.b16 %v2870
      %v2889 = vunpack.c.l.b16 %v2871
      %v2890 = vunpack.c.h.b16 %v2870
      %v2891 = vunpack.c.h.b16 %v2871
      %v2892 = vunpack.c.l.b16 %v2872
      %v2893 = vunpack.c.l.b16 %v2873
      %v2894 = vunpack.c.h.b16 %v2872
      %v2895 = vunpack.c.h.b16 %v2873
      %v2896 = vunpack.c.l.b16 %v2874
      %v2897 = vunpack.c.l.b16 %v2875
      %v2898 = vunpack.c.h.b16 %v2874
      %v2899 = vunpack.c.h.b16 %v2875
      %v2900 = vpack.c.b16 %v2885, %v2884
      %v2901 = vpack.c.b16 %v2887, %v2886
      %v2902 = vpack.c.b16 %v2889, %v2888
      %v2903 = vpack.c.b16 %v2891, %v2890
      %v2904 = vpack.c.b16 %v2893, %v2892
      %v2905 = vpack.c.b16 %v2895, %v2894
      %v2906 = vpack.c.b16 %v2897, %v2896
      %v2907 = vpack.c.b16 %v2899, %v2898
      %2916 = vst [vmem:[#allocation2 + $0x200] sm:$0xff] %v2900
      %2917 = vst [vmem:[#allocation2 + $0x208] sm:$0xff] %v2901
      %2918 = vst [vmem:[#allocation2 + $0x210] sm:$0xff] %v2902
      %2919 = vst [vmem:[#allocation2 + $0x218] sm:$0xff] %v2903
      %2920 = vst [vmem:[#allocation2 + $0x220] sm:$0xff] %v2904
      %2921 = vst [vmem:[#allocation2 + $0x228] sm:$0xff] %v2905
      %2922 = vst [vmem:[#allocation2 + $0x230] sm:$0xff] %v2906
      %2923 = vst [vmem:[#allocation2 + $0x238] sm:$0xff] %v2907
      %v2924 = vld [vmem:[%s7] sm:$0xff]
      %v2925 = vld [vmem:[%s7 + $0x8] sm:$0xff]
      %v2926 = vld [vmem:[%s7 + $0x10] sm:$0xf]
      %v2927 = vld [vmem:[%s7 + $0x14] sm:$0xff]
      %v2928 = vld [vmem:[%s7 + $0x1c] sm:$0xff]
      %v2929 = vld [vmem:[%s7 + $0x24] sm:$0xf]
      %v2930 = vld [vmem:[%s7 + $0x28] sm:$0xff]
      %v2931 = vld [vmem:[%s7 + $0x30] sm:$0xff]
      %v2932 = vld [vmem:[%s7 + $0x38] sm:$0xf]
      %v2933 = vld [vmem:[%s7 + $0x3c] sm:$0xff]
      %v2934 = vld [vmem:[%s7 + $0x44] sm:$0xff]
      %v2935 = vld [vmem:[%s7 + $0x4c] sm:$0xf]
      %v2936 = vld [vmem:[#allocation2] sm:$0xff]
      %v2937 = vld [vmem:[#allocation2 + $0x8] sm:$0xff]
      %v2938 = vld [vmem:[#allocation2 + $0x10] sm:$0xff]
      %v2939 = vld [vmem:[#allocation2 + $0x18] sm:$0xff]
      %v2940 = vld [vmem:[#allocation2 + $0x20] sm:$0xff]
      %v2941 = vld [vmem:[#allocation2 + $0x28] sm:$0xff]
      %v2942 = vld [vmem:[#allocation2 + $0x30] sm:$0xff]
      %v2943 = vld [vmem:[#allocation2 + $0x38] sm:$0xff]
      %v2944 = vld [vmem:[#allocation2 + $0x40] sm:$0xff]
      %v2945 = vld [vmem:[#allocation2 + $0x48] sm:$0xff]
      %v2946 = vld [vmem:[#allocation2 + $0x50] sm:$0xff]
      %v2947 = vld [vmem:[#allocation2 + $0x58] sm:$0xff]
      %v2948 = vld [vmem:[#allocation2 + $0x60] sm:$0xff]
      %v2949 = vld [vmem:[#allocation2 + $0x68] sm:$0xff]
      %v2950 = vld [vmem:[#allocation2 + $0x70] sm:$0xff]
      %v2951 = vld [vmem:[#allocation2 + $0x78] sm:$0xff]
      %v2952 = vld [vmem:[#allocation2 + $0x80] sm:$0xff]
      %v2953 = vld [vmem:[#allocation2 + $0x88] sm:$0xff]
      %v2954 = vld [vmem:[#allocation2 + $0x90] sm:$0xff]
      %v2955 = vld [vmem:[#allocation2 + $0x98] sm:$0xff]
      %v2956 = vld [vmem:[#allocation2 + $0xa0] sm:$0xff]
      %v2957 = vld [vmem:[#allocation2 + $0xa8] sm:$0xff]
      %v2958 = vld [vmem:[#allocation2 + $0xb0] sm:$0xff]
      %v2959 = vld [vmem:[#allocation2 + $0xb8] sm:$0xff]
      %v2960 = vld [vmem:[#allocation2 + $0xc0] sm:$0xff]
      %v2961 = vld [vmem:[#allocation2 + $0xc8] sm:$0xff]
      %v2962 = vld [vmem:[#allocation2 + $0xd0] sm:$0xff]
      %v2963 = vld [vmem:[#allocation2 + $0xd8] sm:$0xff]
      %v2964 = vld [vmem:[#allocation2 + $0xe0] sm:$0xff]
      %v2965 = vld [vmem:[#allocation2 + $0xe8] sm:$0xff]
      %v2966 = vld [vmem:[#allocation2 + $0xf0] sm:$0xff]
      %v2967 = vld [vmem:[#allocation2 + $0xf8] sm:$0xff]
      %v2968 = vld [vmem:[#allocation2 + $0x100] sm:$0xff]
      %v2969 = vld [vmem:[#allocation2 + $0x108] sm:$0xff]
      %v2970 = vld [vmem:[#allocation2 + $0x110] sm:$0xff]
      %v2971 = vld [vmem:[#allocation2 + $0x118] sm:$0xff]
      %v2972 = vld [vmem:[#allocation2 + $0x120] sm:$0xff]
      %v2973 = vld [vmem:[#allocation2 + $0x128] sm:$0xff]
      %v2974 = vld [vmem:[#allocation2 + $0x130] sm:$0xff]
      %v2975 = vld [vmem:[#allocation2 + $0x138] sm:$0xff]
      %v2976 = vld [vmem:[#allocation2 + $0x140] sm:$0xff]
      %v2977 = vld [vmem:[#allocation2 + $0x148] sm:$0xff]
      %v2978 = vld [vmem:[#allocation2 + $0x150] sm:$0xff]
      %v2979 = vld [vmem:[#allocation2 + $0x158] sm:$0xff]
      %v2980 = vld [vmem:[#allocation2 + $0x160] sm:$0xff]
      %v2981 = vld [vmem:[#allocation2 + $0x168] sm:$0xff]
      %v2982 = vld [vmem:[#allocation2 + $0x170] sm:$0xff]
      %v2983 = vld [vmem:[#allocation2 + $0x178] sm:$0xff]
      %v2984 = vld [vmem:[#allocation2 + $0x180] sm:$0xff]
      %v2985 = vld [vmem:[#allocation2 + $0x188] sm:$0xff]
      %v2986 = vld [vmem:[#allocation2 + $0x190] sm:$0xff]
      %v2987 = vld [vmem:[#allocation2 + $0x198] sm:$0xff]
      %v2988 = vld [vmem:[#allocation2 + $0x1a0] sm:$0xff]
      %v2989 = vld [vmem:[#allocation2 + $0x1a8] sm:$0xff]
      %v2990 = vld [vmem:[#allocation2 + $0x1b0] sm:$0xff]
      %v2991 = vld [vmem:[#allocation2 + $0x1b8] sm:$0xff]
      %v2992 = vld [vmem:[#allocation2 + $0x1c0] sm:$0xff]
      %v2993 = vld [vmem:[#allocation2 + $0x1c8] sm:$0xff]
      %v2994 = vld [vmem:[#allocation2 + $0x1d0] sm:$0xff]
      %v2995 = vld [vmem:[#allocation2 + $0x1d8] sm:$0xff]
      %v2996 = vld [vmem:[#allocation2 + $0x1e0] sm:$0xff]
      %v2997 = vld [vmem:[#allocation2 + $0x1e8] sm:$0xff]
      %v2998 = vld [vmem:[#allocation2 + $0x1f0] sm:$0xff]
      %v2999 = vld [vmem:[#allocation2 + $0x1f8] sm:$0xff]
      %v3000 = vld [vmem:[#allocation2 + $0x200] sm:$0xff]
      %v3001 = vld [vmem:[#allocation2 + $0x208] sm:$0xff]
      %v3002 = vld [vmem:[#allocation2 + $0x210] sm:$0xff]
      %v3003 = vld [vmem:[#allocation2 + $0x218] sm:$0xff]
      %v3004 = vld [vmem:[#allocation2 + $0x220] sm:$0xff]
      %v3005 = vld [vmem:[#allocation2 + $0x228] sm:$0xff]
      %v3006 = vld [vmem:[#allocation2 + $0x230] sm:$0xff]
      %v3007 = vld [vmem:[#allocation2 + $0x238] sm:$0xff]
      %v3008 = vld [vmem:[%s8] sm:$0xff]
      %v3009 = vld [vmem:[%s8 + $0x8] sm:$0xff]
      %v3010 = vld [vmem:[%s8 + $0x10] sm:$0xff]
      %v3011 = vld [vmem:[%s8 + $0x18] sm:$0xff]
      %3013 = vset.pattern.permute.xlu0 0
      %3014 = vperm.xlu0 %3013, %v3008
      %v3015 = vpop.permute.xlu0 %3014
      %3018 = vset.pattern.permute.xlu0 0
      %3019 = vperm.xlu0 %3018, %v3009
      %v3020 = vpop.permute.xlu0 %3019
      %3023 = vset.pattern.permute.xlu0 0
      %3024 = vperm.xlu0 %3023, %v3010
      %v3025 = vpop.permute.xlu0 %3024
      %3028 = vset.pattern.permute.xlu0 0
      %3029 = vperm.xlu0 %3028, %v3011
      %v3030 = vpop.permute.xlu0 %3029
      %v3044 = vunpack.c.l.b16 %v2924
      %v3045 = vunpack.c.h.b16 %v2924
      %v3046 = vunpack.c.l.b16 %v2925
      %v3047 = vunpack.c.h.b16 %v2925
      %v3048 = vunpack.c.l.b16 %v2926
      %v3049 = vunpack.c.l.b16 %v2927
      %v3050 = vunpack.c.h.b16 %v2927
      %v3051 = vunpack.c.l.b16 %v2928
      %v3052 = vunpack.c.h.b16 %v2928
      %v3053 = vunpack.c.l.b16 %v2929
      %v3054 = vunpack.c.l.b16 %v2930
      %v3055 = vunpack.c.h.b16 %v2930
      %v3056 = vunpack.c.l.b16 %v2931
      %v3057 = vunpack.c.h.b16 %v2931
      %v3058 = vunpack.c.l.b16 %v2932
      %v3059 = vunpack.c.l.b16 %v2933
      %v3060 = vunpack.c.h.b16 %v2933
      %v3061 = vunpack.c.l.b16 %v2934
      %v3062 = vunpack.c.h.b16 %v2934
      %v3063 = vunpack.c.l.b16 %v2935
      %v3064 = vpack.c.b16 %v3049, %v3044
      %v3065 = vpack.c.b16 %v3050, %v3045
      %v3066 = vpack.c.b16 %v3051, %v3046
      %v3067 = vpack.c.b16 %v3052, %v3047
      %v3068 = vpack.c.b16 %v3053, %v3048
      %v3069 = vpack.c.b16 %v3059, %v3054
      %v3070 = vpack.c.b16 %v3060, %v3055
      %v3071 = vpack.c.b16 %v3061, %v3056
      %v3072 = vpack.c.b16 %v3062, %v3057
      %v3073 = vpack.c.b16 %v3063, %v3058
      %v3154 = vunpack.c.l.b16 %v2936
      %v3155 = vunpack.c.h.b16 %v2936
      %v3156 = vunpack.c.l.b16 %v2937
      %v3157 = vunpack.c.h.b16 %v2937
      %v3158 = vunpack.c.l.b16 %v2938
      %v3159 = vunpack.c.h.b16 %v2938
      %v3160 = vunpack.c.l.b16 %v2939
      %v3161 = vunpack.c.h.b16 %v2939
      %v3162 = vunpack.c.l.b16 %v2940
      %v3163 = vunpack.c.h.b16 %v2940
      %v3164 = vunpack.c.l.b16 %v2941
      %v3165 = vunpack.c.h.b16 %v2941
      %v3166 = vunpack.c.l.b16 %v2942
      %v3167 = vunpack.c.h.b16 %v2942
      %v3168 = vunpack.c.l.b16 %v2943
      %v3169 = vunpack.c.h.b16 %v2943
      %v3170 = vunpack.c.l.b16 %v2944
      %v3171 = vunpack.c.h.b16 %v2944
      %v3172 = vunpack.c.l.b16 %v2945
      %v3173 = vunpack.c.h.b16 %v2945
      %v3174 = vunpack.c.l.b16 %v2946
      %v3175 = vunpack.c.h.b16 %v2946
      %v3176 = vunpack.c.l.b16 %v2947
      %v3177 = vunpack.c.h.b16 %v2947
      %v3178 = vunpack.c.l.b16 %v2948
      %v3179 = vunpack.c.h.b16 %v2948
      %v3180 = vunpack.c.l.b16 %v2949
      %v3181 = vunpack.c.h.b16 %v2949
      %v3182 = vunpack.c.l.b16 %v2950
      %v3183 = vunpack.c.h.b16 %v2950
      %v3184 = vunpack.c.l.b16 %v2951
      %v3185 = vunpack.c.h.b16 %v2951
      %v3186 = vunpack.c.l.b16 %v2952
      %v3187 = vunpack.c.h.b16 %v2952
      %v3188 = vunpack.c.l.b16 %v2953
      %v3189 = vunpack.c.h.b16 %v2953
      %v3190 = vunpack.c.l.b16 %v2954
      %v3191 = vunpack.c.h.b16 %v2954
      %v3192 = vunpack.c.l.b16 %v2955
      %v3193 = vunpack.c.h.b16 %v2955
      %v3194 = vunpack.c.l.b16 %v2956
      %v3195 = vunpack.c.h.b16 %v2956
      %v3196 = vunpack.c.l.b16 %v2957
      %v3197 = vunpack.c.h.b16 %v2957
      %v3198 = vunpack.c.l.b16 %v2958
      %v3199 = vunpack.c.h.b16 %v2958
      %v3200 = vunpack.c.l.b16 %v2959
      %v3201 = vunpack.c.h.b16 %v2959
      %v3202 = vunpack.c.l.b16 %v2960
      %v3203 = vunpack.c.h.b16 %v2960
      %v3204 = vunpack.c.l.b16 %v2961
      %v3205 = vunpack.c.h.b16 %v2961
      %v3206 = vunpack.c.l.b16 %v2962
      %v3207 = vunpack.c.h.b16 %v2962
      %v3208 = vunpack.c.l.b16 %v2963
      %v3209 = vunpack.c.h.b16 %v2963
      %v3210 = vunpack.c.l.b16 %v2964
      %v3211 = vunpack.c.h.b16 %v2964
      %v3212 = vunpack.c.l.b16 %v2965
      %v3213 = vunpack.c.h.b16 %v2965
      %v3214 = vunpack.c.l.b16 %v2966
      %v3215 = vunpack.c.h.b16 %v2966
      %v3216 = vunpack.c.l.b16 %v2967
      %v3217 = vunpack.c.h.b16 %v2967
      %v3218 = vunpack.c.l.b16 %v2968
      %v3219 = vunpack.c.h.b16 %v2968
      %v3220 = vunpack.c.l.b16 %v2969
      %v3221 = vunpack.c.h.b16 %v2969
      %v3222 = vunpack.c.l.b16 %v2970
      %v3223 = vunpack.c.h.b16 %v2970
      %v3224 = vunpack.c.l.b16 %v2971
      %v3225 = vunpack.c.h.b16 %v2971
      %v3226 = vunpack.c.l.b16 %v2972
      %v3227 = vunpack.c.h.b16 %v2972
      %v3228 = vunpack.c.l.b16 %v2973
      %v3229 = vunpack.c.h.b16 %v2973
      %v3230 = vunpack.c.l.b16 %v2974
      %v3231 = vunpack.c.h.b16 %v2974
      %v3232 = vunpack.c.l.b16 %v2975
      %v3233 = vunpack.c.h.b16 %v2975
      %v3234 = vunpack.c.l.b16 %v2976
      %v3235 = vunpack.c.h.b16 %v2976
      %v3236 = vunpack.c.l.b16 %v2977
      %v3237 = vunpack.c.h.b16 %v2977
      %v3238 = vunpack.c.l.b16 %v2978
      %v3239 = vunpack.c.h.b16 %v2978
      %v3240 = vunpack.c.l.b16 %v2979
      %v3241 = vunpack.c.h.b16 %v2979
      %v3242 = vunpack.c.l.b16 %v2980
      %v3243 = vunpack.c.h.b16 %v2980
      %v3244 = vunpack.c.l.b16 %v2981
      %v3245 = vunpack.c.h.b16 %v2981
      %v3246 = vunpack.c.l.b16 %v2982
      %v3247 = vunpack.c.h.b16 %v2982
      %v3248 = vunpack.c.l.b16 %v2983
      %v3249 = vunpack.c.h.b16 %v2983
      %v3250 = vunpack.c.l.b16 %v2984
      %v3251 = vunpack.c.h.b16 %v2984
      %v3252 = vunpack.c.l.b16 %v2985
      %v3253 = vunpack.c.h.b16 %v2985
      %v3254 = vunpack.c.l.b16 %v2986
      %v3255 = vunpack.c.h.b16 %v2986
      %v3256 = vunpack.c.l.b16 %v2987
      %v3257 = vunpack.c.h.b16 %v2987
      %v3258 = vunpack.c.l.b16 %v2988
      %v3259 = vunpack.c.h.b16 %v2988
      %v3260 = vunpack.c.l.b16 %v2989
      %v3261 = vunpack.c.h.b16 %v2989
      %v3262 = vunpack.c.l.b16 %v2990
      %v3263 = vunpack.c.h.b16 %v2990
      %v3264 = vunpack.c.l.b16 %v2991
      %v3265 = vunpack.c.h.b16 %v2991
      %v3266 = vunpack.c.l.b16 %v2992
      %v3267 = vunpack.c.h.b16 %v2992
      %v3268 = vunpack.c.l.b16 %v2993
      %v3269 = vunpack.c.h.b16 %v2993
      %v3270 = vunpack.c.l.b16 %v2994
      %v3271 = vunpack.c.h.b16 %v2994
      %v3272 = vunpack.c.l.b16 %v2995
      %v3273 = vunpack.c.h.b16 %v2995
      %v3274 = vunpack.c.l.b16 %v2996
      %v3275 = vunpack.c.h.b16 %v2996
      %v3276 = vunpack.c.l.b16 %v2997
      %v3277 = vunpack.c.h.b16 %v2997
      %v3278 = vunpack.c.l.b16 %v2998
      %v3279 = vunpack.c.h.b16 %v2998
      %v3280 = vunpack.c.l.b16 %v2999
      %v3281 = vunpack.c.h.b16 %v2999
      %v3282 = vunpack.c.l.b16 %v3000
      %v3283 = vunpack.c.h.b16 %v3000
      %v3284 = vunpack.c.l.b16 %v3001
      %v3285 = vunpack.c.h.b16 %v3001
      %v3286 = vunpack.c.l.b16 %v3002
      %v3287 = vunpack.c.h.b16 %v3002
      %v3288 = vunpack.c.l.b16 %v3003
      %v3289 = vunpack.c.h.b16 %v3003
      %v3290 = vunpack.c.l.b16 %v3004
      %v3291 = vunpack.c.h.b16 %v3004
      %v3292 = vunpack.c.l.b16 %v3005
      %v3293 = vunpack.c.h.b16 %v3005
      %v3294 = vunpack.c.l.b16 %v3006
      %v3295 = vunpack.c.h.b16 %v3006
      %v3296 = vunpack.c.l.b16 %v3007
      %v3297 = vunpack.c.h.b16 %v3007
      %v3298 = vpack.c.b16 %v3156, %v3154
      %v3299 = vpack.c.b16 %v3157, %v3155
      %v3300 = vpack.c.b16 %v3160, %v3158
      %v3301 = vpack.c.b16 %v3161, %v3159
      %v3302 = vpack.c.b16 %v3164, %v3162
      %v3303 = vpack.c.b16 %v3165, %v3163
      %v3304 = vpack.c.b16 %v3168, %v3166
      %v3305 = vpack.c.b16 %v3169, %v3167
      %v3306 = vpack.c.b16 %v3172, %v3170
      %v3307 = vpack.c.b16 %v3173, %v3171
      %v3308 = vpack.c.b16 %v3176, %v3174
      %v3309 = vpack.c.b16 %v3177, %v3175
      %v3310 = vpack.c.b16 %v3180, %v3178
      %v3311 = vpack.c.b16 %v3181, %v3179
      %v3312 = vpack.c.b16 %v3184, %v3182
      %v3313 = vpack.c.b16 %v3185, %v3183
      %v3314 = vpack.c.b16 %v3188, %v3186
      %v3315 = vpack.c.b16 %v3189, %v3187
      %v3316 = vpack.c.b16 %v3192, %v3190
      %v3317 = vpack.c.b16 %v3193, %v3191
      %v3318 = vpack.c.b16 %v3196, %v3194
      %v3319 = vpack.c.b16 %v3197, %v3195
      %v3320 = vpack.c.b16 %v3200, %v3198
      %v3321 = vpack.c.b16 %v3201, %v3199
      %v3322 = vpack.c.b16 %v3204, %v3202
      %v3323 = vpack.c.b16 %v3205, %v3203
      %v3324 = vpack.c.b16 %v3208, %v3206
      %v3325 = vpack.c.b16 %v3209, %v3207
      %v3326 = vpack.c.b16 %v3212, %v3210
      %v3327 = vpack.c.b16 %v3213, %v3211
      %v3328 = vpack.c.b16 %v3216, %v3214
      %v3329 = vpack.c.b16 %v3217, %v3215
      %v3330 = vpack.c.b16 %v3220, %v3218
      %v3331 = vpack.c.b16 %v3221, %v3219
      %v3332 = vpack.c.b16 %v3224, %v3222
      %v3333 = vpack.c.b16 %v3225, %v3223
      %v3334 = vpack.c.b16 %v3228, %v3226
      %v3335 = vpack.c.b16 %v3229, %v3227
      %v3336 = vpack.c.b16 %v3232, %v3230
      %v3337 = vpack.c.b16 %v3233, %v3231
      %v3338 = vpack.c.b16 %v3236, %v3234
      %v3339 = vpack.c.b16 %v3237, %v3235
      %v3340 = vpack.c.b16 %v3240, %v3238
      %v3341 = vpack.c.b16 %v3241, %v3239
      %v3342 = vpack.c.b16 %v3244, %v3242
      %v3343 = vpack.c.b16 %v3245, %v3243
      %v3344 = vpack.c.b16 %v3248, %v3246
      %v3345 = vpack.c.b16 %v3249, %v3247
      %v3346 = vpack.c.b16 %v3252, %v3250
      %v3347 = vpack.c.b16 %v3253, %v3251
      %v3348 = vpack.c.b16 %v3256, %v3254
      %v3349 = vpack.c.b16 %v3257, %v3255
      %v3350 = vpack.c.b16 %v3260, %v3258
      %v3351 = vpack.c.b16 %v3261, %v3259
      %v3352 = vpack.c.b16 %v3264, %v3262
      %v3353 = vpack.c.b16 %v3265, %v3263
      %v3354 = vpack.c.b16 %v3268, %v3266
      %v3355 = vpack.c.b16 %v3269, %v3267
      %v3356 = vpack.c.b16 %v3272, %v3270
      %v3357 = vpack.c.b16 %v3273, %v3271
      %v3358 = vpack.c.b16 %v3276, %v3274
      %v3359 = vpack.c.b16 %v3277, %v3275
      %v3360 = vpack.c.b16 %v3280, %v3278
      %v3361 = vpack.c.b16 %v3281, %v3279
      %v3362 = vpack.c.b16 %v3284, %v3282
      %v3363 = vpack.c.b16 %v3285, %v3283
      %v3364 = vpack.c.b16 %v3288, %v3286
      %v3365 = vpack.c.b16 %v3289, %v3287
      %v3366 = vpack.c.b16 %v3292, %v3290
      %v3367 = vpack.c.b16 %v3293, %v3291
      %v3368 = vpack.c.b16 %v3296, %v3294
      %v3369 = vpack.c.b16 %v3297, %v3295
      %v3443 = vsel %vm1473, %v3068, 0
      %v3446 = vsel %vm1473, %v3073, 0
      %3448 = vmatprep.subr.bf16.mxu0 %v3313
      %3449 = vmatpush1.bf16.msra.mxu0 %v3312
      %3450 = vmatprep.subr.bf16.mxu0 %v3311
      %3451 = vmatpush1.bf16.msra.mxu0 %v3310
      %3452 = vmatprep.subr.bf16.mxu0 %v3309
      %3453 = vmatpush1.bf16.msra.mxu0 %v3308
      %3454 = vmatprep.subr.bf16.mxu0 %v3307
      %3455 = vmatpush1.bf16.msra.mxu0 %v3306
      %3456 = vmatprep.subr.bf16.mxu0 %v3305
      %3457 = vmatpush1.bf16.msra.mxu0 %v3304
      %3458 = vmatprep.subr.bf16.mxu0 %v3303
      %3459 = vmatpush1.bf16.msra.mxu0 %v3302
      %3460 = vmatprep.subr.bf16.mxu0 %v3301
      %3461 = vmatpush1.bf16.msra.mxu0 %v3300
      %3462 = vmatprep.subr.bf16.mxu0 %v3299
      %3463 = vmatpush1.bf16.msra.mxu0 %v3298
      %3464 = vmatprep.subr.bf16.mxu0 %v3329
      %3465 = vmatpush2.bf16.msra.mxu0 %v3328
      %3466 = vmatprep.subr.bf16.mxu0 %v3327
      %3467 = vmatpush2.bf16.msra.mxu0 %v3326
      %3468 = vmatprep.subr.bf16.mxu0 %v3325
      %3469 = vmatpush2.bf16.msra.mxu0 %v3324
      %3470 = vmatprep.subr.bf16.mxu0 %v3323
      %3471 = vmatpush2.bf16.msra.mxu0 %v3322
      %3472 = vmatprep.subr.bf16.mxu0 %v3321
      %3473 = vmatpush2.bf16.msra.mxu0 %v3320
      %3474 = vmatprep.subr.bf16.mxu0 %v3319
      %3475 = vmatpush2.bf16.msra.mxu0 %v3318
      %3476 = vmatprep.subr.bf16.mxu0 %v3317
      %3477 = vmatpush2.bf16.msra.mxu0 %v3316
      %3478 = vmatprep.subr.bf16.mxu0 %v3315
      %3479 = vmatpush2.bf16.msra.mxu0 %v3314
      %3480 = vmatprep.mubr.bf16.mxu0 %v3065
      %3481 = vmatmul.mubr.bf16.gmra.mxu0 %v3064
      %v3482 = vpop.f32.mrf.mxu0
      %v3483 = vadd.f32 %v3015, %v3482
      %v3484 = vpop.f32.mrf.mxu0
      %v3485 = vadd.f32 %v3015, %v3484
      %v3486 = vpop.f32.mrf.mxu0
      %v3487 = vadd.f32 %v3020, %v3486
      %v3488 = vpop.f32.mrf.mxu0
      %v3489 = vadd.f32 %v3020, %v3488
      %3490 = vmatprep.mubr.bf16.mxu0 %v3070
      %3491 = vmatmul.mubr.bf16.gmra.mxu0 %v3069
      %v3492 = vpop.f32.mrf.mxu0
      %v3493 = vadd.f32 %v3025, %v3492
      %v3494 = vpop.f32.mrf.mxu0
      %v3495 = vadd.f32 %v3025, %v3494
      %v3496 = vpop.f32.mrf.mxu0
      %v3497 = vadd.f32 %v3030, %v3496
      %v3498 = vpop.f32.mrf.mxu0
      %v3499 = vadd.f32 %v3030, %v3498
      %3500 = vdwg.mxu0
      %3501 = vmatprep.subr.bf16.mxu0 %v3345
      %3502 = vmatpush1.bf16.msra.mxu0 %v3344
      %3503 = vmatprep.subr.bf16.mxu0 %v3343
      %3504 = vmatpush1.bf16.msra.mxu0 %v3342
      %3505 = vmatprep.subr.bf16.mxu0 %v3341
      %3506 = vmatpush1.bf16.msra.mxu0 %v3340
      %3507 = vmatprep.subr.bf16.mxu0 %v3339
      %3508 = vmatpush1.bf16.msra.mxu0 %v3338
      %3509 = vmatprep.subr.bf16.mxu0 %v3337
      %3510 = vmatpush1.bf16.msra.mxu0 %v3336
      %3511 = vmatprep.subr.bf16.mxu0 %v3335
      %3512 = vmatpush1.bf16.msra.mxu0 %v3334
      %3513 = vmatprep.subr.bf16.mxu0 %v3333
      %3514 = vmatpush1.bf16.msra.mxu0 %v3332
      %3515 = vmatprep.subr.bf16.mxu0 %v3331
      %3516 = vmatpush1.bf16.msra.mxu0 %v3330
      %3517 = vmatprep.subr.bf16.mxu0 %v3361
      %3518 = vmatpush2.bf16.msra.mxu0 %v3360
      %3519 = vmatprep.subr.bf16.mxu0 %v3359
      %3520 = vmatpush2.bf16.msra.mxu0 %v3358
      %3521 = vmatprep.subr.bf16.mxu0 %v3357
      %3522 = vmatpush2.bf16.msra.mxu0 %v3356
      %3523 = vmatprep.subr.bf16.mxu0 %v3355
      %3524 = vmatpush2.bf16.msra.mxu0 %v3354
      %3525 = vmatprep.subr.bf16.mxu0 %v3353
      %3526 = vmatpush2.bf16.msra.mxu0 %v3352
      %3527 = vmatprep.subr.bf16.mxu0 %v3351
      %3528 = vmatpush2.bf16.msra.mxu0 %v3350
      %3529 = vmatprep.subr.bf16.mxu0 %v3349
      %3530 = vmatpush2.bf16.msra.mxu0 %v3348
      %3531 = vmatprep.subr.bf16.mxu0 %v3347
      %3532 = vmatpush2.bf16.msra.mxu0 %v3346
      %3533 = vmatprep.mubr.bf16.mxu0 %v3067
      %3534 = vmatmul.mubr.bf16.gmra.mxu0 %v3066
      %v3535 = vpop.f32.mrf.mxu0
      %v3536 = vadd.f32 %v3483, %v3535
      %v3537 = vpop.f32.mrf.mxu0
      %v3538 = vadd.f32 %v3485, %v3537
      %v3539 = vpop.f32.mrf.mxu0
      %v3540 = vadd.f32 %v3487, %v3539
      %v3541 = vpop.f32.mrf.mxu0
      %v3542 = vadd.f32 %v3489, %v3541
      %3543 = vmatprep.mubr.bf16.mxu0 %v3072
      %3544 = vmatmul.mubr.bf16.gmra.mxu0 %v3071
      %v3545 = vpop.f32.mrf.mxu0
      %v3546 = vadd.f32 %v3493, %v3545
      %v3547 = vpop.f32.mrf.mxu0
      %v3548 = vadd.f32 %v3495, %v3547
      %v3549 = vpop.f32.mrf.mxu0
      %v3550 = vadd.f32 %v3497, %v3549
      %v3551 = vpop.f32.mrf.mxu0
      %v3552 = vadd.f32 %v3499, %v3551
      %3553 = vdwg.mxu0
      %3554 = vmatprep.subr.bf16.mxu0 0
      %3555 = vmatpush1.bf16.msra.mxu0 0
      %3556 = vmatprep.subr.bf16.mxu0 0
      %3557 = vmatpush1.bf16.msra.mxu0 0
      %3558 = vmatprep.subr.bf16.mxu0 0
      %3559 = vmatpush1.bf16.msra.mxu0 0
      %3560 = vmatprep.subr.bf16.mxu0 0
      %3561 = vmatpush1.bf16.msra.mxu0 0
      %3562 = vmatprep.subr.bf16.mxu0 %v3369
      %3563 = vmatpush1.bf16.msra.mxu0 %v3368
      %3564 = vmatprep.subr.bf16.mxu0 %v3367
      %3565 = vmatpush1.bf16.msra.mxu0 %v3366
      %3566 = vmatprep.subr.bf16.mxu0 %v3365
      %3567 = vmatpush1.bf16.msra.mxu0 %v3364
      %3568 = vmatprep.subr.bf16.mxu0 %v3363
      %3569 = vmatpush1.bf16.msra.mxu0 %v3362
      %3570 = vmatprep.subr.bf16.mxu0 0
      %3571 = vmatpush2.bf16.msra.mxu0 0
      %3572 = vmatprep.subr.bf16.mxu0 0
      %3573 = vmatpush2.bf16.msra.mxu0 0
      %3574 = vmatprep.subr.bf16.mxu0 0
      %3575 = vmatpush2.bf16.msra.mxu0 0
      %3576 = vmatprep.subr.bf16.mxu0 0
      %3577 = vmatpush2.bf16.msra.mxu0 0
      %3578 = vmatprep.subr.bf16.mxu0 0
      %3579 = vmatpush2.bf16.msra.mxu0 0
      %3580 = vmatprep.subr.bf16.mxu0 0
      %3581 = vmatpush2.bf16.msra.mxu0 0
      %3582 = vmatprep.subr.bf16.mxu0 0
      %3583 = vmatpush2.bf16.msra.mxu0 0
      %3584 = vmatprep.subr.bf16.mxu0 0
      %3585 = vmatpush2.bf16.msra.mxu0 0
      %3586 = vmatprep.mubr.bf16.mxu0 0
      %3587 = vmatmul.mubr.bf16.gmra.mxu0 %v3443
      %v3588 = vpop.f32.mrf.mxu0
      %v3589 = vadd.f32 %v3536, %v3588
      %v3590 = vpop.f32.mrf.mxu0
      %v3591 = vadd.f32 %v3538, %v3590
      %v3592 = vpop.f32.mrf.mxu0
      %v3593 = vadd.f32 %v3540, %v3592
      %v3594 = vpop.f32.mrf.mxu0
      %v3595 = vadd.f32 %v3542, %v3594
      %3596 = vmatprep.mubr.bf16.mxu0 0
      %3597 = vmatmul.mubr.bf16.gmra.mxu0 %v3446
      %v3598 = vpop.f32.mrf.mxu0
      %v3599 = vadd.f32 %v3546, %v3598
      %v3600 = vpop.f32.mrf.mxu0
      %v3601 = vadd.f32 %v3548, %v3600
      %v3602 = vpop.f32.mrf.mxu0
      %v3603 = vadd.f32 %v3550, %v3602
      %v3604 = vpop.f32.mrf.mxu0
      %v3605 = vadd.f32 %v3552, %v3604
      %3606 = vdwg.mxu0
      %v3607 = vld [vmem:[%s11] sm:$0xff]
      %v3608 = vld [vmem:[%s11 + $0x8] sm:$0xff]
      %v3609 = vld [vmem:[%s11 + $0x10] sm:$0xff]
      %v3610 = vld [vmem:[%s11 + $0x18] sm:$0xff]
      %v3611 = vld [vmem:[%s9] sm:$0xff]
      %v3612 = vld [vmem:[%s9 + $0x8] sm:$0xff]
      %v3613 = vld [vmem:[%s9 + $0x10] sm:$0xff]
      %v3614 = vld [vmem:[%s9 + $0x18] sm:$0xff]
      %v3615 = vld [vmem:[%s10] sm:$0xff]
      %v3616 = vld [vmem:[%s10 + $0x8] sm:$0xff]
      %v3617 = vld [vmem:[%s10 + $0x10] sm:$0xff]
      %v3618 = vld [vmem:[%s10 + $0x18] sm:$0xff]
      %v3619 = vadd.f32 %v3589, %v3591
      %3620 = vadd.xlane.f32.xlu0 %v3619
      %v3621 = vpop.xlane.xlu0 %3620
      %v3622 = vadd.f32 %v3593, %v3595
      %3623 = vadd.xlane.f32.xlu0 %v3622
      %v3624 = vpop.xlane.xlu0 %3623
      %v3625 = vadd.f32 %v3599, %v3601
      %3626 = vadd.xlane.f32.xlu0 %v3625
      %v3627 = vpop.xlane.xlu0 %3626
      %v3628 = vadd.f32 %v3603, %v3605
      %3629 = vadd.xlane.f32.xlu0 %v3628
      %v3630 = vpop.xlane.xlu0 %3629
      %v3632 = vsel %vm1266, %v3607, 0
      %v3635 = vsel %vm1266, %v3608, 0
      %v3638 = vsel %vm1266, %v3609, 0
      %v3641 = vsel %vm1266, %v3610, 0
      %3643 = vmatprep.subr.mxu0 0.0
      %3644 = vmatpush1.msra.mxu0 0.0
      %3645 = vmatprep.subr.mxu0 0.0
      %3646 = vmatpush1.msra.mxu0 0.0
      %3647 = vmatprep.subr.mxu0 0.0
      %3648 = vmatpush1.msra.mxu0 0.0
      %3649 = vmatprep.subr.mxu0 0.0
      %3650 = vmatpush1.msra.mxu0 0.0
      %3651 = vmatprep.subr.mxu0 0.0
      %3652 = vmatpush1.msra.mxu0 0.0
      %3653 = vmatprep.subr.mxu0 0.0
      %3654 = vmatpush1.msra.mxu0 0.0
      %3655 = vmatprep.subr.mxu0 0.0
      %3656 = vmatpush1.msra.mxu0 0.0
      %3657 = vmatprep.subr.mxu0 0.0
      %3658 = vmatpush1.msra.mxu0 0.0
      %3659 = vmatprep.subr.mxu0 0.0
      %3660 = vmatpush1.msra.mxu0 0.0
      %3661 = vmatprep.subr.mxu0 0.0
      %3662 = vmatpush1.msra.mxu0 0.0
      %3663 = vmatprep.subr.mxu0 0.0
      %3664 = vmatpush1.msra.mxu0 0.0
      %3665 = vmatprep.subr.mxu0 0.0
      %3666 = vmatpush1.msra.mxu0 0.0
      %3667 = vmatprep.subr.mxu0 0.0
      %3668 = vmatpush1.msra.mxu0 %v3630
      %3669 = vmatprep.subr.mxu0 0.0
      %3670 = vmatpush1.msra.mxu0 %v3627
      %3671 = vmatprep.subr.mxu0 0.0
      %3672 = vmatpush1.msra.mxu0 %v3624
      %3673 = vmatprep.subr.mxu0 0.0
      %3674 = vmatpush1.msra.mxu0 %v3621
      %3675 = vmatprep.subr.mxu0 0.0
      %3676 = vmatpush2.msra.mxu0 0.0
      %3677 = vmatprep.subr.mxu0 0.0
      %3678 = vmatpush2.msra.mxu0 0.0
      %3679 = vmatprep.subr.mxu0 0.0
      %3680 = vmatpush2.msra.mxu0 0.0
      %3681 = vmatprep.subr.mxu0 0.0
      %3682 = vmatpush2.msra.mxu0 0.0
      %3683 = vmatprep.subr.mxu0 0.0
      %3684 = vmatpush2.msra.mxu0 0.0
      %3685 = vmatprep.subr.mxu0 0.0
      %3686 = vmatpush2.msra.mxu0 0.0
      %3687 = vmatprep.subr.mxu0 0.0
      %3688 = vmatpush2.msra.mxu0 0.0
      %3689 = vmatprep.subr.mxu0 0.0
      %3690 = vmatpush2.msra.mxu0 0.0
      %3691 = vmatprep.subr.mxu0 0.0
      %3692 = vmatpush2.msra.mxu0 0.0
      %3693 = vmatprep.subr.mxu0 0.0
      %3694 = vmatpush2.msra.mxu0 0.0
      %3695 = vmatprep.subr.mxu0 0.0
      %3696 = vmatpush2.msra.mxu0 0.0
      %3697 = vmatprep.subr.mxu0 0.0
      %3698 = vmatpush2.msra.mxu0 0.0
      %3699 = vmatprep.subr.mxu0 0.0
      %3700 = vmatpush2.msra.mxu0 0.0
      %3701 = vmatprep.subr.mxu0 0.0
      %3702 = vmatpush2.msra.mxu0 0.0
      %3703 = vmatprep.subr.mxu0 0.0
      %3704 = vmatpush2.msra.mxu0 0.0
      %3705 = vmatprep.subr.mxu0 0.0
      %3706 = vmatpush2.msra.mxu0 0.0
      %3707 = vmatprep.mubr.f32.mxu0 0.0
      %3708 = vmatmul.mubr.f32.gmra.mxu0 %v3632
      %v3709 = vpop.f32.mrf.mxu0
      %v3710 = vadd.f32 0.0, %v3709
      %v3711 = vpop.f32.mrf.mxu0
      %3712 = vmatprep.mubr.f32.mxu0 0.0
      %3713 = vmatmul.mubr.f32.gmra.mxu0 %v3635
      %v3714 = vpop.f32.mrf.mxu0
      %v3715 = vadd.f32 0.0, %v3714
      %v3716 = vpop.f32.mrf.mxu0
      %3717 = vmatprep.mubr.f32.mxu0 0.0
      %3718 = vmatmul.mubr.f32.gmra.mxu0 %v3638
      %v3719 = vpop.f32.mrf.mxu0
      %v3720 = vadd.f32 0.0, %v3719
      %v3721 = vpop.f32.mrf.mxu0
      %3722 = vmatprep.mubr.f32.mxu0 0.0
      %3723 = vmatmul.mubr.f32.gmra.mxu0 %v3641
      %v3724 = vpop.f32.mrf.mxu0
      %v3725 = vadd.f32 0.0, %v3724
      %v3726 = vpop.f32.mrf.mxu0
      %3727 = vdwg.mxu0
      %3729 = vset.pattern.permute.xlu0 0
      %3730 = vperm.xlu0 %3729, %v3710
      %v3731 = vpop.permute.xlu0 %3730
      %3734 = vset.pattern.permute.xlu0 0
      %3735 = vperm.xlu0 %3734, %v3715
      %v3736 = vpop.permute.xlu0 %3735
      %3739 = vset.pattern.permute.xlu0 0
      %3740 = vperm.xlu0 %3739, %v3720
      %v3741 = vpop.permute.xlu0 %3740
      %3744 = vset.pattern.permute.xlu0 0
      %3745 = vperm.xlu0 %3744, %v3725
      %v3746 = vpop.permute.xlu0 %3745
      %v3748 = vsub.f32 %v3589, %v3731
      %v3749 = vsub.f32 %v3591, %v3731
      %v3750 = vsub.f32 %v3593, %v3736
      %v3751 = vsub.f32 %v3595, %v3736
      %v3752 = vsub.f32 %v3599, %v3741
      %v3753 = vsub.f32 %v3601, %v3741
      %v3754 = vsub.f32 %v3603, %v3746
      %v3755 = vsub.f32 %v3605, %v3746
      %v3756 = vmul.f32 %v3748, %v3748
      %v3757 = vmul.f32 %v3749, %v3749
      %v3758 = vmul.f32 %v3750, %v3750
      %v3759 = vmul.f32 %v3751, %v3751
      %v3760 = vmul.f32 %v3752, %v3752
      %v3761 = vmul.f32 %v3753, %v3753
      %v3762 = vmul.f32 %v3754, %v3754
      %v3763 = vmul.f32 %v3755, %v3755
      %v3764 = vadd.f32 %v3756, %v3757
      %3765 = vadd.xlane.f32.xlu0 %v3764
      %v3766 = vpop.xlane.xlu0 %3765
      %v3767 = vadd.f32 %v3758, %v3759
      %3768 = vadd.xlane.f32.xlu0 %v3767
      %v3769 = vpop.xlane.xlu0 %3768
      %v3770 = vadd.f32 %v3760, %v3761
      %3771 = vadd.xlane.f32.xlu0 %v3770
      %v3772 = vpop.xlane.xlu0 %3771
      %v3773 = vadd.f32 %v3762, %v3763
      %3774 = vadd.xlane.f32.xlu0 %v3773
      %v3775 = vpop.xlane.xlu0 %3774
      %3776 = vmatprep.subr.mxu0 0.0
      %3777 = vmatpush1.msra.mxu0 0.0
      %3778 = vmatprep.subr.mxu0 0.0
      %3779 = vmatpush1.msra.mxu0 0.0
      %3780 = vmatprep.subr.mxu0 0.0
      %3781 = vmatpush1.msra.mxu0 0.0
      %3782 = vmatprep.subr.mxu0 0.0
      %3783 = vmatpush1.msra.mxu0 0.0
      %3784 = vmatprep.subr.mxu0 0.0
      %3785 = vmatpush1.msra.mxu0 0.0
      %3786 = vmatprep.subr.mxu0 0.0
      %3787 = vmatpush1.msra.mxu0 0.0
      %3788 = vmatprep.subr.mxu0 0.0
      %3789 = vmatpush1.msra.mxu0 0.0
      %3790 = vmatprep.subr.mxu0 0.0
      %3791 = vmatpush1.msra.mxu0 0.0
      %3792 = vmatprep.subr.mxu0 0.0
      %3793 = vmatpush1.msra.mxu0 0.0
      %3794 = vmatprep.subr.mxu0 0.0
      %3795 = vmatpush1.msra.mxu0 0.0
      %3796 = vmatprep.subr.mxu0 0.0
      %3797 = vmatpush1.msra.mxu0 0.0
      %3798 = vmatprep.subr.mxu0 0.0
      %3799 = vmatpush1.msra.mxu0 0.0
      %3800 = vmatprep.subr.mxu0 0.0
      %3801 = vmatpush1.msra.mxu0 %v3775
      %3802 = vmatprep.subr.mxu0 0.0
      %3803 = vmatpush1.msra.mxu0 %v3772
      %3804 = vmatprep.subr.mxu0 0.0
      %3805 = vmatpush1.msra.mxu0 %v3769
      %3806 = vmatprep.subr.mxu0 0.0
      %3807 = vmatpush1.msra.mxu0 %v3766
      %3808 = vmatprep.subr.mxu0 0.0
      %3809 = vmatpush2.msra.mxu0 0.0
      %3810 = vmatprep.subr.mxu0 0.0
      %3811 = vmatpush2.msra.mxu0 0.0
      %3812 = vmatprep.subr.mxu0 0.0
      %3813 = vmatpush2.msra.mxu0 0.0
      %3814 = vmatprep.subr.mxu0 0.0
      %3815 = vmatpush2.msra.mxu0 0.0
      %3816 = vmatprep.subr.mxu0 0.0
      %3817 = vmatpush2.msra.mxu0 0.0
      %3818 = vmatprep.subr.mxu0 0.0
      %3819 = vmatpush2.msra.mxu0 0.0
      %3820 = vmatprep.subr.mxu0 0.0
      %3821 = vmatpush2.msra.mxu0 0.0
      %3822 = vmatprep.subr.mxu0 0.0
      %3823 = vmatpush2.msra.mxu0 0.0
      %3824 = vmatprep.subr.mxu0 0.0
      %3825 = vmatpush2.msra.mxu0 0.0
      %3826 = vmatprep.subr.mxu0 0.0
      %3827 = vmatpush2.msra.mxu0 0.0
      %3828 = vmatprep.subr.mxu0 0.0
      %3829 = vmatpush2.msra.mxu0 0.0
      %3830 = vmatprep.subr.mxu0 0.0
      %3831 = vmatpush2.msra.mxu0 0.0
      %3832 = vmatprep.subr.mxu0 0.0
      %3833 = vmatpush2.msra.mxu0 0.0
      %3834 = vmatprep.subr.mxu0 0.0
      %3835 = vmatpush2.msra.mxu0 0.0
      %3836 = vmatprep.subr.mxu0 0.0
      %3837 = vmatpush2.msra.mxu0 0.0
      %3838 = vmatprep.subr.mxu0 0.0
      %3839 = vmatpush2.msra.mxu0 0.0
      %3840 = vmatprep.mubr.f32.mxu0 0.0
      %3841 = vmatmul.mubr.f32.gmra.mxu0 %v3632
      %v3842 = vpop.f32.mrf.mxu0
      %v3843 = vadd.f32 1e-05, %v3842
      %v3844 = vpop.f32.mrf.mxu0
      %3845 = vmatprep.mubr.f32.mxu0 0.0
      %3846 = vmatmul.mubr.f32.gmra.mxu0 %v3635
      %v3847 = vpop.f32.mrf.mxu0
      %v3848 = vadd.f32 1e-05, %v3847
      %v3849 = vpop.f32.mrf.mxu0
      %3850 = vmatprep.mubr.f32.mxu0 0.0
      %3851 = vmatmul.mubr.f32.gmra.mxu0 %v3638
      %v3852 = vpop.f32.mrf.mxu0
      %v3853 = vadd.f32 1e-05, %v3852
      %v3854 = vpop.f32.mrf.mxu0
      %3855 = vmatprep.mubr.f32.mxu0 0.0
      %3856 = vmatmul.mubr.f32.gmra.mxu0 %v3641
      %v3857 = vpop.f32.mrf.mxu0
      %v3858 = vadd.f32 1e-05, %v3857
      %v3859 = vpop.f32.mrf.mxu0
      %3860 = vdwg.mxu0
      %v3861 = vrsqrt.pop %v3843
      %v3862 = vrsqrt.pop %v3848
      %v3863 = vrsqrt.pop %v3853
      %v3864 = vrsqrt.pop %v3858
      %3866 = vset.pattern.permute.xlu0 0
      %3867 = vperm.xlu0 %3866, %v3861
      %v3868 = vpop.permute.xlu0 %3867
      %3871 = vset.pattern.permute.xlu0 0
      %3872 = vperm.xlu0 %3871, %v3862
      %v3873 = vpop.permute.xlu0 %3872
      %3876 = vset.pattern.permute.xlu0 0
      %3877 = vperm.xlu0 %3876, %v3863
      %v3878 = vpop.permute.xlu0 %3877
      %3881 = vset.pattern.permute.xlu0 0
      %3882 = vperm.xlu0 %3881, %v3864
      %v3883 = vpop.permute.xlu0 %3882
      %v3885 = vmul.f32 %v3748, %v3868
      %v3886 = vmul.f32 %v3749, %v3868
      %v3887 = vmul.f32 %v3750, %v3873
      %v3888 = vmul.f32 %v3751, %v3873
      %v3889 = vmul.f32 %v3752, %v3878
      %v3890 = vmul.f32 %v3753, %v3878
      %v3891 = vmul.f32 %v3754, %v3883
      %v3892 = vmul.f32 %v3755, %v3883
      %3894 = vset.pattern.permute.xlu0 0
      %3895 = vperm.xlu0 %3894, %v3611
      %v3896 = vpop.permute.xlu0 %3895
      %3899 = vset.pattern.permute.xlu0 0
      %3900 = vperm.xlu0 %3899, %v3612
      %v3901 = vpop.permute.xlu0 %3900
      %3904 = vset.pattern.permute.xlu0 0
      %3905 = vperm.xlu0 %3904, %v3613
      %v3906 = vpop.permute.xlu0 %3905
      %3909 = vset.pattern.permute.xlu0 0
      %3910 = vperm.xlu0 %3909, %v3614
      %v3911 = vpop.permute.xlu0 %3910
      %v3913 = vmul.f32 %v3885, %v3896
      %v3914 = vmul.f32 %v3886, %v3896
      %v3915 = vmul.f32 %v3887, %v3901
      %v3916 = vmul.f32 %v3888, %v3901
      %v3917 = vmul.f32 %v3889, %v3906
      %v3918 = vmul.f32 %v3890, %v3906
      %v3919 = vmul.f32 %v3891, %v3911
      %v3920 = vmul.f32 %v3892, %v3911
      %3922 = vset.pattern.permute.xlu0 0
      %3923 = vperm.xlu0 %3922, %v3615
      %v3924 = vpop.permute.xlu0 %3923
      %3927 = vset.pattern.permute.xlu0 0
      %3928 = vperm.xlu0 %3927, %v3616
      %v3929 = vpop.permute.xlu0 %3928
      %3932 = vset.pattern.permute.xlu0 0
      %3933 = vperm.xlu0 %3932, %v3617
      %v3934 = vpop.permute.xlu0 %3933
      %3937 = vset.pattern.permute.xlu0 0
      %3938 = vperm.xlu0 %3937, %v3618
      %v3939 = vpop.permute.xlu0 %3938
      %v3941 = vadd.f32 %v3913, %v3924
      %v3942 = vadd.f32 %v3914, %v3924
      %v3943 = vadd.f32 %v3915, %v3929
      %v3944 = vadd.f32 %v3916, %v3929
      %v3945 = vadd.f32 %v3917, %v3934
      %v3946 = vadd.f32 %v3918, %v3934
      %v3947 = vadd.f32 %v3919, %v3939
      %v3948 = vadd.f32 %v3920, %v3939
      %v3949 = vmul.f32 %v3941, 0.5
      %v3950 = vmul.f32 %v3942, 0.5
      %v3951 = vmul.f32 %v3943, 0.5
      %v3952 = vmul.f32 %v3944, 0.5
      %v3953 = vmul.f32 %v3945, 0.5
      %v3954 = vmul.f32 %v3946, 0.5
      %v3955 = vmul.f32 %v3947, 0.5
      %v3956 = vmul.f32 %v3948, 0.5
      %v3957 = vmul.f32 %v3941, 0.70710677
      %v3958 = vmul.f32 %v3942, 0.70710677
      %v3959 = vmul.f32 %v3943, 0.70710677
      %v3960 = vmul.f32 %v3944, 0.70710677
      %v3961 = vmul.f32 %v3945, 0.70710677
      %v3962 = vmul.f32 %v3946, 0.70710677
      %v3963 = vmul.f32 %v3947, 0.70710677
      %v3964 = vmul.f32 %v3948, 0.70710677
      %v3965 = verf.f32.pop %v3957
      %v3966 = verf.f32.pop %v3958
      %v3967 = verf.f32.pop %v3959
      %v3968 = verf.f32.pop %v3960
      %v3969 = verf.f32.pop %v3961
      %v3970 = verf.f32.pop %v3962
      %v3971 = verf.f32.pop %v3963
      %v3972 = verf.f32.pop %v3964
      %v3973 = vadd.f32 %v3965, 1.0
      %v3974 = vadd.f32 %v3966, 1.0
      %v3975 = vadd.f32 %v3967, 1.0
      %v3976 = vadd.f32 %v3968, 1.0
      %v3977 = vadd.f32 %v3969, 1.0
      %v3978 = vadd.f32 %v3970, 1.0
      %v3979 = vadd.f32 %v3971, 1.0
      %v3980 = vadd.f32 %v3972, 1.0
      %v3981 = vmul.f32 %v3949, %v3973
      %v3982 = vmul.f32 %v3950, %v3974
      %v3983 = vmul.f32 %v3951, %v3975
      %v3984 = vmul.f32 %v3952, %v3976
      %v3985 = vmul.f32 %v3953, %v3977
      %v3986 = vmul.f32 %v3954, %v3978
      %v3987 = vmul.f32 %v3955, %v3979
      %v3988 = vmul.f32 %v3956, %v3980
      %3989 = vst [vmem:[%s413] sm:$0xff] %v3981
      %3990 = vst [vmem:[%s413 + $0x8] sm:$0xff] %v3982
      %3991 = vst [vmem:[%s413 + $0x10] sm:$0xff] %v3983
      %3992 = vst [vmem:[%s413 + $0x18] sm:$0xff] %v3984
      %3993 = vst [vmem:[%s413 + $0x20] sm:$0xff] %v3985
      %3994 = vst [vmem:[%s413 + $0x28] sm:$0xff] %v3986
      %3995 = vst [vmem:[%s413 + $0x30] sm:$0xff] %v3987
      %3996 = vst [vmem:[%s413 + $0x38] sm:$0xff] %v3988
      %p3997 = scmp.lt.s32.totalorder %s23, 3
      %s3998 = scalar_select %p3997, %s23, 3
      %s3999 = smul.addr %s3998, 8
      %s4000 = smul.addr %s3999, 8
      %s4001 = scalar_lea.vmem %s12, %s4000
      // Predicated region
      $region69: #{decoder_block_forward.1} parent=67 // pred_check
        %p4002 = pneg %p298
      $region70: #{decoder_block_forward.1} parent=67 // pred_check_branch
        %4004 = sbr.rel (%p4002) target = $region72
      $region71: #{decoder_block_forward.1} parent=67 // pred_region
        _
      $region72: #{decoder_block_forward.1} parent=67 // pred_fallthru
        _
    $region68: #{decoder_block_forward.1} parent=5 // pred_fallthru
      _
    %p4005 = scmp.le.s32.totalorder 2, %s18
    // Predicated region
    $region73: #{decoder_block_forward.1} parent=5 // pred_check
      %p4006 = pneg %p4005
    $region74: #{decoder_block_forward.1} parent=5 // pred_check_branch
      %4008 = sbr.rel (%p4006) target = $region76
    $region75: #{decoder_block_forward.1} parent=5 // pred_region
      %s4009 = ssub.s32 %s18, 2
      // Predicated region
      $region77: #{decoder_block_forward.1} parent=75 // pred_check
        %p4010 = pneg %p304
      $region78: #{decoder_block_forward.1} parent=75 // pred_check_branch
        %4012 = sbr.rel (%p4010) target = $region80
      $region79: #{decoder_block_forward.1} parent=75 // pred_region
        %p4013 = scmp.lt.s32.totalorder %s24, 3
        %s4014 = scalar_select %p4013, %s24, 3
        %s4015 = smul.addr %s4014, 8
        %s4016 = smul.addr %s4015, 8
        %s4017 = scalar_lea.vmem %s12, %s4016
      $region80: #{decoder_block_forward.1} parent=75 // pred_fallthru
        _
    $region76: #{decoder_block_forward.1} parent=5 // pred_fallthru
      _
  $region6: #{decoder_block_forward.1} parent=0 // loop_footer
    %s22 = sadd.s32 1, %s18
  $region7: #{decoder_block_forward.1} parent=0 // loop_footer_branch
    %17 = sbr.rel target = $region3
  $region8: #{decoder_block_forward.1} parent=0 // loop_exit
    _

</llo_original>
